<compile_context>
chip_gen: v7x
topology: tpu7x:2x2x1
jax: 0.10.0
libtpu: 0.0.40
codegen_flags: <defaults>
</compile_context>

<pallas_src>
import functools
import math

import jax
import jax.numpy as jnp
from jax.experimental import pallas as pl
from jax.experimental.pallas import tpu as pltpu


# ----------------------------------------------------------------------------
# Fused kernel: QKV projection + flash-style causal attention (online softmax)
# ----------------------------------------------------------------------------
def _fused_causal_attn_kernel(xq_ref, xkv_ref, w_ref, b_ref, o_ref,
                              q_sc, m_sc, l_sc, acc_sc,
                              *, scale, h_pad, block_q, block_k, use_bf16):
    qi = pl.program_id(0)
    ki = pl.program_id(1)

    compute_dtype = jnp.bfloat16 if use_bf16 else jnp.float32
    # Reference: (A + triu*(-9999)) * scale == A*scale + triu*(-9999*scale).
    neg_mask = jnp.float32(-9999.0 * scale)

    @pl.when(ki == 0)
    def _init():
        # Project this q row block once per q block, folding the softmax scale in.
        xq = xq_ref[...].astype(compute_dtype)
        wq = w_ref[:, 0:h_pad].astype(compute_dtype)
        q = jnp.dot(xq, wq, preferred_element_type=jnp.float32) + b_ref[:, 0:h_pad]
        q_sc[...] = q * jnp.float32(scale)
        m_sc[...] = jnp.full_like(m_sc, -jnp.inf)
        l_sc[...] = jnp.zeros_like(l_sc)
        acc_sc[...] = jnp.zeros_like(acc_sc)

    def _step(apply_mask):
        # Project the k/v tile for this kv block (W_qkv is VMEM-resident).
        xkv = xkv_ref[...].astype(compute_dtype)
        wk = w_ref[:, h_pad:2 * h_pad].astype(compute_dtype)
        wv = w_ref[:, 2 * h_pad:3 * h_pad].astype(compute_dtype)
        k = jnp.dot(xkv, wk, preferred_element_type=jnp.float32) + b_ref[:, h_pad:2 * h_pad]
        v = jnp.dot(xkv, wv, preferred_element_type=jnp.float32) + b_ref[:, 2 * h_pad:3 * h_pad]

        # scores = (scale*q) @ k.T without materializing k.T (contract hidden axis).
        s = jax.lax.dot_general(
            q_sc[...].astype(compute_dtype), k.astype(compute_dtype),
            dimension_numbers=(((1,), (1,)), ((), ())),
            preferred_element_type=jnp.float32)

        if apply_mask:
            # Only the diagonal tile needs the causal mask; interior tiles (ki < qi)
            # are entirely below the diagonal.
            row = qi * block_q + jax.lax.broadcasted_iota(jnp.int32, s.shape, 0)
            col = ki * block_k + jax.lax.broadcasted_iota(jnp.int32, s.shape, 1)
            s = jnp.where(col > row, s + neg_mask, s)

        m_prev = m_sc[...]
        m_new = jnp.maximum(m_prev, jnp.max(s, axis=1, keepdims=True))
        alpha = jnp.exp(m_prev - m_new)
        p = jnp.exp(s - m_new)

        l_sc[...] = alpha * l_sc[...] + jnp.sum(p, axis=1, keepdims=True)
        acc_sc[...] = alpha * acc_sc[...] + jnp.dot(
            p.astype(compute_dtype), v.astype(compute_dtype),
            preferred_element_type=jnp.float32)
        m_sc[...] = m_new

    @pl.when(ki < qi)        # strictly-lower tiles: no mask needed
    def _interior():
        _step(apply_mask=False)

    @pl.when(ki == qi)       # diagonal tile: mask the strict upper triangle
    def _diag():
        _step(apply_mask=True)

    # ki > qi: fully-masked tiles.  exp(s + neg_mask - m) underflows to exactly 0 in f32
    # (matching the reference's finite -9999 mask), so these steps are skipped and — via
    # the clamped index_map — fetch no K/V data at all.

    @pl.when(ki == pl.num_programs(1) - 1)
    def _finalize():
        # Exact division (approx reciprocal previously cost ~3e-3 absolute error).
        o_ref[...] = (acc_sc[...] / l_sc[...]).astype(o_ref.dtype)


# ----------------------------------------------------------------------------
# Wrapper
# ----------------------------------------------------------------------------
def masked_self_attention(x, wq, bq, wk, bk, wv, bv, *,
                          block_q=128, block_k=128, use_bf16=False):
    """x: (T, H) float32. wq/wk/wv: (H, H) stored input-major. bq/bk/bv: (H,)."""
    T, H = x.shape
    assert block_q == block_k, "causal tile clamping/skipping assumes square tiles"
    scale = 1.0 / math.sqrt(H)                       # uses the ORIGINAL h_dim

    lane = 128
    H_pad = max(lane, pl.cdiv(H, lane) * lane)
    blk = block_q
    T_pad = max(blk, pl.cdiv(T, blk) * blk)

    x_pad = jnp.zeros((T_pad, H_pad), jnp.float32).at[:T, :H].set(x.astype(jnp.float32))

    # Fused / padded QKV weights: columns [0:H_pad)=Q, [H_pad:2H_pad)=K, [2H_pad:3H_pad)=V.
    w_qkv = jnp.zeros((H_pad, 3 * H_pad), jnp.float32)
    w_qkv = w_qkv.at[:H, 0 * H_pad:0 * H_pad + H].set(wq)
    w_qkv = w_qkv.at[:H, 1 * H_pad:1 * H_pad + H].set(wk)
    w_qkv = w_qkv.at[:H, 2 * H_pad:2 * H_pad + H].set(wv)
    b_qkv = jnp.zeros((1, 3 * H_pad), jnp.float32)
    b_qkv = b_qkv.at[0, 0 * H_pad:0 * H_pad + H].set(bq)
    b_qkv = b_qkv.at[0, 1 * H_pad:1 * H_pad + H].set(bk)
    b_qkv = b_qkv.at[0, 2 * H_pad:2 * H_pad + H].set(bv)

    num_q = T_pad // block_q
    num_k = T_pad // block_k

    kernel = functools.partial(
        _fused_causal_attn_kernel, scale=scale, h_pad=H_pad,
        block_q=block_q, block_k=block_k, use_bf16=use_bf16)

    n_tiles = num_q * (num_q + 1) // 2   # computed (qi, ki) tiles (lower triangle)
    cost = pl.CostEstimate(
        flops=(2 * T_pad * H_pad * H_pad                      # q projection
               + n_tiles * (4 * block_k * H_pad * H_pad       # k/v projection per tile
                            + 4 * block_q * block_k * H_pad)),  # qk^T and pv per tile
        transcendentals=n_tiles * block_q * block_k,
        bytes_accessed=4 * (T_pad * H_pad                     # x rows for Q
                            + n_tiles * block_k * H_pad       # x rows for K/V (per q block)
                            + H_pad * 3 * H_pad + 3 * H_pad   # resident weights + bias
                            + T_pad * H_pad))                 # output

    out_pad = pl.pallas_call(
        kernel,
        out_shape=jax.ShapeDtypeStruct((T_pad, H_pad), x.dtype),
        grid_spec=pltpu.PrefetchScalarGridSpec(
            num_scalar_prefetch=0,
            grid=(num_q, num_k),                 # kv (reduction) axis last
            in_specs=[
                # x rows for the q block (resident across the kv loop).
                pl.BlockSpec((block_q, H_pad), lambda qi, ki: (qi, 0)),
                # x rows for the k/v block; clamp to the diagonal so fully-masked
                # steps re-use the previous block and issue no DMA.
                pl.BlockSpec((block_k, H_pad),
                             lambda qi, ki: (jnp.minimum(ki, qi), 0)),
                pl.BlockSpec((H_pad, 3 * H_pad), lambda qi, ki: (0, 0)),  # resident W_qkv
                pl.BlockSpec((1, 3 * H_pad), lambda qi, ki: (0, 0)),      # resident b_qkv
            ],
            out_specs=pl.BlockSpec((block_q, H_pad), lambda qi, ki: (qi, 0)),
            scratch_shapes=[
                pltpu.VMEM((block_q, H_pad), jnp.float32),   # pre-scaled q tile
                pltpu.VMEM((block_q, 1), jnp.float32),       # running max m
                pltpu.VMEM((block_q, 1), jnp.float32),       # running sum l
                pltpu.VMEM((block_q, H_pad), jnp.float32),   # output accumulator
            ],
        ),
        compiler_params=pltpu.CompilerParams(
            dimension_semantics=("parallel", "arbitrary"),
            vmem_limit_bytes=32 * 1024 * 1024),
        cost_estimate=cost,
    )(x_pad, x_pad, w_qkv, b_qkv)

    return out_pad[:T, :H]


# ----------------------------------------------------------------------------
# Pure-JAX reference (mirrors the PyTorch forward exactly)
# ----------------------------------------------------------------------------
def _reference(x, wq, bq, wk, bk, wv, bv):
    H = x.shape[-1]
    scale = 1.0 / math.sqrt(H)
    q = x @ wq + bq
    k = x @ wk + bk
    v = x @ wv + bv
    a = q @ k.T
    triu = 1.0 - jnp.tril(jnp.ones_like(a))
    masked = triu * -9999.0 + a
    p = jax.nn.softmax(masked * scale, axis=1)
    return p @ v


if __name__ == "__main__":
    h_dim = 3      # as in the PyTorch module
    seq = 200      # exercises tiling (2x2 grid of 128-blocks) and the padding paths

    key = jax.random.PRNGKey(0)
    kx, kq, kbq, kk, kbk, kv, kbv = jax.random.split(key, 7)

    x = jax.random.normal(kx, (seq, h_dim), dtype=jnp.float32)
    # Deterministic parameter init (synthetic; shapes match torch.nn.Linear(h_dim, h_dim)).
    bound = 1.0 / math.sqrt(h_dim)
    wq = jax.random.uniform(kq, (h_dim, h_dim), jnp.float32, -bound, bound)
    wk = jax.random.uniform(kk, (h_dim, h_dim), jnp.float32, -bound, bound)
    wv = jax.random.uniform(kv, (h_dim, h_dim), jnp.float32, -bound, bound)
    bq = jax.random.uniform(kbq, (h_dim,), jnp.float32, -bound, bound)
    bk = jax.random.uniform(kbk, (h_dim,), jnp.float32, -bound, bound)
    bv = jax.random.uniform(kbv, (h_dim,), jnp.float32, -bound, bound)

    z_ref = _reference(x, wq, bq, wk, bk, wv, bv)

    # f32 path (default): matches the PyTorch reference numerics.
    z = jax.block_until_ready(masked_self_attention(x, wq, bq, wk, bk, wv, bv))
    assert z.shape == (seq, h_dim)
    err = float(jnp.max(jnp.abs(z - z_ref)))
    assert jnp.allclose(z, z_ref, atol=1e-4, rtol=1e-4), err

    # bf16 MXU path (perf-review item): ~2-3x matmul throughput at ~1e-3 accuracy.
    z16 = jax.block_until_ready(
        masked_self_attention(x, wq, bq, wk, bk, wv, bv, use_bf16=True))
    err16 = float(jnp.max(jnp.abs(z16 - z_ref)))
    assert jnp.allclose(z16, z_ref, atol=5e-2, rtol=5e-2), err16

    print("KERNEL_OK")
</pallas_src>

<mosaic_0001>
module attributes {stable_mosaic.version = 11 : i64} {
  func.func @_fused_causal_attn_kernel(%arg0: i32, %arg1: i32, %arg2: memref<128x128xf32, #tpu.memory_space<vmem>>, %arg3: memref<128x128xf32, #tpu.memory_space<vmem>>, %arg4: memref<128x384xf32, #tpu.memory_space<vmem>>, %arg5: memref<1x384xf32, #tpu.memory_space<vmem>>, %arg6: memref<128x128xf32, #tpu.memory_space<vmem>>, %arg7: memref<128x128xf32, #tpu.memory_space<vmem>>, %arg8: memref<128x1xf32, #tpu.memory_space<vmem>>, %arg9: memref<128x1xf32, #tpu.memory_space<vmem>>, %arg10: memref<128x128xf32, #tpu.memory_space<vmem>>) attributes {dimension_semantics = [#tpu.dimension_semantics<parallel>, #tpu.dimension_semantics<arbitrary>], iteration_bounds = array<i64: 2, 2>, scalar_prefetch = 0 : i64, scratch_operands = 4 : i64, tpu.core_type = #tpu.core_type<tc>, window_params = [{transform_indices = @transform_0, window_bounds = array<i64: 128, 128>}, {transform_indices = @transform_1, window_bounds = array<i64: 128, 128>}, {pipeline_mode = #tpu.pipeline_mode<synchronous>, transform_indices = @transform_2, window_bounds = array<i64: 128, 384>}, {pipeline_mode = #tpu.pipeline_mode<synchronous>, transform_indices = @transform_3, window_bounds = array<i64: 1, 384>}, {transform_indices = @transform_4, window_bounds = array<i64: 128, 128>}]} {
    %c0_i32 = arith.constant 0 : i32
    %0 = arith.cmpi eq, %arg1, %c0_i32 : i32
    %1 = arith.extui %0 : i1 to i32
    %c0_i32_0 = arith.constant 0 : i32
    %2 = arith.cmpi ne, %1, %c0_i32_0 : i32
    scf.if %2 {
      %c0 = arith.constant 0 : index
      %c0_4 = arith.constant 0 : index
      %12 = vector.load %arg2[%c0, %c0_4] : memref<128x128xf32, #tpu.memory_space<vmem>>, vector<128x128xf32>
      %c0_5 = arith.constant 0 : index
      %c0_6 = arith.constant 0 : index
      %13 = vector.load %arg4[%c0_5, %c0_6] : memref<128x384xf32, #tpu.memory_space<vmem>>, vector<128x128xf32>
      %cst_7 = arith.constant dense<0.000000e+00> : vector<128x128xf32>
      %14 = tpu.matmul %12, %13, %cst_7 {dimension_numbers = #tpu.dot_dimension_numbers<[1], [0], [0], [1], [0, 0, 1, 1], [], []>} : vector<128x128xf32>, vector<128x128xf32>, vector<128x128xf32> -> vector<128x128xf32>
      %c0_8 = arith.constant 0 : index
      %c0_9 = arith.constant 0 : index
      %15 = vector.load %arg5[%c0_8, %c0_9] : memref<1x384xf32, #tpu.memory_space<vmem>>, vector<1x128xf32>
      %16 = vector.broadcast %15 : vector<1x128xf32> to vector<128x128xf32>
      %17 = arith.addf %14, %16 : vector<128x128xf32>
      %cst_10 = arith.constant 0.577350259 : f32
      %18 = vector.broadcast %cst_10 : f32 to vector<128x128xf32>
      %19 = arith.mulf %17, %18 : vector<128x128xf32>
      %c0_11 = arith.constant 0 : index
      %c0_12 = arith.constant 0 : index
      %20 = vector.load %arg7[%c0_11, %c0_12] : memref<128x128xf32, #tpu.memory_space<vmem>>, vector<128x128xf32>
      tpu.vector_store %arg7[%c0_11, %c0_12], %19 {strides = array<i32>} : memref<128x128xf32, #tpu.memory_space<vmem>>, vector<128x128xf32>,
      %cst_13 = arith.constant 0xFF800000 : f32
      %21 = vector.broadcast %cst_13 : f32 to vector<128x1xf32>
      %c0_14 = arith.constant 0 : index
      %c0_15 = arith.constant 0 : index
      %22 = vector.load %arg8[%c0_14, %c0_15] : memref<128x1xf32, #tpu.memory_space<vmem>>, vector<128x1xf32>
      tpu.vector_store %arg8[%c0_14, %c0_15], %21 {strides = array<i32>} : memref<128x1xf32, #tpu.memory_space<vmem>>, vector<128x1xf32>,
      %cst_16 = arith.constant 0.000000e+00 : f32
      %23 = vector.broadcast %cst_16 : f32 to vector<128x1xf32>
      %c0_17 = arith.constant 0 : index
      %c0_18 = arith.constant 0 : index
      %24 = vector.load %arg9[%c0_17, %c0_18] : memref<128x1xf32, #tpu.memory_space<vmem>>, vector<128x1xf32>
      tpu.vector_store %arg9[%c0_17, %c0_18], %23 {strides = array<i32>} : memref<128x1xf32, #tpu.memory_space<vmem>>, vector<128x1xf32>,
      %cst_19 = arith.constant 0.000000e+00 : f32
      %25 = vector.broadcast %cst_19 : f32 to vector<128x128xf32>
      %c0_20 = arith.constant 0 : index
      %c0_21 = arith.constant 0 : index
      %26 = vector.load %arg10[%c0_20, %c0_21] : memref<128x128xf32, #tpu.memory_space<vmem>>, vector<128x128xf32>
      tpu.vector_store %arg10[%c0_20, %c0_21], %25 {strides = array<i32>} : memref<128x128xf32, #tpu.memory_space<vmem>>, vector<128x128xf32>,
    } else {
    }
    %3 = arith.cmpi slt, %arg1, %arg0 : i32
    %4 = arith.extui %3 : i1 to i32
    %c0_i32_1 = arith.constant 0 : i32
    %5 = arith.cmpi ne, %4, %c0_i32_1 : i32
    scf.if %5 {
      %c0 = arith.constant 0 : index
      %c0_4 = arith.constant 0 : index
      %12 = vector.load %arg3[%c0, %c0_4] : memref<128x128xf32, #tpu.memory_space<vmem>>, vector<128x128xf32>
      %c0_5 = arith.constant 0 : index
      %c128 = arith.constant 128 : index
      %13 = vector.load %arg4[%c0_5, %c128] : memref<128x384xf32, #tpu.memory_space<vmem>>, vector<128x128xf32>
      %c0_6 = arith.constant 0 : index
      %c256 = arith.constant 256 : index
      %14 = vector.load %arg4[%c0_6, %c256] : memref<128x384xf32, #tpu.memory_space<vmem>>, vector<128x128xf32>
      %cst_7 = arith.constant dense<0.000000e+00> : vector<128x128xf32>
      %15 = tpu.matmul %12, %13, %cst_7 {dimension_numbers = #tpu.dot_dimension_numbers<[1], [0], [0], [1], [0, 0, 1, 1], [], []>} : vector<128x128xf32>, vector<128x128xf32>, vector<128x128xf32> -> vector<128x128xf32>
      %c0_8 = arith.constant 0 : index
      %c128_9 = arith.constant 128 : index
      %16 = vector.load %arg5[%c0_8, %c128_9] : memref<1x384xf32, #tpu.memory_space<vmem>>, vector<1x128xf32>
      %17 = vector.broadcast %16 : vector<1x128xf32> to vector<128x128xf32>
      %18 = arith.addf %15, %17 : vector<128x128xf32>
      %cst_10 = arith.constant dense<0.000000e+00> : vector<128x128xf32>
      %19 = tpu.matmul %12, %14, %cst_10 {dimension_numbers = #tpu.dot_dimension_numbers<[1], [0], [0], [1], [0, 0, 1, 1], [], []>} : vector<128x128xf32>, vector<128x128xf32>, vector<128x128xf32> -> vector<128x128xf32>
      %c0_11 = arith.constant 0 : index
      %c256_12 = arith.constant 256 : index
      %20 = vector.load %arg5[%c0_11, %c256_12] : memref<1x384xf32, #tpu.memory_space<vmem>>, vector<1x128xf32>
      %21 = vector.broadcast %20 : vector<1x128xf32> to vector<128x128xf32>
      %22 = arith.addf %19, %21 : vector<128x128xf32>
      %c0_13 = arith.constant 0 : index
      %c0_14 = arith.constant 0 : index
      %23 = vector.load %arg7[%c0_13, %c0_14] : memref<128x128xf32, #tpu.memory_space<vmem>>, vector<128x128xf32>
      %cst_15 = arith.constant dense<0.000000e+00> : vector<128x128xf32>
      %24 = tpu.matmul %23, %18, %cst_15 {dimension_numbers = #tpu.dot_dimension_numbers<[1], [1], [0], [0], [0, 0, 1, 0], [], []>} : vector<128x128xf32>, vector<128x128xf32>, vector<128x128xf32> -> vector<128x128xf32>
      %c0_16 = arith.constant 0 : index
      %c0_17 = arith.constant 0 : index
      %25 = vector.load %arg8[%c0_16, %c0_17] : memref<128x1xf32, #tpu.memory_space<vmem>>, vector<128x1xf32>
      %cst_18 = arith.constant dense<0xFF800000> : vector<128xf32>
      %26 = vector.multi_reduction <maximumf>, %24, %cst_18 [1] : vector<128x128xf32> to vector<128xf32>
      %27 = vector.shape_cast %26 : vector<128xf32> to vector<128x1xf32>
      %28 = arith.maximumf %25, %27 : vector<128x1xf32>
      %29 = arith.subf %25, %28 : vector<128x1xf32>
      %30 = math.exp %29 : vector<128x1xf32>
      %31 = vector.broadcast %28 : vector<128x1xf32> to vector<128x128xf32>
      %32 = arith.subf %24, %31 : vector<128x128xf32>
      %33 = math.exp %32 : vector<128x128xf32>
      %c0_19 = arith.constant 0 : index
      %c0_20 = arith.constant 0 : index
      %34 = vector.load %arg9[%c0_19, %c0_20] : memref<128x1xf32, #tpu.memory_space<vmem>>, vector<128x1xf32>
      %35 = arith.mulf %30, %34 : vector<128x1xf32>
      %cst_21 = arith.constant dense<0.000000e+00> : vector<128xf32>
      %36 = vector.multi_reduction <add>, %33, %cst_21 [1] : vector<128x128xf32> to vector<128xf32>
      %37 = vector.shape_cast %36 : vector<128xf32> to vector<128x1xf32>
      %38 = arith.addf %35, %37 : vector<128x1xf32>
      %c0_22 = arith.constant 0 : index
      %c0_23 = arith.constant 0 : index
      %39 = vector.load %arg9[%c0_22, %c0_23] : memref<128x1xf32, #tpu.memory_space<vmem>>, vector<128x1xf32>
      tpu.vector_store %arg9[%c0_22, %c0_23], %38 {strides = array<i32>} : memref<128x1xf32, #tpu.memory_space<vmem>>, vector<128x1xf32>,
      %c0_24 = arith.constant 0 : index
      %c0_25 = arith.constant 0 : index
      %40 = vector.load %arg10[%c0_24, %c0_25] : memref<128x128xf32, #tpu.memory_space<vmem>>, vector<128x128xf32>
      %41 = vector.broadcast %30 : vector<128x1xf32> to vector<128x128xf32>
      %42 = arith.mulf %41, %40 : vector<128x128xf32>
      %cst_26 = arith.constant dense<0.000000e+00> : vector<128x128xf32>
      %43 = tpu.matmul %33, %22, %cst_26 {dimension_numbers = #tpu.dot_dimension_numbers<[1], [0], [0], [1], [0, 0, 1, 1], [], []>} : vector<128x128xf32>, vector<128x128xf32>, vector<128x128xf32> -> vector<128x128xf32>
      %44 = arith.addf %42, %43 : vector<128x128xf32>
      %c0_27 = arith.constant 0 : index
      %c0_28 = arith.constant 0 : index
      %45 = vector.load %arg10[%c0_27, %c0_28] : memref<128x128xf32, #tpu.memory_space<vmem>>, vector<128x128xf32>
      tpu.vector_store %arg10[%c0_27, %c0_28], %44 {strides = array<i32>} : memref<128x128xf32, #tpu.memory_space<vmem>>, vector<128x128xf32>,
      %c0_29 = arith.constant 0 : index
      %c0_30 = arith.constant 0 : index
      %46 = vector.load %arg8[%c0_29, %c0_30] : memref<128x1xf32, #tpu.memory_space<vmem>>, vector<128x1xf32>
      tpu.vector_store %arg8[%c0_29, %c0_30], %28 {strides = array<i32>} : memref<128x1xf32, #tpu.memory_space<vmem>>, vector<128x1xf32>,
    } else {
    }
    %6 = arith.cmpi eq, %arg1, %arg0 : i32
    %7 = arith.extui %6 : i1 to i32
    %cst = arith.constant -5772.92529 : f32
    %c0_i32_2 = arith.constant 0 : i32
    %8 = arith.cmpi ne, %7, %c0_i32_2 : i32
    scf.if %8 {
      %c0 = arith.constant 0 : index
      %c0_4 = arith.constant 0 : index
      %12 = vector.load %arg3[%c0, %c0_4] : memref<128x128xf32, #tpu.memory_space<vmem>>, vector<128x128xf32>
      %c0_5 = arith.constant 0 : index
      %c128 = arith.constant 128 : index
      %13 = vector.load %arg4[%c0_5, %c128] : memref<128x384xf32, #tpu.memory_space<vmem>>, vector<128x128xf32>
      %c0_6 = arith.constant 0 : index
      %c256 = arith.constant 256 : index
      %14 = vector.load %arg4[%c0_6, %c256] : memref<128x384xf32, #tpu.memory_space<vmem>>, vector<128x128xf32>
      %cst_7 = arith.constant dense<0.000000e+00> : vector<128x128xf32>
      %15 = tpu.matmul %12, %13, %cst_7 {dimension_numbers = #tpu.dot_dimension_numbers<[1], [0], [0], [1], [0, 0, 1, 1], [], []>} : vector<128x128xf32>, vector<128x128xf32>, vector<128x128xf32> -> vector<128x128xf32>
      %c0_8 = arith.constant 0 : index
      %c128_9 = arith.constant 128 : index
      %16 = vector.load %arg5[%c0_8, %c128_9] : memref<1x384xf32, #tpu.memory_space<vmem>>, vector<1x128xf32>
      %17 = vector.broadcast %16 : vector<1x128xf32> to vector<128x128xf32>
      %18 = arith.addf %15, %17 : vector<128x128xf32>
      %cst_10 = arith.constant dense<0.000000e+00> : vector<128x128xf32>
      %19 = tpu.matmul %12, %14, %cst_10 {dimension_numbers = #tpu.dot_dimension_numbers<[1], [0], [0], [1], [0, 0, 1, 1], [], []>} : vector<128x128xf32>, vector<128x128xf32>, vector<128x128xf32> -> vector<128x128xf32>
      %c0_11 = arith.constant 0 : index
      %c256_12 = arith.constant 256 : index
      %20 = vector.load %arg5[%c0_11, %c256_12] : memref<1x384xf32, #tpu.memory_space<vmem>>, vector<1x128xf32>
      %21 = vector.broadcast %20 : vector<1x128xf32> to vector<128x128xf32>
      %22 = arith.addf %19, %21 : vector<128x128xf32>
      %c0_13 = arith.constant 0 : index
      %c0_14 = arith.constant 0 : index
      %23 = vector.load %arg7[%c0_13, %c0_14] : memref<128x128xf32, #tpu.memory_space<vmem>>, vector<128x128xf32>
      %cst_15 = arith.constant dense<0.000000e+00> : vector<128x128xf32>
      %24 = tpu.matmul %23, %18, %cst_15 {dimension_numbers = #tpu.dot_dimension_numbers<[1], [1], [0], [0], [0, 0, 1, 0], [], []>} : vector<128x128xf32>, vector<128x128xf32>, vector<128x128xf32> -> vector<128x128xf32>
      %c128_i32 = arith.constant 128 : i32
      %25 = arith.muli %arg0, %c128_i32 : i32
      %26 = tpu.iota {dimensions = array<i32: 0>} : vector<128x128xi32>
      %27 = vector.broadcast %25 : i32 to vector<128x128xi32>
      %28 = arith.addi %27, %26 : vector<128x128xi32>
      %c128_i32_16 = arith.constant 128 : i32
      %29 = arith.muli %arg1, %c128_i32_16 : i32
      %30 = tpu.iota {dimensions = array<i32: 1>} : vector<128x128xi32>
      %31 = vector.broadcast %29 : i32 to vector<128x128xi32>
      %32 = arith.addi %31, %30 : vector<128x128xi32>
      %33 = arith.cmpi sgt, %32, %28 : vector<128x128xi32>
      %34 = vector.broadcast %cst : f32 to vector<128x128xf32>
      %35 = arith.addf %24, %34 : vector<128x128xf32>
      %36 = arith.select %33, %35, %24 : vector<128x128xi1>, vector<128x128xf32>
      %c0_17 = arith.constant 0 : index
      %c0_18 = arith.constant 0 : index
      %37 = vector.load %arg8[%c0_17, %c0_18] : memref<128x1xf32, #tpu.memory_space<vmem>>, vector<128x1xf32>
      %cst_19 = arith.constant dense<0xFF800000> : vector<128xf32>
      %38 = vector.multi_reduction <maximumf>, %36, %cst_19 [1] : vector<128x128xf32> to vector<128xf32>
      %39 = vector.shape_cast %38 : vector<128xf32> to vector<128x1xf32>
      %40 = arith.maximumf %37, %39 : vector<128x1xf32>
      %41 = arith.subf %37, %40 : vector<128x1xf32>
      %42 = math.exp %41 : vector<128x1xf32>
      %43 = vector.broadcast %40 : vector<128x1xf32> to vector<128x128xf32>
      %44 = arith.subf %36, %43 : vector<128x128xf32>
      %45 = math.exp %44 : vector<128x128xf32>
      %c0_20 = arith.constant 0 : index
      %c0_21 = arith.constant 0 : index
      %46 = vector.load %arg9[%c0_20, %c0_21] : memref<128x1xf32, #tpu.memory_space<vmem>>, vector<128x1xf32>
      %47 = arith.mulf %42, %46 : vector<128x1xf32>
      %cst_22 = arith.constant dense<0.000000e+00> : vector<128xf32>
      %48 = vector.multi_reduction <add>, %45, %cst_22 [1] : vector<128x128xf32> to vector<128xf32>
      %49 = vector.shape_cast %48 : vector<128xf32> to vector<128x1xf32>
      %50 = arith.addf %47, %49 : vector<128x1xf32>
      %c0_23 = arith.constant 0 : index
      %c0_24 = arith.constant 0 : index
      %51 = vector.load %arg9[%c0_23, %c0_24] : memref<128x1xf32, #tpu.memory_space<vmem>>, vector<128x1xf32>
      tpu.vector_store %arg9[%c0_23, %c0_24], %50 {strides = array<i32>} : memref<128x1xf32, #tpu.memory_space<vmem>>, vector<128x1xf32>,
      %c0_25 = arith.constant 0 : index
      %c0_26 = arith.constant 0 : index
      %52 = vector.load %arg10[%c0_25, %c0_26] : memref<128x128xf32, #tpu.memory_space<vmem>>, vector<128x128xf32>
      %53 = vector.broadcast %42 : vector<128x1xf32> to vector<128x128xf32>
      %54 = arith.mulf %53, %52 : vector<128x128xf32>
      %cst_27 = arith.constant dense<0.000000e+00> : vector<128x128xf32>
      %55 = tpu.matmul %45, %22, %cst_27 {dimension_numbers = #tpu.dot_dimension_numbers<[1], [0], [0], [1], [0, 0, 1, 1], [], []>} : vector<128x128xf32>, vector<128x128xf32>, vector<128x128xf32> -> vector<128x128xf32>
      %56 = arith.addf %54, %55 : vector<128x128xf32>
      %c0_28 = arith.constant 0 : index
      %c0_29 = arith.constant 0 : index
      %57 = vector.load %arg10[%c0_28, %c0_29] : memref<128x128xf32, #tpu.memory_space<vmem>>, vector<128x128xf32>
      tpu.vector_store %arg10[%c0_28, %c0_29], %56 {strides = array<i32>} : memref<128x128xf32, #tpu.memory_space<vmem>>, vector<128x128xf32>,
      %c0_30 = arith.constant 0 : index
      %c0_31 = arith.constant 0 : index
      %58 = vector.load %arg8[%c0_30, %c0_31] : memref<128x1xf32, #tpu.memory_space<vmem>>, vector<128x1xf32>
      tpu.vector_store %arg8[%c0_30, %c0_31], %40 {strides = array<i32>} : memref<128x1xf32, #tpu.memory_space<vmem>>, vector<128x1xf32>,
    } else {
    }
    %c1_i32 = arith.constant 1 : i32
    %9 = arith.cmpi eq, %arg1, %c1_i32 : i32
    %10 = arith.extui %9 : i1 to i32
    %c0_i32_3 = arith.constant 0 : i32
    %11 = arith.cmpi ne, %10, %c0_i32_3 : i32
    scf.if %11 {
      %c0 = arith.constant 0 : index
      %c0_4 = arith.constant 0 : index
      %12 = vector.load %arg10[%c0, %c0_4] : memref<128x128xf32, #tpu.memory_space<vmem>>, vector<128x128xf32>
      %c0_5 = arith.constant 0 : index
      %c0_6 = arith.constant 0 : index
      %13 = vector.load %arg9[%c0_5, %c0_6] : memref<128x1xf32, #tpu.memory_space<vmem>>, vector<128x1xf32>
      %14 = vector.broadcast %13 : vector<128x1xf32> to vector<128x128xf32>
      %15 = arith.divf %12, %14 : vector<128x128xf32>
      %c0_7 = arith.constant 0 : index
      %c0_8 = arith.constant 0 : index
      %16 = vector.load %arg6[%c0_7, %c0_8] : memref<128x128xf32, #tpu.memory_space<vmem>>, vector<128x128xf32>
      tpu.vector_store %arg6[%c0_7, %c0_8], %15 {strides = array<i32>} : memref<128x128xf32, #tpu.memory_space<vmem>>, vector<128x128xf32>,
    } else {
    }
    return
  }
  func.func @transform_0(%arg0: i32, %arg1: i32) -> (i32, i32) {
    %c0_i32 = arith.constant 0 : i32
    %c0_i32_0 = arith.constant 0 : i32
    return %arg0, %c0_i32 : i32, i32
  }
  func.func @transform_1(%arg0: i32, %arg1: i32) -> (i32, i32) {
    %0 = arith.minsi %arg1, %arg0 : i32
    %c0_i32 = arith.constant 0 : i32
    %c0_i32_0 = arith.constant 0 : i32
    return %0, %c0_i32 : i32, i32
  }
  func.func @transform_2(%arg0: i32, %arg1: i32) -> (i32, i32) {
    %c0_i32 = arith.constant 0 : i32
    %c0_i32_0 = arith.constant 0 : i32
    %c0_i32_1 = arith.constant 0 : i32
    return %c0_i32, %c0_i32_0 : i32, i32
  }
  func.func @transform_3(%arg0: i32, %arg1: i32) -> (i32, i32) {
    %c0_i32 = arith.constant 0 : i32
    %c0_i32_0 = arith.constant 0 : i32
    %c0_i32_1 = arith.constant 0 : i32
    return %c0_i32, %c0_i32_0 : i32, i32
  }
  func.func @transform_4(%arg0: i32, %arg1: i32) -> (i32, i32) {
    %c0_i32 = arith.constant 0 : i32
    %c0_i32_0 = arith.constant 0 : i32
    return %arg0, %c0_i32 : i32, i32
  }
}

</mosaic_0001>

<llo_original>
// kernel: tpu_custom_call.1
$region0: #{tpu_custom_call.1}
  #allocation0 [shape = 'u32[]', space=smem, size = 0x4, offset = 0x4, fixed_abs, tag = 'smem constant byte address 0x4 - core index']
  #allocation1 [shape = 'u32[144,128]{1,0:T(1,128)}', space=vmem, size = 0x12000, scoped, tag = 'internal scratch']
  #allocation2 [shape = 'f32[128,128]{1,0:T(8,128)}', space=vmem, size = 0x10000, scoped, tag = 'scratch operand']
  #allocation3 [shape = 'f32[128,1]{1,0:T(8,128)}', space=vmem, size = 0x10000, scoped, tag = 'scratch operand']
  #allocation4 [shape = 'f32[128,1]{1,0:T(8,128)}', space=vmem, size = 0x10000, scoped, tag = 'scratch operand']
  #allocation5 [shape = 'f32[128,128]{1,0:T(8,128)}', space=vmem, size = 0x10000, scoped, tag = 'scratch operand']
  %s0 = inlined_call_operand.hbm [shape: f32[256,128], index: 0, kind: input, shape index: {}]
  %s1 = inlined_call_operand.hbm [shape: f32[256,128], index: 1, kind: input, shape index: {}]
  %s2 = inlined_call_operand.hbm [shape: f32[128,384], index: 2, kind: input, shape index: {}]
  %s3 = inlined_call_operand.vmem [shape: f32[1,384], index: 3, kind: input, shape index: {}]
  %s4 = inlined_call_operand.hbm [shape: f32[256,128], index: 4, kind: output, shape index: {}]
  %s5 = sld [smem:[#allocation0]]
  $region77: #{tpu_custom_call.1} parent=0
    _
  %s7 = ssub.s32 1, %s5
  %s8 = scalar_select 0, %s7, %s5
  $region1: #{tpu_custom_call.1} parent=0
    #allocation6 [shape = 'u8[131072]{0}', space=vmem, size = 0x20000, scoped, tag = 'input window, operand 0']
    #allocation7 [shape = 's32[2]{0}', space=sflag, size = 0x8, scoped, tag = 'scoped memory for tpu_custom_call.1']
    #allocation8 [shape = 's32[2]{0}', space=sflag, size = 0x8, scoped, tag = 'scoped memory for tpu_custom_call.1']
    #allocation9 [shape = 'u8[131072]{0}', space=vmem, size = 0x20000, scoped, tag = 'input window, operand 1']
    #allocation10 [shape = 's32[2]{0}', space=sflag, size = 0x8, scoped, tag = 'scoped memory for tpu_custom_call.1']
    #allocation11 [shape = 'u8[196608]{0}', space=vmem, size = 0x30000, scoped, tag = 'input window, operand 2, single buffered']
    #allocation12 [shape = 'u8[131072]{0}', space=vmem, size = 0x20000, scoped, tag = 'output window, operand 0']
    %9 = vsyncpa [#allocation7], 0
    %s10 = scalar_lea.sflag [#allocation7], 1
    %11 = vsyncpa %s10, 0
    %12 = vsyncpa [#allocation10], 0
    %s13 = scalar_lea.sflag [#allocation10], 1
    %14 = vsyncpa %s13, 0
    %15 = vsyncpa [#allocation8], 0
    %s16 = scalar_lea.sflag [#allocation8], 1
    %17 = vsyncpa %s16, 0
    loop: start=0, step=1, limit=6
    $region2: #{tpu_custom_call.1} parent=1 // loop_pre_header
      _
    $region3: #{tpu_custom_call.1} parent=1 // loop_header
      %s19 = sphi 0, %s23
      %p20 = scmp.ge.s32.totalorder %s19, 6
      %s26 = sphi 0, %s38
      %s27 = sphi 0, %s34
      %s28 = sphi 0, %s26
      %s29 = sphi 0, %s27
      %s30 = sphi 0, %s28
      %s31 = sphi 0, %s29
      %s41 = sphi 0, %s43
      %s44 = sphi 0, %s41
      %s45 = sphi 0, %s44
      %s61 = sphi 0, %s45
      %s71 = sphi 0, %s73
      %s74 = sphi 0, %s71
      %s75 = sphi 0, %s74
      %s91 = sphi 0, %s75
      %s95 = sphi 0, %s95
      %s97 = sphi 0, %s95
      %s98 = sphi 0, %s97
      %s112 = sphi 0, %s98
      %s116 = sphi 0, %s116
      %s118 = sphi 0, %s116
      %s119 = sphi 0, %s118
      %s133 = sphi 0, %s119
      %s139 = sphi 0, %s141
      %s142 = sphi 0, %s139
      %s143 = sphi 0, %s142
      %s159 = sphi 0, %s143
    $region4: #{tpu_custom_call.1} parent=1 // loop_header_branch
      %22 = sbr.rel (%p20) target = $region8
    $region5: #{tpu_custom_call.1} parent=1 // loop_body
      %s24 = ssub.s32 %s19, 1
      %s25 = ssub.s32 %s19, 2
      %s32 = sadd.s32 1, %s27
      %p33 = scmp.ge.s32.totalorder %s32, 2
      %s34 = scalar_select %p33, 0, %s32
      %s35 = sadd.s32 1, %s26
      %s36 = scalar_select %p33, %s35, %s26
      %p37 = scmp.ge.s32.totalorder %s36, 2
      %s38 = scalar_select %p37, 0, %s36
      %s39 = ssub.s32 %s26, %s38
      %p40 = scmp.eq.s32.totalorder %s39, 0
      %s42 = sadd.s32 %s41, 1
      %s43 = scalar_select %p40, %s41, %s42
      %p46 = pneg %p40
      %p47 = scmp.eq.s32.totalorder %s19, 3
      %p48 = por %p46, %p47
      %p49 = scmp.ne.s32.totalorder %s41, %s44
      %p50 = scmp.eq.s32.totalorder %s19, 0
      %p51 = por %p49, %p50
      %p52 = scmp.ne.s32.totalorder %s41, %s44
      %p53 = scmp.eq.s32.totalorder %s24, 3
      %p54 = por %p52, %p53
      %p55 = scmp.ne.s32.totalorder %s44, %s45
      %p56 = scmp.eq.s32.totalorder %s24, 0
      %p57 = por %p55, %p56
      %p58 = scmp.ne.s32.totalorder %s44, %s45
      %p59 = scmp.eq.s32.totalorder %s25, 3
      %p60 = por %p58, %p59
      %p62 = scmp.ne.s32.totalorder %s45, %s61
      %p63 = scmp.eq.s32.totalorder %s25, 0
      %p64 = por %p62, %p63
      %p65 = scmp.lt.s32.totalorder %s27, %s26
      %s66 = scalar_select %p65, %s27, %s26
      %p67 = scmp.lt.s32.totalorder %s34, %s38
      %s68 = scalar_select %p67, %s34, %s38
      %s69 = ssub.s32 %s66, %s68
      %p70 = scmp.eq.s32.totalorder %s69, 0
      %s72 = sadd.s32 %s71, 1
      %s73 = scalar_select %p70, %s71, %s72
      %p76 = pneg %p70
      %p77 = scmp.eq.s32.totalorder %s19, 3
      %p78 = por %p76, %p77
      %p79 = scmp.ne.s32.totalorder %s71, %s74
      %p80 = scmp.eq.s32.totalorder %s19, 0
      %p81 = por %p79, %p80
      %p82 = scmp.ne.s32.totalorder %s71, %s74
      %p83 = scmp.eq.s32.totalorder %s24, 3
      %p84 = por %p82, %p83
      %p85 = scmp.ne.s32.totalorder %s74, %s75
      %p86 = scmp.eq.s32.totalorder %s24, 0
      %p87 = por %p85, %p86
      %p88 = scmp.ne.s32.totalorder %s74, %s75
      %p89 = scmp.eq.s32.totalorder %s25, 3
      %p90 = por %p88, %p89
      %p92 = scmp.ne.s32.totalorder %s75, %s91
      %p93 = scmp.eq.s32.totalorder %s25, 0
      %p94 = por %p92, %p93
      %s96 = sadd.s32 %s95, 1
      %p99 = scmp.eq.s32.totalorder %s19, 3
      %p100 = scmp.ne.s32.totalorder %s95, %s97
      %p101 = scmp.eq.s32.totalorder %s19, 0
      %p102 = por %p100, %p101
      %p103 = scmp.ne.s32.totalorder %s95, %s97
      %p104 = scmp.eq.s32.totalorder %s24, 3
      %p105 = por %p103, %p104
      %p106 = scmp.ne.s32.totalorder %s97, %s98
      %p107 = scmp.eq.s32.totalorder %s24, 0
      %p108 = por %p106, %p107
      %p109 = scmp.ne.s32.totalorder %s97, %s98
      %p110 = scmp.eq.s32.totalorder %s25, 3
      %p111 = por %p109, %p110
      %p113 = scmp.ne.s32.totalorder %s98, %s112
      %p114 = scmp.eq.s32.totalorder %s25, 0
      %p115 = por %p113, %p114
      %s117 = sadd.s32 %s116, 1
      %p120 = scmp.eq.s32.totalorder %s19, 3
      %p121 = scmp.ne.s32.totalorder %s116, %s118
      %p122 = scmp.eq.s32.totalorder %s19, 0
      %p123 = por %p121, %p122
      %p124 = scmp.ne.s32.totalorder %s116, %s118
      %p125 = scmp.eq.s32.totalorder %s24, 3
      %p126 = por %p124, %p125
      %p127 = scmp.ne.s32.totalorder %s118, %s119
      %p128 = scmp.eq.s32.totalorder %s24, 0
      %p129 = por %p127, %p128
      %p130 = scmp.ne.s32.totalorder %s118, %s119
      %p131 = scmp.eq.s32.totalorder %s25, 3
      %p132 = por %p130, %p131
      %p134 = scmp.ne.s32.totalorder %s119, %s133
      %p135 = scmp.eq.s32.totalorder %s25, 0
      %p136 = por %p134, %p135
      %s137 = ssub.s32 %s26, %s38
      %p138 = scmp.eq.s32.totalorder %s137, 0
      %s140 = sadd.s32 %s139, 1
      %s141 = scalar_select %p138, %s139, %s140
      %p144 = pneg %p138
      %p145 = scmp.eq.s32.totalorder %s19, 3
      %p146 = por %p144, %p145
      %p147 = scmp.ne.s32.totalorder %s139, %s142
      %p148 = scmp.eq.s32.totalorder %s19, 0
      %p149 = por %p147, %p148
      %p150 = scmp.ne.s32.totalorder %s139, %s142
      %p151 = scmp.eq.s32.totalorder %s24, 3
      %p152 = por %p150, %p151
      %p153 = scmp.ne.s32.totalorder %s142, %s143
      %p154 = scmp.eq.s32.totalorder %s24, 0
      %p155 = por %p153, %p154
      %p156 = scmp.ne.s32.totalorder %s142, %s143
      %p157 = scmp.eq.s32.totalorder %s25, 3
      %p158 = por %p156, %p157
      %p160 = scmp.ne.s32.totalorder %s143, %s159
      %p161 = scmp.eq.s32.totalorder %s25, 0
      %p162 = por %p160, %p161
      %p163 = scmp.le.s32.totalorder 1, %s19
      %p164 = scmp.lt.s32.totalorder %s19, 5
      %p165 = pnand %p163, %p164
      %p166 = pneg %p165
      // Predicated region
      $region9: #{tpu_custom_call.1} parent=5 // pred_check
        _
      $region10: #{tpu_custom_call.1} parent=5 // pred_check_branch
        %168 = sbr.rel (%p165) target = $region12
      $region11: #{tpu_custom_call.1} parent=5 // pred_region
        %s169 = ssub.s32 %s19, 1
        // Predicated region
        $region13: #{tpu_custom_call.1} parent=11 // pred_check
          %p170 = pneg %p108
        $region14: #{tpu_custom_call.1} parent=11 // pred_check_branch
          %172 = sbr.rel (%p170) target = $region16
        $region15: #{tpu_custom_call.1} parent=11 // pred_region
          %s174 = ssub.s32 6144, 6144
          %175 = vsyncadd [#allocation10], %s174
          %s176 = sshll.u32 [#allocation11], 4
          %s177 = int_to_ptr.vmem [resolvable:$true] %s176
          %182 = dma.hbm_to_vmem [thread:$0]  %s2, 6144, %s177, [#allocation10], 384, 384, 24
        $region16: #{tpu_custom_call.1} parent=11 // pred_fallthru
          _
        // Predicated region
        $region17: #{tpu_custom_call.1} parent=11 // pred_check
          %p183 = pneg %p129
        $region18: #{tpu_custom_call.1} parent=11 // pred_check_branch
          %185 = sbr.rel (%p183) target = $region20
        $region19: #{tpu_custom_call.1} parent=11 // pred_region
          _
        $region20: #{tpu_custom_call.1} parent=11 // pred_fallthru
          _
      $region12: #{tpu_custom_call.1} parent=5 // pred_fallthru
        _
      %p186 = scmp.lt.s32.totalorder %s19, 4
      // Predicated region
      $region21: #{tpu_custom_call.1} parent=5 // pred_check
        %p187 = pneg %p186
      $region22: #{tpu_custom_call.1} parent=5 // pred_check_branch
        %189 = sbr.rel (%p187) target = $region24
      $region23: #{tpu_custom_call.1} parent=5 // pred_region
        // Predicated region
        $region25: #{tpu_custom_call.1} parent=23 // pred_check
          %p190 = pneg %p51
        $region26: #{tpu_custom_call.1} parent=23 // pred_check_branch
          %192 = sbr.rel (%p190) target = $region28
        $region27: #{tpu_custom_call.1} parent=23 // pred_region
          %s193 = sand.u32 %s41, 1
          %s194 = scalar_lea.sflag [#allocation7], %s193
          %s195 = sand.u32 %s41, 1
          %s196 = smul.addr %s195, 128
          %s197 = scalar_lea.vmem [#allocation6], %s196
          %s198 = smul.u32 16, %s26
          %s200 = ssub.s32 2048, 2048
          %201 = vsyncadd %s194, %s200
          %s202 = smul.addr %s198, 128
          %s203 = scalar_lea.hbm %s0, %s202
          %s204 = sshll.u32 %s197, 4
          %s205 = int_to_ptr.vmem [resolvable:$true] %s204
          %210 = dma.hbm_to_vmem [thread:$0]  %s203, 2048, %s205, %s194, 128, 128, 8
        $region28: #{tpu_custom_call.1} parent=23 // pred_fallthru
          _
        // Predicated region
        $region29: #{tpu_custom_call.1} parent=23 // pred_check
          %p211 = pneg %p81
        $region30: #{tpu_custom_call.1} parent=23 // pred_check_branch
          %213 = sbr.rel (%p211) target = $region32
        $region31: #{tpu_custom_call.1} parent=23 // pred_region
          %s214 = sand.u32 %s19, 1
          %s215 = scalar_lea.sflag [#allocation10], %s214
          %s216 = sand.u32 %s71, 1
          %s217 = smul.addr %s216, 128
          %s218 = scalar_lea.vmem [#allocation9], %s217
          %p219 = scmp.lt.s32.totalorder %s27, %s26
          %s220 = scalar_select %p219, %s27, %s26
          %s221 = smul.u32 16, %s220
          %s223 = ssub.s32 2048, 2048
          %224 = vsyncadd %s215, %s223
          %s225 = smul.addr %s221, 128
          %s226 = scalar_lea.hbm %s1, %s225
          %s227 = sshll.u32 %s218, 4
          %s228 = int_to_ptr.vmem [resolvable:$true] %s227
          %233 = dma.hbm_to_vmem [thread:$0]  %s226, 2048, %s228, %s215, 128, 128, 8
        $region32: #{tpu_custom_call.1} parent=23 // pred_fallthru
          _
      $region24: #{tpu_custom_call.1} parent=5 // pred_fallthru
        _
      %p234 = scmp.le.s32.totalorder 1, %s19
      %p235 = scmp.lt.s32.totalorder %s19, 5
      %p236 = pnand %p234, %p235
      %p237 = pneg %p236
      // Predicated region
      $region33: #{tpu_custom_call.1} parent=5 // pred_check
        _
      $region34: #{tpu_custom_call.1} parent=5 // pred_check_branch
        %239 = sbr.rel (%p236) target = $region36
      $region35: #{tpu_custom_call.1} parent=5 // pred_region
        %s240 = ssub.s32 %s19, 1
        %s241 = sand.u32 %s44, 1
        %s242 = scalar_lea.sflag [#allocation7], %s241
        %s243 = sand.u32 %s44, 1
        %s244 = smul.addr %s243, 128
        %s245 = scalar_lea.vmem [#allocation6], %s244
        // Predicated region
        $region37: #{tpu_custom_call.1} parent=35 // pred_check
          %p246 = pneg %p57
        $region38: #{tpu_custom_call.1} parent=35 // pred_check_branch
          %248 = sbr.rel (%p246) target = $region40
        $region39: #{tpu_custom_call.1} parent=35 // pred_region
          %249 = dma.done %s242, 2048
        $region40: #{tpu_custom_call.1} parent=35 // pred_fallthru
          _
        %s250 = sand.u32 %s24, 1
        %s251 = scalar_lea.sflag [#allocation10], %s250
        %s252 = sand.u32 %s74, 1
        %s253 = smul.addr %s252, 128
        %s254 = scalar_lea.vmem [#allocation9], %s253
        // Predicated region
        $region41: #{tpu_custom_call.1} parent=35 // pred_check
          %p255 = pneg %p87
        $region42: #{tpu_custom_call.1} parent=35 // pred_check_branch
          %257 = sbr.rel (%p255) target = $region44
        $region43: #{tpu_custom_call.1} parent=35 // pred_region
          %258 = dma.done %s251, 2048
        $region44: #{tpu_custom_call.1} parent=35 // pred_fallthru
          _
        // Predicated region
        $region45: #{tpu_custom_call.1} parent=35 // pred_check
          %p259 = pneg %p108
        $region46: #{tpu_custom_call.1} parent=35 // pred_check_branch
          %261 = sbr.rel (%p259) target = $region48
        $region47: #{tpu_custom_call.1} parent=35 // pred_region
          %262 = dma.done [#allocation10], 6144
        $region48: #{tpu_custom_call.1} parent=35 // pred_fallthru
          _
        %s263 = sand.u32 %s44, 1
        %s264 = scalar_lea.sflag [#allocation7], %s263
        %s265 = sand.u32 %s44, 1
        %s266 = smul.addr %s265, 128
        %s267 = scalar_lea.vmem [#allocation6], %s266
        %p268 = pneg %p57
        %p269 = pneg %p54
        %s270 = sand.u32 %s24, 1
        %s271 = scalar_lea.sflag [#allocation10], %s270
        %s272 = sand.u32 %s74, 1
        %s273 = smul.addr %s272, 128
        %s274 = scalar_lea.vmem [#allocation9], %s273
        %p275 = pneg %p87
        %p276 = pneg %p84
        %p277 = pneg %p108
        %p278 = pneg %p105
        %p279 = pneg %p129
        %p280 = pneg %p126
        %p281 = pneg %p155
        %p282 = pneg %p152
        %s283 = sand.u32 %s142, 1
        %s284 = scalar_lea.sflag [#allocation8], %s283
        %s285 = sand.u32 %s142, 1
        %s286 = smul.addr %s285, 128
        %s287 = scalar_lea.vmem [#allocation12], %s286
        %s288 = smul.u32 16, %s28
        %p289 = scmp.lt.s32.totalorder %s29, %s28
        %s290 = scalar_select %p289, %s29, %s28
        %s291 = smul.u32 16, %s290
        %s292 = smul.u32 16, %s28
        %p293 = scmp.eq.s32.totalorder %s29, 0
        // Predicated region
        $region49: #{tpu_custom_call.1} parent=35 // pred_check
          %p294 = pneg %p293
        $region50: #{tpu_custom_call.1} parent=35 // pred_check_branch
          %296 = sbr.rel (%p294) target = $region52
        $region51: #{tpu_custom_call.1} parent=35 // pred_region
          %v297 = vld [vmem:[%s245] sm:$0xff]
          %v298 = vld [vmem:[%s245 + $0x8] sm:$0xff]
          %v299 = vld [vmem:[%s245 + $0x10] sm:$0xff]
          %v300 = vld [vmem:[%s245 + $0x18] sm:$0xff]
          %v301 = vld [vmem:[%s245 + $0x20] sm:$0xff]
          %v302 = vld [vmem:[%s245 + $0x28] sm:$0xff]
          %v303 = vld [vmem:[%s245 + $0x30] sm:$0xff]
          %v304 = vld [vmem:[%s245 + $0x38] sm:$0xff]
          %v305 = vld [vmem:[%s245 + $0x40] sm:$0xff]
          %v306 = vld [vmem:[%s245 + $0x48] sm:$0xff]
          %v307 = vld [vmem:[%s245 + $0x50] sm:$0xff]
          %v308 = vld [vmem:[%s245 + $0x58] sm:$0xff]
          %v309 = vld [vmem:[%s245 + $0x60] sm:$0xff]
          %v310 = vld [vmem:[%s245 + $0x68] sm:$0xff]
          %v311 = vld [vmem:[%s245 + $0x70] sm:$0xff]
          %v312 = vld [vmem:[%s245 + $0x78] sm:$0xff]
          %v313 = vld [vmem:[#allocation11] sm:$0xff]
          %v314 = vld [vmem:[#allocation11 + $0x18] sm:$0xff]
          %v315 = vld [vmem:[#allocation11 + $0x30] sm:$0xff]
          %v316 = vld [vmem:[#allocation11 + $0x48] sm:$0xff]
          %v317 = vld [vmem:[#allocation11 + $0x60] sm:$0xff]
          %v318 = vld [vmem:[#allocation11 + $0x78] sm:$0xff]
          %v319 = vld [vmem:[#allocation11 + $0x90] sm:$0xff]
          %v320 = vld [vmem:[#allocation11 + $0xa8] sm:$0xff]
          %v321 = vld [vmem:[#allocation11 + $0xc0] sm:$0xff]
          %v322 = vld [vmem:[#allocation11 + $0xd8] sm:$0xff]
          %v323 = vld [vmem:[#allocation11 + $0xf0] sm:$0xff]
          %v324 = vld [vmem:[#allocation11 + $0x108] sm:$0xff]
          %v325 = vld [vmem:[#allocation11 + $0x120] sm:$0xff]
          %v326 = vld [vmem:[#allocation11 + $0x138] sm:$0xff]
          %v327 = vld [vmem:[#allocation11 + $0x150] sm:$0xff]
          %v328 = vld [vmem:[#allocation11 + $0x168] sm:$0xff]
          %v329 = vld [vmem:[%s3] sm:$0x1]
          %v331 = vlaneseq
          %v332 = vshrl.u32 %v331, 7
          %v333 = vsub.s32 0, %v332
          %v334 = vrot.slane %v329, %v333
          %336 = vmatprep.subr.mxu0 0.0
          %337 = vmatpush1.msra.mxu0 %v313
          %338 = vmatprep.subr.mxu0 0.0
          %339 = vmatpush1.msra.mxu0 %v314
          %340 = vmatprep.subr.mxu0 0.0
          %341 = vmatpush1.msra.mxu0 %v315
          %342 = vmatprep.subr.mxu0 0.0
          %343 = vmatpush1.msra.mxu0 %v316
          %344 = vmatprep.subr.mxu0 0.0
          %345 = vmatpush1.msra.mxu0 %v317
          %346 = vmatprep.subr.mxu0 0.0
          %347 = vmatpush1.msra.mxu0 %v318
          %348 = vmatprep.subr.mxu0 0.0
          %349 = vmatpush1.msra.mxu0 %v319
          %350 = vmatprep.subr.mxu0 0.0
          %351 = vmatpush1.msra.mxu0 %v320
          %352 = vmatprep.subr.mxu0 0.0
          %353 = vmatpush1.msra.mxu0 %v321
          %354 = vmatprep.subr.mxu0 0.0
          %355 = vmatpush1.msra.mxu0 %v322
          %356 = vmatprep.subr.mxu0 0.0
          %357 = vmatpush1.msra.mxu0 %v323
          %358 = vmatprep.subr.mxu0 0.0
          %359 = vmatpush1.msra.mxu0 %v324
          %360 = vmatprep.subr.mxu0 0.0
          %361 = vmatpush1.msra.mxu0 %v325
          %362 = vmatprep.subr.mxu0 0.0
          %363 = vmatpush1.msra.mxu0 %v326
          %364 = vmatprep.subr.mxu0 0.0
          %365 = vmatpush1.msra.mxu0 %v327
          %366 = vmatprep.subr.mxu0 0.0
          %367 = vmatpush1.msra.mxu0 %v328
          %368 = vmatprep.subr.mxu0 0.0
          %369 = vmatpush1.msra.mxu0 0.0
          %370 = vmatprep.subr.mxu0 0.0
          %371 = vmatpush1.msra.mxu0 0.0
          %372 = vmatprep.subr.mxu0 0.0
          %373 = vmatpush1.msra.mxu0 0.0
          %374 = vmatprep.subr.mxu0 0.0
          %375 = vmatpush1.msra.mxu0 0.0
          %376 = vmatprep.subr.mxu0 0.0
          %377 = vmatpush1.msra.mxu0 0.0
          %378 = vmatprep.subr.mxu0 0.0
          %379 = vmatpush1.msra.mxu0 0.0
          %380 = vmatprep.subr.mxu0 0.0
          %381 = vmatpush1.msra.mxu0 0.0
          %382 = vmatprep.subr.mxu0 0.0
          %383 = vmatpush1.msra.mxu0 0.0
          %384 = vmatprep.subr.mxu0 0.0
          %385 = vmatpush1.msra.mxu0 0.0
          %386 = vmatprep.subr.mxu0 0.0
          %387 = vmatpush1.msra.mxu0 0.0
          %388 = vmatprep.subr.mxu0 0.0
          %389 = vmatpush1.msra.mxu0 0.0
          %390 = vmatprep.subr.mxu0 0.0
          %391 = vmatpush1.msra.mxu0 0.0
          %392 = vmatprep.subr.mxu0 0.0
          %393 = vmatpush1.msra.mxu0 0.0
          %394 = vmatprep.subr.mxu0 0.0
          %395 = vmatpush1.msra.mxu0 0.0
          %396 = vmatprep.subr.mxu0 0.0
          %397 = vmatpush1.msra.mxu0 0.0
          %398 = vmatprep.subr.mxu0 0.0
          %399 = vmatpush1.msra.mxu0 0.0
          %400 = vmatprep.mubr.f32.mxu0 0.0
          %401 = vmatmul.mubr.f32.gmra.mrb[0].mxu0 %v297
          %v402 = vpop.f32.mrb[0].mxu0
          %v403 = vadd.f32 %v334, %v402
          %v404 = vpop.f32.mrb[0].mxu0
          %405 = vmatprep.mubr.f32.mxu0 0.0
          %406 = vmatmul.mubr.f32.gmra.mrb[0].mxu0 %v298
          %v407 = vpop.f32.mrb[0].mxu0
          %v408 = vadd.f32 %v334, %v407
          %v409 = vpop.f32.mrb[0].mxu0
          %410 = vmatprep.mubr.f32.mxu0 0.0
          %411 = vmatmul.mubr.f32.gmra.mrb[0].mxu0 %v299
          %v412 = vpop.f32.mrb[0].mxu0
          %v413 = vadd.f32 %v334, %v412
          %v414 = vpop.f32.mrb[0].mxu0
          %415 = vmatprep.mubr.f32.mxu0 0.0
          %416 = vmatmul.mubr.f32.gmra.mrb[0].mxu0 %v300
          %v417 = vpop.f32.mrb[0].mxu0
          %v418 = vadd.f32 %v334, %v417
          %v419 = vpop.f32.mrb[0].mxu0
          %420 = vmatprep.mubr.f32.mxu0 0.0
          %421 = vmatmul.mubr.f32.gmra.mrb[0].mxu0 %v301
          %v422 = vpop.f32.mrb[0].mxu0
          %v423 = vadd.f32 %v334, %v422
          %v424 = vpop.f32.mrb[0].mxu0
          %425 = vmatprep.mubr.f32.mxu0 0.0
          %426 = vmatmul.mubr.f32.gmra.mrb[0].mxu0 %v302
          %v427 = vpop.f32.mrb[0].mxu0
          %v428 = vadd.f32 %v334, %v427
          %v429 = vpop.f32.mrb[0].mxu0
          %430 = vmatprep.mubr.f32.mxu0 0.0
          %431 = vmatmul.mubr.f32.gmra.mrb[0].mxu0 %v303
          %v432 = vpop.f32.mrb[0].mxu0
          %v433 = vadd.f32 %v334, %v432
          %v434 = vpop.f32.mrb[0].mxu0
          %435 = vmatprep.mubr.f32.mxu0 0.0
          %436 = vmatmul.mubr.f32.gmra.mrb[0].mxu0 %v304
          %v437 = vpop.f32.mrb[0].mxu0
          %v438 = vadd.f32 %v334, %v437
          %v439 = vpop.f32.mrb[0].mxu0
          %440 = vmatprep.mubr.f32.mxu0 0.0
          %441 = vmatmul.mubr.f32.gmra.mrb[0].mxu0 %v305
          %v442 = vpop.f32.mrb[0].mxu0
          %v443 = vadd.f32 %v334, %v442
          %v444 = vpop.f32.mrb[0].mxu0
          %445 = vmatprep.mubr.f32.mxu0 0.0
          %446 = vmatmul.mubr.f32.gmra.mrb[0].mxu0 %v306
          %v447 = vpop.f32.mrb[0].mxu0
          %v448 = vadd.f32 %v334, %v447
          %v449 = vpop.f32.mrb[0].mxu0
          %450 = vmatprep.mubr.f32.mxu0 0.0
          %451 = vmatmul.mubr.f32.gmra.mrb[0].mxu0 %v307
          %v452 = vpop.f32.mrb[0].mxu0
          %v453 = vadd.f32 %v334, %v452
          %v454 = vpop.f32.mrb[0].mxu0
          %455 = vmatprep.mubr.f32.mxu0 0.0
          %456 = vmatmul.mubr.f32.gmra.mrb[0].mxu0 %v308
          %v457 = vpop.f32.mrb[0].mxu0
          %v458 = vadd.f32 %v334, %v457
          %v459 = vpop.f32.mrb[0].mxu0
          %460 = vmatprep.mubr.f32.mxu0 0.0
          %461 = vmatmul.mubr.f32.gmra.mrb[0].mxu0 %v309
          %v462 = vpop.f32.mrb[0].mxu0
          %v463 = vadd.f32 %v334, %v462
          %v464 = vpop.f32.mrb[0].mxu0
          %465 = vmatprep.mubr.f32.mxu0 0.0
          %466 = vmatmul.mubr.f32.gmra.mrb[0].mxu0 %v310
          %v467 = vpop.f32.mrb[0].mxu0
          %v468 = vadd.f32 %v334, %v467
          %v469 = vpop.f32.mrb[0].mxu0
          %470 = vmatprep.mubr.f32.mxu0 0.0
          %471 = vmatmul.mubr.f32.gmra.mrb[0].mxu0 %v311
          %v472 = vpop.f32.mrb[0].mxu0
          %v473 = vadd.f32 %v334, %v472
          %v474 = vpop.f32.mrb[0].mxu0
          %475 = vmatprep.mubr.f32.mxu0 0.0
          %476 = vmatmul.mubr.f32.gmra.mrb[0].mxu0 %v312
          %v477 = vpop.f32.mrb[0].mxu0
          %v478 = vadd.f32 %v334, %v477
          %v479 = vpop.f32.mrb[0].mxu0
          %480 = vdwg.mxu0
          %v481 = vmul.f32 %v403, 0.57735026
          %v482 = vmul.f32 %v408, 0.57735026
          %v483 = vmul.f32 %v413, 0.57735026
          %v484 = vmul.f32 %v418, 0.57735026
          %v485 = vmul.f32 %v423, 0.57735026
          %v486 = vmul.f32 %v428, 0.57735026
          %v487 = vmul.f32 %v433, 0.57735026
          %v488 = vmul.f32 %v438, 0.57735026
          %v489 = vmul.f32 %v443, 0.57735026
          %v490 = vmul.f32 %v448, 0.57735026
          %v491 = vmul.f32 %v453, 0.57735026
          %v492 = vmul.f32 %v458, 0.57735026
          %v493 = vmul.f32 %v463, 0.57735026
          %v494 = vmul.f32 %v468, 0.57735026
          %v495 = vmul.f32 %v473, 0.57735026
          %v496 = vmul.f32 %v478, 0.57735026
          %497 = vst [vmem:[#allocation2] sm:$0xff] %v481
          %498 = vst [vmem:[#allocation2 + $0x8] sm:$0xff] %v482
          %499 = vst [vmem:[#allocation2 + $0x10] sm:$0xff] %v483
          %500 = vst [vmem:[#allocation2 + $0x18] sm:$0xff] %v484
          %501 = vst [vmem:[#allocation2 + $0x20] sm:$0xff] %v485
          %502 = vst [vmem:[#allocation2 + $0x28] sm:$0xff] %v486
          %503 = vst [vmem:[#allocation2 + $0x30] sm:$0xff] %v487
          %504 = vst [vmem:[#allocation2 + $0x38] sm:$0xff] %v488
          %505 = vst [vmem:[#allocation2 + $0x40] sm:$0xff] %v489
          %506 = vst [vmem:[#allocation2 + $0x48] sm:$0xff] %v490
          %507 = vst [vmem:[#allocation2 + $0x50] sm:$0xff] %v491
          %508 = vst [vmem:[#allocation2 + $0x58] sm:$0xff] %v492
          %509 = vst [vmem:[#allocation2 + $0x60] sm:$0xff] %v493
          %510 = vst [vmem:[#allocation2 + $0x68] sm:$0xff] %v494
          %511 = vst [vmem:[#allocation2 + $0x70] sm:$0xff] %v495
          %512 = vst [vmem:[#allocation2 + $0x78] sm:$0xff] %v496
          %vm513 = vcmask 7168
          %514 = vst.msk [vmem:[#allocation3] sm:$0xff] %vm513, -inf
          %515 = vst.msk [vmem:[#allocation3 + $0x8] sm:$0xff] %vm513, -inf
          %516 = vst.msk [vmem:[#allocation3 + $0x10] sm:$0xff] %vm513, -inf
          %517 = vst.msk [vmem:[#allocation3 + $0x18] sm:$0xff] %vm513, -inf
          %518 = vst.msk [vmem:[#allocation3 + $0x20] sm:$0xff] %vm513, -inf
          %519 = vst.msk [vmem:[#allocation3 + $0x28] sm:$0xff] %vm513, -inf
          %520 = vst.msk [vmem:[#allocation3 + $0x30] sm:$0xff] %vm513, -inf
          %521 = vst.msk [vmem:[#allocation3 + $0x38] sm:$0xff] %vm513, -inf
          %522 = vst.msk [vmem:[#allocation3 + $0x40] sm:$0xff] %vm513, -inf
          %523 = vst.msk [vmem:[#allocation3 + $0x48] sm:$0xff] %vm513, -inf
          %524 = vst.msk [vmem:[#allocation3 + $0x50] sm:$0xff] %vm513, -inf
          %525 = vst.msk [vmem:[#allocation3 + $0x58] sm:$0xff] %vm513, -inf
          %526 = vst.msk [vmem:[#allocation3 + $0x60] sm:$0xff] %vm513, -inf
          %527 = vst.msk [vmem:[#allocation3 + $0x68] sm:$0xff] %vm513, -inf
          %528 = vst.msk [vmem:[#allocation3 + $0x70] sm:$0xff] %vm513, -inf
          %529 = vst.msk [vmem:[#allocation3 + $0x78] sm:$0xff] %vm513, -inf
          %530 = vst.msk [vmem:[#allocation4] sm:$0xff] %vm513, 0.0
          %531 = vst.msk [vmem:[#allocation4 + $0x8] sm:$0xff] %vm513, 0.0
          %532 = vst.msk [vmem:[#allocation4 + $0x10] sm:$0xff] %vm513, 0.0
          %533 = vst.msk [vmem:[#allocation4 + $0x18] sm:$0xff] %vm513, 0.0
          %534 = vst.msk [vmem:[#allocation4 + $0x20] sm:$0xff] %vm513, 0.0
          %535 = vst.msk [vmem:[#allocation4 + $0x28] sm:$0xff] %vm513, 0.0
          %536 = vst.msk [vmem:[#allocation4 + $0x30] sm:$0xff] %vm513, 0.0
          %537 = vst.msk [vmem:[#allocation4 + $0x38] sm:$0xff] %vm513, 0.0
          %538 = vst.msk [vmem:[#allocation4 + $0x40] sm:$0xff] %vm513, 0.0
          %539 = vst.msk [vmem:[#allocation4 + $0x48] sm:$0xff] %vm513, 0.0
          %540 = vst.msk [vmem:[#allocation4 + $0x50] sm:$0xff] %vm513, 0.0
          %541 = vst.msk [vmem:[#allocation4 + $0x58] sm:$0xff] %vm513, 0.0
          %542 = vst.msk [vmem:[#allocation4 + $0x60] sm:$0xff] %vm513, 0.0
          %543 = vst.msk [vmem:[#allocation4 + $0x68] sm:$0xff] %vm513, 0.0
          %544 = vst.msk [vmem:[#allocation4 + $0x70] sm:$0xff] %vm513, 0.0
          %545 = vst.msk [vmem:[#allocation4 + $0x78] sm:$0xff] %vm513, 0.0
          %546 = vst [vmem:[#allocation5] sm:$0xff] 0.0
          %547 = vst [vmem:[#allocation5 + $0x8] sm:$0xff] 0.0
          %548 = vst [vmem:[#allocation5 + $0x10] sm:$0xff] 0.0
          %549 = vst [vmem:[#allocation5 + $0x18] sm:$0xff] 0.0
          %550 = vst [vmem:[#allocation5 + $0x20] sm:$0xff] 0.0
          %551 = vst [vmem:[#allocation5 + $0x28] sm:$0xff] 0.0
          %552 = vst [vmem:[#allocation5 + $0x30] sm:$0xff] 0.0
          %553 = vst [vmem:[#allocation5 + $0x38] sm:$0xff] 0.0
          %554 = vst [vmem:[#allocation5 + $0x40] sm:$0xff] 0.0
          %555 = vst [vmem:[#allocation5 + $0x48] sm:$0xff] 0.0
          %556 = vst [vmem:[#allocation5 + $0x50] sm:$0xff] 0.0
          %557 = vst [vmem:[#allocation5 + $0x58] sm:$0xff] 0.0
          %558 = vst [vmem:[#allocation5 + $0x60] sm:$0xff] 0.0
          %559 = vst [vmem:[#allocation5 + $0x68] sm:$0xff] 0.0
          %560 = vst [vmem:[#allocation5 + $0x70] sm:$0xff] 0.0
          %561 = vst [vmem:[#allocation5 + $0x78] sm:$0xff] 0.0
        $region52: #{tpu_custom_call.1} parent=35 // pred_fallthru
          _
        %p562 = scmp.lt.s32.totalorder %s29, %s28
        // Predicated region
        $region53: #{tpu_custom_call.1} parent=35 // pred_check
          %p563 = pneg %p562
        $region54: #{tpu_custom_call.1} parent=35 // pred_check_branch
          %565 = sbr.rel (%p563) target = $region56
        $region55: #{tpu_custom_call.1} parent=35 // pred_region
          %v566 = vld [vmem:[%s254] sm:$0xff]
          %v567 = vld [vmem:[%s254 + $0x8] sm:$0xff]
          %v568 = vld [vmem:[%s254 + $0x10] sm:$0xff]
          %v569 = vld [vmem:[%s254 + $0x18] sm:$0xff]
          %v570 = vld [vmem:[%s254 + $0x20] sm:$0xff]
          %v571 = vld [vmem:[%s254 + $0x28] sm:$0xff]
          %v572 = vld [vmem:[%s254 + $0x30] sm:$0xff]
          %v573 = vld [vmem:[%s254 + $0x38] sm:$0xff]
          %v574 = vld [vmem:[%s254 + $0x40] sm:$0xff]
          %v575 = vld [vmem:[%s254 + $0x48] sm:$0xff]
          %v576 = vld [vmem:[%s254 + $0x50] sm:$0xff]
          %v577 = vld [vmem:[%s254 + $0x58] sm:$0xff]
          %v578 = vld [vmem:[%s254 + $0x60] sm:$0xff]
          %v579 = vld [vmem:[%s254 + $0x68] sm:$0xff]
          %v580 = vld [vmem:[%s254 + $0x70] sm:$0xff]
          %v581 = vld [vmem:[%s254 + $0x78] sm:$0xff]
          %v582 = vld [vmem:[#allocation11 + $0x8] sm:$0xff]
          %v583 = vld [vmem:[#allocation11 + $0x20] sm:$0xff]
          %v584 = vld [vmem:[#allocation11 + $0x38] sm:$0xff]
          %v585 = vld [vmem:[#allocation11 + $0x50] sm:$0xff]
          %v586 = vld [vmem:[#allocation11 + $0x68] sm:$0xff]
          %v587 = vld [vmem:[#allocation11 + $0x80] sm:$0xff]
          %v588 = vld [vmem:[#allocation11 + $0x98] sm:$0xff]
          %v589 = vld [vmem:[#allocation11 + $0xb0] sm:$0xff]
          %v590 = vld [vmem:[#allocation11 + $0xc8] sm:$0xff]
          %v591 = vld [vmem:[#allocation11 + $0xe0] sm:$0xff]
          %v592 = vld [vmem:[#allocation11 + $0xf8] sm:$0xff]
          %v593 = vld [vmem:[#allocation11 + $0x110] sm:$0xff]
          %v594 = vld [vmem:[#allocation11 + $0x128] sm:$0xff]
          %v595 = vld [vmem:[#allocation11 + $0x140] sm:$0xff]
          %v596 = vld [vmem:[#allocation11 + $0x158] sm:$0xff]
          %v597 = vld [vmem:[#allocation11 + $0x170] sm:$0xff]
          %v598 = vld [vmem:[#allocation11 + $0x10] sm:$0xff]
          %v599 = vld [vmem:[#allocation11 + $0x28] sm:$0xff]
          %v600 = vld [vmem:[#allocation11 + $0x40] sm:$0xff]
          %v601 = vld [vmem:[#allocation11 + $0x58] sm:$0xff]
          %v602 = vld [vmem:[#allocation11 + $0x70] sm:$0xff]
          %v603 = vld [vmem:[#allocation11 + $0x88] sm:$0xff]
          %v604 = vld [vmem:[#allocation11 + $0xa0] sm:$0xff]
          %v605 = vld [vmem:[#allocation11 + $0xb8] sm:$0xff]
          %v606 = vld [vmem:[#allocation11 + $0xd0] sm:$0xff]
          %v607 = vld [vmem:[#allocation11 + $0xe8] sm:$0xff]
          %v608 = vld [vmem:[#allocation11 + $0x100] sm:$0xff]
          %v609 = vld [vmem:[#allocation11 + $0x118] sm:$0xff]
          %v610 = vld [vmem:[#allocation11 + $0x130] sm:$0xff]
          %v611 = vld [vmem:[#allocation11 + $0x148] sm:$0xff]
          %v612 = vld [vmem:[#allocation11 + $0x160] sm:$0xff]
          %v613 = vld [vmem:[#allocation11 + $0x178] sm:$0xff]
          %v614 = vld [vmem:[%s3 + $0x1] sm:$0x1]
          %v616 = vlaneseq
          %v617 = vshrl.u32 %v616, 7
          %v618 = vsub.s32 0, %v617
          %v619 = vrot.slane %v614, %v618
          %621 = vmatprep.subr.mxu0 0.0
          %622 = vmatpush1.msra.mxu0 %v582
          %623 = vmatprep.subr.mxu0 0.0
          %624 = vmatpush1.msra.mxu0 %v583
          %625 = vmatprep.subr.mxu0 0.0
          %626 = vmatpush1.msra.mxu0 %v584
          %627 = vmatprep.subr.mxu0 0.0
          %628 = vmatpush1.msra.mxu0 %v585
          %629 = vmatprep.subr.mxu0 0.0
          %630 = vmatpush1.msra.mxu0 %v586
          %631 = vmatprep.subr.mxu0 0.0
          %632 = vmatpush1.msra.mxu0 %v587
          %633 = vmatprep.subr.mxu0 0.0
          %634 = vmatpush1.msra.mxu0 %v588
          %635 = vmatprep.subr.mxu0 0.0
          %636 = vmatpush1.msra.mxu0 %v589
          %637 = vmatprep.subr.mxu0 0.0
          %638 = vmatpush1.msra.mxu0 %v590
          %639 = vmatprep.subr.mxu0 0.0
          %640 = vmatpush1.msra.mxu0 %v591
          %641 = vmatprep.subr.mxu0 0.0
          %642 = vmatpush1.msra.mxu0 %v592
          %643 = vmatprep.subr.mxu0 0.0
          %644 = vmatpush1.msra.mxu0 %v593
          %645 = vmatprep.subr.mxu0 0.0
          %646 = vmatpush1.msra.mxu0 %v594
          %647 = vmatprep.subr.mxu0 0.0
          %648 = vmatpush1.msra.mxu0 %v595
          %649 = vmatprep.subr.mxu0 0.0
          %650 = vmatpush1.msra.mxu0 %v596
          %651 = vmatprep.subr.mxu0 0.0
          %652 = vmatpush1.msra.mxu0 %v597
          %653 = vmatprep.subr.mxu0 0.0
          %654 = vmatpush1.msra.mxu0 0.0
          %655 = vmatprep.subr.mxu0 0.0
          %656 = vmatpush1.msra.mxu0 0.0
          %657 = vmatprep.subr.mxu0 0.0
          %658 = vmatpush1.msra.mxu0 0.0
          %659 = vmatprep.subr.mxu0 0.0
          %660 = vmatpush1.msra.mxu0 0.0
          %661 = vmatprep.subr.mxu0 0.0
          %662 = vmatpush1.msra.mxu0 0.0
          %663 = vmatprep.subr.mxu0 0.0
          %664 = vmatpush1.msra.mxu0 0.0
          %665 = vmatprep.subr.mxu0 0.0
          %666 = vmatpush1.msra.mxu0 0.0
          %667 = vmatprep.subr.mxu0 0.0
          %668 = vmatpush1.msra.mxu0 0.0
          %669 = vmatprep.subr.mxu0 0.0
          %670 = vmatpush1.msra.mxu0 0.0
          %671 = vmatprep.subr.mxu0 0.0
          %672 = vmatpush1.msra.mxu0 0.0
          %673 = vmatprep.subr.mxu0 0.0
          %674 = vmatpush1.msra.mxu0 0.0
          %675 = vmatprep.subr.mxu0 0.0
          %676 = vmatpush1.msra.mxu0 0.0
          %677 = vmatprep.subr.mxu0 0.0
          %678 = vmatpush1.msra.mxu0 0.0
          %679 = vmatprep.subr.mxu0 0.0
          %680 = vmatpush1.msra.mxu0 0.0
          %681 = vmatprep.subr.mxu0 0.0
          %682 = vmatpush1.msra.mxu0 0.0
          %683 = vmatprep.subr.mxu0 0.0
          %684 = vmatpush1.msra.mxu0 0.0
          %685 = vmatprep.mubr.f32.mxu0 0.0
          %686 = vmatmul.mubr.f32.gmra.mrb[0].mxu0 %v566
          %v687 = vpop.f32.mrb[0].mxu0
          %v688 = vadd.f32 %v619, %v687
          %v689 = vpop.f32.mrb[0].mxu0
          %690 = vmatprep.mubr.f32.mxu0 0.0
          %691 = vmatmul.mubr.f32.gmra.mrb[0].mxu0 %v567
          %v692 = vpop.f32.mrb[0].mxu0
          %v693 = vadd.f32 %v619, %v692
          %v694 = vpop.f32.mrb[0].mxu0
          %695 = vmatprep.mubr.f32.mxu0 0.0
          %696 = vmatmul.mubr.f32.gmra.mrb[0].mxu0 %v568
          %v697 = vpop.f32.mrb[0].mxu0
          %v698 = vadd.f32 %v619, %v697
          %v699 = vpop.f32.mrb[0].mxu0
          %700 = vmatprep.mubr.f32.mxu0 0.0
          %701 = vmatmul.mubr.f32.gmra.mrb[0].mxu0 %v569
          %v702 = vpop.f32.mrb[0].mxu0
          %v703 = vadd.f32 %v619, %v702
          %v704 = vpop.f32.mrb[0].mxu0
          %705 = vmatprep.mubr.f32.mxu0 0.0
          %706 = vmatmul.mubr.f32.gmra.mrb[0].mxu0 %v570
          %v707 = vpop.f32.mrb[0].mxu0
          %v708 = vadd.f32 %v619, %v707
          %v709 = vpop.f32.mrb[0].mxu0
          %710 = vmatprep.mubr.f32.mxu0 0.0
          %711 = vmatmul.mubr.f32.gmra.mrb[0].mxu0 %v571
          %v712 = vpop.f32.mrb[0].mxu0
          %v713 = vadd.f32 %v619, %v712
          %v714 = vpop.f32.mrb[0].mxu0
          %715 = vmatprep.mubr.f32.mxu0 0.0
          %716 = vmatmul.mubr.f32.gmra.mrb[0].mxu0 %v572
          %v717 = vpop.f32.mrb[0].mxu0
          %v718 = vadd.f32 %v619, %v717
          %v719 = vpop.f32.mrb[0].mxu0
          %720 = vmatprep.mubr.f32.mxu0 0.0
          %721 = vmatmul.mubr.f32.gmra.mrb[0].mxu0 %v573
          %v722 = vpop.f32.mrb[0].mxu0
          %v723 = vadd.f32 %v619, %v722
          %v724 = vpop.f32.mrb[0].mxu0
          %725 = vmatprep.mubr.f32.mxu0 0.0
          %726 = vmatmul.mubr.f32.gmra.mrb[0].mxu0 %v574
          %v727 = vpop.f32.mrb[0].mxu0
          %v728 = vadd.f32 %v619, %v727
          %v729 = vpop.f32.mrb[0].mxu0
          %730 = vmatprep.mubr.f32.mxu0 0.0
          %731 = vmatmul.mubr.f32.gmra.mrb[0].mxu0 %v575
          %v732 = vpop.f32.mrb[0].mxu0
          %v733 = vadd.f32 %v619, %v732
          %v734 = vpop.f32.mrb[0].mxu0
          %735 = vmatprep.mubr.f32.mxu0 0.0
          %736 = vmatmul.mubr.f32.gmra.mrb[0].mxu0 %v576
          %v737 = vpop.f32.mrb[0].mxu0
          %v738 = vadd.f32 %v619, %v737
          %v739 = vpop.f32.mrb[0].mxu0
          %740 = vmatprep.mubr.f32.mxu0 0.0
          %741 = vmatmul.mubr.f32.gmra.mrb[0].mxu0 %v577
          %v742 = vpop.f32.mrb[0].mxu0
          %v743 = vadd.f32 %v619, %v742
          %v744 = vpop.f32.mrb[0].mxu0
          %745 = vmatprep.mubr.f32.mxu0 0.0
          %746 = vmatmul.mubr.f32.gmra.mrb[0].mxu0 %v578
          %v747 = vpop.f32.mrb[0].mxu0
          %v748 = vadd.f32 %v619, %v747
          %v749 = vpop.f32.mrb[0].mxu0
          %750 = vmatprep.mubr.f32.mxu0 0.0
          %751 = vmatmul.mubr.f32.gmra.mrb[0].mxu0 %v579
          %v752 = vpop.f32.mrb[0].mxu0
          %v753 = vadd.f32 %v619, %v752
          %v754 = vpop.f32.mrb[0].mxu0
          %755 = vmatprep.mubr.f32.mxu0 0.0
          %756 = vmatmul.mubr.f32.gmra.mrb[0].mxu0 %v580
          %v757 = vpop.f32.mrb[0].mxu0
          %v758 = vadd.f32 %v619, %v757
          %v759 = vpop.f32.mrb[0].mxu0
          %760 = vmatprep.mubr.f32.mxu0 0.0
          %761 = vmatmul.mubr.f32.gmra.mrb[0].mxu0 %v581
          %v762 = vpop.f32.mrb[0].mxu0
          %v763 = vadd.f32 %v619, %v762
          %v764 = vpop.f32.mrb[0].mxu0
          %765 = vdwg.mxu0
          %v766 = vld [vmem:[%s3 + $0x2] sm:$0x1]
          %v768 = vlaneseq
          %v769 = vshrl.u32 %v768, 7
          %v770 = vsub.s32 0, %v769
          %v771 = vrot.slane %v766, %v770
          %773 = vmatprep.subr.mxu0 0.0
          %774 = vmatpush1.msra.mxu0 %v598
          %775 = vmatprep.subr.mxu0 0.0
          %776 = vmatpush1.msra.mxu0 %v599
          %777 = vmatprep.subr.mxu0 0.0
          %778 = vmatpush1.msra.mxu0 %v600
          %779 = vmatprep.subr.mxu0 0.0
          %780 = vmatpush1.msra.mxu0 %v601
          %781 = vmatprep.subr.mxu0 0.0
          %782 = vmatpush1.msra.mxu0 %v602
          %783 = vmatprep.subr.mxu0 0.0
          %784 = vmatpush1.msra.mxu0 %v603
          %785 = vmatprep.subr.mxu0 0.0
          %786 = vmatpush1.msra.mxu0 %v604
          %787 = vmatprep.subr.mxu0 0.0
          %788 = vmatpush1.msra.mxu0 %v605
          %789 = vmatprep.subr.mxu0 0.0
          %790 = vmatpush1.msra.mxu0 %v606
          %791 = vmatprep.subr.mxu0 0.0
          %792 = vmatpush1.msra.mxu0 %v607
          %793 = vmatprep.subr.mxu0 0.0
          %794 = vmatpush1.msra.mxu0 %v608
          %795 = vmatprep.subr.mxu0 0.0
          %796 = vmatpush1.msra.mxu0 %v609
          %797 = vmatprep.subr.mxu0 0.0
          %798 = vmatpush1.msra.mxu0 %v610
          %799 = vmatprep.subr.mxu0 0.0
          %800 = vmatpush1.msra.mxu0 %v611
          %801 = vmatprep.subr.mxu0 0.0
          %802 = vmatpush1.msra.mxu0 %v612
          %803 = vmatprep.subr.mxu0 0.0
          %804 = vmatpush1.msra.mxu0 %v613
          %805 = vmatprep.subr.mxu0 0.0
          %806 = vmatpush1.msra.mxu0 0.0
          %807 = vmatprep.subr.mxu0 0.0
          %808 = vmatpush1.msra.mxu0 0.0
          %809 = vmatprep.subr.mxu0 0.0
          %810 = vmatpush1.msra.mxu0 0.0
          %811 = vmatprep.subr.mxu0 0.0
          %812 = vmatpush1.msra.mxu0 0.0
          %813 = vmatprep.subr.mxu0 0.0
          %814 = vmatpush1.msra.mxu0 0.0
          %815 = vmatprep.subr.mxu0 0.0
          %816 = vmatpush1.msra.mxu0 0.0
          %817 = vmatprep.subr.mxu0 0.0
          %818 = vmatpush1.msra.mxu0 0.0
          %819 = vmatprep.subr.mxu0 0.0
          %820 = vmatpush1.msra.mxu0 0.0
          %821 = vmatprep.subr.mxu0 0.0
          %822 = vmatpush1.msra.mxu0 0.0
          %823 = vmatprep.subr.mxu0 0.0
          %824 = vmatpush1.msra.mxu0 0.0
          %825 = vmatprep.subr.mxu0 0.0
          %826 = vmatpush1.msra.mxu0 0.0
          %827 = vmatprep.subr.mxu0 0.0
          %828 = vmatpush1.msra.mxu0 0.0
          %829 = vmatprep.subr.mxu0 0.0
          %830 = vmatpush1.msra.mxu0 0.0
          %831 = vmatprep.subr.mxu0 0.0
          %832 = vmatpush1.msra.mxu0 0.0
          %833 = vmatprep.subr.mxu0 0.0
          %834 = vmatpush1.msra.mxu0 0.0
          %835 = vmatprep.subr.mxu0 0.0
          %836 = vmatpush1.msra.mxu0 0.0
          %837 = vmatprep.mubr.f32.mxu0 0.0
          %838 = vmatmul.mubr.f32.gmra.mrb[0].mxu0 %v566
          %v839 = vpop.f32.mrb[0].mxu0
          %v840 = vadd.f32 %v771, %v839
          %v841 = vpop.f32.mrb[0].mxu0
          %842 = vmatprep.mubr.f32.mxu0 0.0
          %843 = vmatmul.mubr.f32.gmra.mrb[0].mxu0 %v567
          %v844 = vpop.f32.mrb[0].mxu0
          %v845 = vadd.f32 %v771, %v844
          %v846 = vpop.f32.mrb[0].mxu0
          %847 = vmatprep.mubr.f32.mxu0 0.0
          %848 = vmatmul.mubr.f32.gmra.mrb[0].mxu0 %v568
          %v849 = vpop.f32.mrb[0].mxu0
          %v850 = vadd.f32 %v771, %v849
          %v851 = vpop.f32.mrb[0].mxu0
          %852 = vmatprep.mubr.f32.mxu0 0.0
          %853 = vmatmul.mubr.f32.gmra.mrb[0].mxu0 %v569
          %v854 = vpop.f32.mrb[0].mxu0
          %v855 = vadd.f32 %v771, %v854
          %v856 = vpop.f32.mrb[0].mxu0
          %857 = vmatprep.mubr.f32.mxu0 0.0
          %858 = vmatmul.mubr.f32.gmra.mrb[0].mxu0 %v570
          %v859 = vpop.f32.mrb[0].mxu0
          %v860 = vadd.f32 %v771, %v859
          %v861 = vpop.f32.mrb[0].mxu0
          %862 = vmatprep.mubr.f32.mxu0 0.0
          %863 = vmatmul.mubr.f32.gmra.mrb[0].mxu0 %v571
          %v864 = vpop.f32.mrb[0].mxu0
          %v865 = vadd.f32 %v771, %v864
          %v866 = vpop.f32.mrb[0].mxu0
          %867 = vmatprep.mubr.f32.mxu0 0.0
          %868 = vmatmul.mubr.f32.gmra.mrb[0].mxu0 %v572
          %v869 = vpop.f32.mrb[0].mxu0
          %v870 = vadd.f32 %v771, %v869
          %v871 = vpop.f32.mrb[0].mxu0
          %872 = vmatprep.mubr.f32.mxu0 0.0
          %873 = vmatmul.mubr.f32.gmra.mrb[0].mxu0 %v573
          %v874 = vpop.f32.mrb[0].mxu0
          %v875 = vadd.f32 %v771, %v874
          %v876 = vpop.f32.mrb[0].mxu0
          %877 = vmatprep.mubr.f32.mxu0 0.0
          %878 = vmatmul.mubr.f32.gmra.mrb[0].mxu0 %v574
          %v879 = vpop.f32.mrb[0].mxu0
          %v880 = vadd.f32 %v771, %v879
          %v881 = vpop.f32.mrb[0].mxu0
          %882 = vmatprep.mubr.f32.mxu0 0.0
          %883 = vmatmul.mubr.f32.gmra.mrb[0].mxu0 %v575
          %v884 = vpop.f32.mrb[0].mxu0
          %v885 = vadd.f32 %v771, %v884
          %v886 = vpop.f32.mrb[0].mxu0
          %887 = vmatprep.mubr.f32.mxu0 0.0
          %888 = vmatmul.mubr.f32.gmra.mrb[0].mxu0 %v576
          %v889 = vpop.f32.mrb[0].mxu0
          %v890 = vadd.f32 %v771, %v889
          %v891 = vpop.f32.mrb[0].mxu0
          %892 = vmatprep.mubr.f32.mxu0 0.0
          %893 = vmatmul.mubr.f32.gmra.mrb[0].mxu0 %v577
          %v894 = vpop.f32.mrb[0].mxu0
          %v895 = vadd.f32 %v771, %v894
          %v896 = vpop.f32.mrb[0].mxu0
          %897 = vmatprep.mubr.f32.mxu0 0.0
          %898 = vmatmul.mubr.f32.gmra.mrb[0].mxu0 %v578
          %v899 = vpop.f32.mrb[0].mxu0
          %v900 = vadd.f32 %v771, %v899
          %v901 = vpop.f32.mrb[0].mxu0
          %902 = vmatprep.mubr.f32.mxu0 0.0
          %903 = vmatmul.mubr.f32.gmra.mrb[0].mxu0 %v579
          %v904 = vpop.f32.mrb[0].mxu0
          %v905 = vadd.f32 %v771, %v904
          %v906 = vpop.f32.mrb[0].mxu0
          %907 = vmatprep.mubr.f32.mxu0 0.0
          %908 = vmatmul.mubr.f32.gmra.mrb[0].mxu0 %v580
          %v909 = vpop.f32.mrb[0].mxu0
          %v910 = vadd.f32 %v771, %v909
          %v911 = vpop.f32.mrb[0].mxu0
          %912 = vmatprep.mubr.f32.mxu0 0.0
          %913 = vmatmul.mubr.f32.gmra.mrb[0].mxu0 %v581
          %v914 = vpop.f32.mrb[0].mxu0
          %v915 = vadd.f32 %v771, %v914
          %v916 = vpop.f32.mrb[0].mxu0
          %917 = vdwg.mxu0
          %v918 = vld [vmem:[#allocation2] sm:$0xff]
          %v919 = vld [vmem:[#allocation2 + $0x8] sm:$0xff]
          %v920 = vld [vmem:[#allocation2 + $0x10] sm:$0xff]
          %v921 = vld [vmem:[#allocation2 + $0x18] sm:$0xff]
          %v922 = vld [vmem:[#allocation2 + $0x20] sm:$0xff]
          %v923 = vld [vmem:[#allocation2 + $0x28] sm:$0xff]
          %v924 = vld [vmem:[#allocation2 + $0x30] sm:$0xff]
          %v925 = vld [vmem:[#allocation2 + $0x38] sm:$0xff]
          %v926 = vld [vmem:[#allocation2 + $0x40] sm:$0xff]
          %v927 = vld [vmem:[#allocation2 + $0x48] sm:$0xff]
          %v928 = vld [vmem:[#allocation2 + $0x50] sm:$0xff]
          %v929 = vld [vmem:[#allocation2 + $0x58] sm:$0xff]
          %v930 = vld [vmem:[#allocation2 + $0x60] sm:$0xff]
          %v931 = vld [vmem:[#allocation2 + $0x68] sm:$0xff]
          %v932 = vld [vmem:[#allocation2 + $0x70] sm:$0xff]
          %v933 = vld [vmem:[#allocation2 + $0x78] sm:$0xff]
          %934 = vmatprep.subr.mxu0 0.0
          %935 = vmatpush1.xpose.msra.mxu0 %v688
          %936 = vmatprep.subr.mxu0 0.0
          %937 = vmatpush1.xpose.msra.mxu0 %v693
          %938 = vmatprep.subr.mxu0 0.0
          %939 = vmatpush1.xpose.msra.mxu0 %v698
          %940 = vmatprep.subr.mxu0 0.0
          %941 = vmatpush1.xpose.msra.mxu0 %v703
          %942 = vmatprep.subr.mxu0 0.0
          %943 = vmatpush1.xpose.msra.mxu0 %v708
          %944 = vmatprep.subr.mxu0 0.0
          %945 = vmatpush1.xpose.msra.mxu0 %v713
          %946 = vmatprep.subr.mxu0 0.0
          %947 = vmatpush1.xpose.msra.mxu0 %v718
          %948 = vmatprep.subr.mxu0 0.0
          %949 = vmatpush1.xpose.msra.mxu0 %v723
          %950 = vmatprep.subr.mxu0 0.0
          %951 = vmatpush1.xpose.msra.mxu0 %v728
          %952 = vmatprep.subr.mxu0 0.0
          %953 = vmatpush1.xpose.msra.mxu0 %v733
          %954 = vmatprep.subr.mxu0 0.0
          %955 = vmatpush1.xpose.msra.mxu0 %v738
          %956 = vmatprep.subr.mxu0 0.0
          %957 = vmatpush1.xpose.msra.mxu0 %v743
          %958 = vmatprep.subr.mxu0 0.0
          %959 = vmatpush1.xpose.msra.mxu0 %v748
          %960 = vmatprep.subr.mxu0 0.0
          %961 = vmatpush1.xpose.msra.mxu0 %v753
          %962 = vmatprep.subr.mxu0 0.0
          %963 = vmatpush1.xpose.msra.mxu0 %v758
          %964 = vmatprep.subr.mxu0 0.0
          %965 = vmatpush1.xpose.msra.mxu0 %v763
          %966 = vmatprep.subr.mxu0 0.0
          %967 = vmatpush1.xpose.msra.mxu0 0.0
          %968 = vmatprep.subr.mxu0 0.0
          %969 = vmatpush1.xpose.msra.mxu0 0.0
          %970 = vmatprep.subr.mxu0 0.0
          %971 = vmatpush1.xpose.msra.mxu0 0.0
          %972 = vmatprep.subr.mxu0 0.0
          %973 = vmatpush1.xpose.msra.mxu0 0.0
          %974 = vmatprep.subr.mxu0 0.0
          %975 = vmatpush1.xpose.msra.mxu0 0.0
          %976 = vmatprep.subr.mxu0 0.0
          %977 = vmatpush1.xpose.msra.mxu0 0.0
          %978 = vmatprep.subr.mxu0 0.0
          %979 = vmatpush1.xpose.msra.mxu0 0.0
          %980 = vmatprep.subr.mxu0 0.0
          %981 = vmatpush1.xpose.msra.mxu0 0.0
          %982 = vmatprep.subr.mxu0 0.0
          %983 = vmatpush1.xpose.msra.mxu0 0.0
          %984 = vmatprep.subr.mxu0 0.0
          %985 = vmatpush1.xpose.msra.mxu0 0.0
          %986 = vmatprep.subr.mxu0 0.0
          %987 = vmatpush1.xpose.msra.mxu0 0.0
          %988 = vmatprep.subr.mxu0 0.0
          %989 = vmatpush1.xpose.msra.mxu0 0.0
          %990 = vmatprep.subr.mxu0 0.0
          %991 = vmatpush1.xpose.msra.mxu0 0.0
          %992 = vmatprep.subr.mxu0 0.0
          %993 = vmatpush1.xpose.msra.mxu0 0.0
          %994 = vmatprep.subr.mxu0 0.0
          %995 = vmatpush1.xpose.msra.mxu0 0.0
          %996 = vmatprep.subr.mxu0 0.0
          %997 = vmatpush1.xpose.msra.mxu0 0.0
          %998 = vmatprep.mubr.f32.mxu0 0.0
          %999 = vmatmul.mubr.f32.gmra.mrb[0].mxu0 %v918
          %v1000 = vpop.f32.mrb[0].mxu0
          %v1001 = vadd.f32 0.0, %v1000
          %v1002 = vpop.f32.mrb[0].mxu0
          %1003 = vmatprep.mubr.f32.mxu0 0.0
          %1004 = vmatmul.mubr.f32.gmra.mrb[0].mxu0 %v919
          %v1005 = vpop.f32.mrb[0].mxu0
          %v1006 = vadd.f32 0.0, %v1005
          %v1007 = vpop.f32.mrb[0].mxu0
          %1008 = vmatprep.mubr.f32.mxu0 0.0
          %1009 = vmatmul.mubr.f32.gmra.mrb[0].mxu0 %v920
          %v1010 = vpop.f32.mrb[0].mxu0
          %v1011 = vadd.f32 0.0, %v1010
          %v1012 = vpop.f32.mrb[0].mxu0
          %1013 = vmatprep.mubr.f32.mxu0 0.0
          %1014 = vmatmul.mubr.f32.gmra.mrb[0].mxu0 %v921
          %v1015 = vpop.f32.mrb[0].mxu0
          %v1016 = vadd.f32 0.0, %v1015
          %v1017 = vpop.f32.mrb[0].mxu0
          %1018 = vmatprep.mubr.f32.mxu0 0.0
          %1019 = vmatmul.mubr.f32.gmra.mrb[0].mxu0 %v922
          %v1020 = vpop.f32.mrb[0].mxu0
          %v1021 = vadd.f32 0.0, %v1020
          %v1022 = vpop.f32.mrb[0].mxu0
          %1023 = vmatprep.mubr.f32.mxu0 0.0
          %1024 = vmatmul.mubr.f32.gmra.mrb[0].mxu0 %v923
          %v1025 = vpop.f32.mrb[0].mxu0
          %v1026 = vadd.f32 0.0, %v1025
          %v1027 = vpop.f32.mrb[0].mxu0
          %1028 = vmatprep.mubr.f32.mxu0 0.0
          %1029 = vmatmul.mubr.f32.gmra.mrb[0].mxu0 %v924
          %v1030 = vpop.f32.mrb[0].mxu0
          %v1031 = vadd.f32 0.0, %v1030
          %v1032 = vpop.f32.mrb[0].mxu0
          %1033 = vmatprep.mubr.f32.mxu0 0.0
          %1034 = vmatmul.mubr.f32.gmra.mrb[0].mxu0 %v925
          %v1035 = vpop.f32.mrb[0].mxu0
          %v1036 = vadd.f32 0.0, %v1035
          %v1037 = vpop.f32.mrb[0].mxu0
          %1038 = vmatprep.mubr.f32.mxu0 0.0
          %1039 = vmatmul.mubr.f32.gmra.mrb[0].mxu0 %v926
          %v1040 = vpop.f32.mrb[0].mxu0
          %v1041 = vadd.f32 0.0, %v1040
          %v1042 = vpop.f32.mrb[0].mxu0
          %1043 = vmatprep.mubr.f32.mxu0 0.0
          %1044 = vmatmul.mubr.f32.gmra.mrb[0].mxu0 %v927
          %v1045 = vpop.f32.mrb[0].mxu0
          %v1046 = vadd.f32 0.0, %v1045
          %v1047 = vpop.f32.mrb[0].mxu0
          %1048 = vmatprep.mubr.f32.mxu0 0.0
          %1049 = vmatmul.mubr.f32.gmra.mrb[0].mxu0 %v928
          %v1050 = vpop.f32.mrb[0].mxu0
          %v1051 = vadd.f32 0.0, %v1050
          %v1052 = vpop.f32.mrb[0].mxu0
          %1053 = vmatprep.mubr.f32.mxu0 0.0
          %1054 = vmatmul.mubr.f32.gmra.mrb[0].mxu0 %v929
          %v1055 = vpop.f32.mrb[0].mxu0
          %v1056 = vadd.f32 0.0, %v1055
          %v1057 = vpop.f32.mrb[0].mxu0
          %1058 = vmatprep.mubr.f32.mxu0 0.0
          %1059 = vmatmul.mubr.f32.gmra.mrb[0].mxu0 %v930
          %v1060 = vpop.f32.mrb[0].mxu0
          %v1061 = vadd.f32 0.0, %v1060
          %v1062 = vpop.f32.mrb[0].mxu0
          %1063 = vmatprep.mubr.f32.mxu0 0.0
          %1064 = vmatmul.mubr.f32.gmra.mrb[0].mxu0 %v931
          %v1065 = vpop.f32.mrb[0].mxu0
          %v1066 = vadd.f32 0.0, %v1065
          %v1067 = vpop.f32.mrb[0].mxu0
          %1068 = vmatprep.mubr.f32.mxu0 0.0
          %1069 = vmatmul.mubr.f32.gmra.mrb[0].mxu0 %v932
          %v1070 = vpop.f32.mrb[0].mxu0
          %v1071 = vadd.f32 0.0, %v1070
          %v1072 = vpop.f32.mrb[0].mxu0
          %1073 = vmatprep.mubr.f32.mxu0 0.0
          %1074 = vmatmul.mubr.f32.gmra.mrb[0].mxu0 %v933
          %v1075 = vpop.f32.mrb[0].mxu0
          %v1076 = vadd.f32 0.0, %v1075
          %v1077 = vpop.f32.mrb[0].mxu0
          %1078 = vdwg.mxu0
          %v1079 = vld [vmem:[#allocation3] sm:$0xff]
          %v1080 = vld [vmem:[#allocation3 + $0x8] sm:$0xff]
          %v1081 = vld [vmem:[#allocation3 + $0x10] sm:$0xff]
          %v1082 = vld [vmem:[#allocation3 + $0x18] sm:$0xff]
          %v1083 = vld [vmem:[#allocation3 + $0x20] sm:$0xff]
          %v1084 = vld [vmem:[#allocation3 + $0x28] sm:$0xff]
          %v1085 = vld [vmem:[#allocation3 + $0x30] sm:$0xff]
          %v1086 = vld [vmem:[#allocation3 + $0x38] sm:$0xff]
          %v1087 = vld [vmem:[#allocation3 + $0x40] sm:$0xff]
          %v1088 = vld [vmem:[#allocation3 + $0x48] sm:$0xff]
          %v1089 = vld [vmem:[#allocation3 + $0x50] sm:$0xff]
          %v1090 = vld [vmem:[#allocation3 + $0x58] sm:$0xff]
          %v1091 = vld [vmem:[#allocation3 + $0x60] sm:$0xff]
          %v1092 = vld [vmem:[#allocation3 + $0x68] sm:$0xff]
          %v1093 = vld [vmem:[#allocation3 + $0x70] sm:$0xff]
          %v1094 = vld [vmem:[#allocation3 + $0x78] sm:$0xff]
          %1095 = vmax.xlane.f32.xlu0 %v1001
          %v1096 = vpop.xlane.xlu0 %1095
          %1097 = vmax.xlane.f32.xlu0 %v1006
          %v1098 = vpop.xlane.xlu0 %1097
          %1099 = vmax.xlane.f32.xlu0 %v1011
          %v1100 = vpop.xlane.xlu0 %1099
          %1101 = vmax.xlane.f32.xlu0 %v1016
          %v1102 = vpop.xlane.xlu0 %1101
          %1103 = vmax.xlane.f32.xlu0 %v1021
          %v1104 = vpop.xlane.xlu0 %1103
          %1105 = vmax.xlane.f32.xlu0 %v1026
          %v1106 = vpop.xlane.xlu0 %1105
          %1107 = vmax.xlane.f32.xlu0 %v1031
          %v1108 = vpop.xlane.xlu0 %1107
          %1109 = vmax.xlane.f32.xlu0 %v1036
          %v1110 = vpop.xlane.xlu0 %1109
          %1111 = vmax.xlane.f32.xlu0 %v1041
          %v1112 = vpop.xlane.xlu0 %1111
          %1113 = vmax.xlane.f32.xlu0 %v1046
          %v1114 = vpop.xlane.xlu0 %1113
          %1115 = vmax.xlane.f32.xlu0 %v1051
          %v1116 = vpop.xlane.xlu0 %1115
          %1117 = vmax.xlane.f32.xlu0 %v1056
          %v1118 = vpop.xlane.xlu0 %1117
          %1119 = vmax.xlane.f32.xlu0 %v1061
          %v1120 = vpop.xlane.xlu0 %1119
          %1121 = vmax.xlane.f32.xlu0 %v1066
          %v1122 = vpop.xlane.xlu0 %1121
          %1123 = vmax.xlane.f32.xlu0 %v1071
          %v1124 = vpop.xlane.xlu0 %1123
          %1125 = vmax.xlane.f32.xlu0 %v1076
          %v1126 = vpop.xlane.xlu0 %1125
          %v1127 = vmax.f32 %v1079, %v1096
          %v1128 = vmax.f32 %v1080, %v1098
          %v1129 = vmax.f32 %v1081, %v1100
          %v1130 = vmax.f32 %v1082, %v1102
          %v1131 = vmax.f32 %v1083, %v1104
          %v1132 = vmax.f32 %v1084, %v1106
          %v1133 = vmax.f32 %v1085, %v1108
          %v1134 = vmax.f32 %v1086, %v1110
          %v1135 = vmax.f32 %v1087, %v1112
          %v1136 = vmax.f32 %v1088, %v1114
          %v1137 = vmax.f32 %v1089, %v1116
          %v1138 = vmax.f32 %v1090, %v1118
          %v1139 = vmax.f32 %v1091, %v1120
          %v1140 = vmax.f32 %v1092, %v1122
          %v1141 = vmax.f32 %v1093, %v1124
          %v1142 = vmax.f32 %v1094, %v1126
          %v1143 = vsub.f32 %v1079, %v1127
          %v1144 = vsub.f32 %v1080, %v1128
          %v1145 = vsub.f32 %v1081, %v1129
          %v1146 = vsub.f32 %v1082, %v1130
          %v1147 = vsub.f32 %v1083, %v1131
          %v1148 = vsub.f32 %v1084, %v1132
          %v1149 = vsub.f32 %v1085, %v1133
          %v1150 = vsub.f32 %v1086, %v1134
          %v1151 = vsub.f32 %v1087, %v1135
          %v1152 = vsub.f32 %v1088, %v1136
          %v1153 = vsub.f32 %v1089, %v1137
          %v1154 = vsub.f32 %v1090, %v1138
          %v1155 = vsub.f32 %v1091, %v1139
          %v1156 = vsub.f32 %v1092, %v1140
          %v1157 = vsub.f32 %v1093, %v1141
          %v1158 = vsub.f32 %v1094, %v1142
          %v1159 = vmul.f32 %v1143, 1.442695
          %v1160 = vpow.pop %v1159
          %v1161 = vmul.f32 %v1144, 1.442695
          %v1162 = vpow.pop %v1161
          %v1163 = vmul.f32 %v1145, 1.442695
          %v1164 = vpow.pop %v1163
          %v1165 = vmul.f32 %v1146, 1.442695
          %v1166 = vpow.pop %v1165
          %v1167 = vmul.f32 %v1147, 1.442695
          %v1168 = vpow.pop %v1167
          %v1169 = vmul.f32 %v1148, 1.442695
          %v1170 = vpow.pop %v1169
          %v1171 = vmul.f32 %v1149, 1.442695
          %v1172 = vpow.pop %v1171
          %v1173 = vmul.f32 %v1150, 1.442695
          %v1174 = vpow.pop %v1173
          %v1175 = vmul.f32 %v1151, 1.442695
          %v1176 = vpow.pop %v1175
          %v1177 = vmul.f32 %v1152, 1.442695
          %v1178 = vpow.pop %v1177
          %v1179 = vmul.f32 %v1153, 1.442695
          %v1180 = vpow.pop %v1179
          %v1181 = vmul.f32 %v1154, 1.442695
          %v1182 = vpow.pop %v1181
          %v1183 = vmul.f32 %v1155, 1.442695
          %v1184 = vpow.pop %v1183
          %v1185 = vmul.f32 %v1156, 1.442695
          %v1186 = vpow.pop %v1185
          %v1187 = vmul.f32 %v1157, 1.442695
          %v1188 = vpow.pop %v1187
          %v1189 = vmul.f32 %v1158, 1.442695
          %v1190 = vpow.pop %v1189
          %1192 = vset.pattern.permute.xlu0 0
          %1193 = vperm.xlu0 %1192, %v1127
          %v1194 = vpop.permute.xlu0 %1193
          %1197 = vset.pattern.permute.xlu0 0
          %1198 = vperm.xlu0 %1197, %v1128
          %v1199 = vpop.permute.xlu0 %1198
          %1202 = vset.pattern.permute.xlu0 0
          %1203 = vperm.xlu0 %1202, %v1129
          %v1204 = vpop.permute.xlu0 %1203
          %1207 = vset.pattern.permute.xlu0 0
          %1208 = vperm.xlu0 %1207, %v1130
          %v1209 = vpop.permute.xlu0 %1208
          %1212 = vset.pattern.permute.xlu0 0
          %1213 = vperm.xlu0 %1212, %v1131
          %v1214 = vpop.permute.xlu0 %1213
          %1217 = vset.pattern.permute.xlu0 0
          %1218 = vperm.xlu0 %1217, %v1132
          %v1219 = vpop.permute.xlu0 %1218
          %1222 = vset.pattern.permute.xlu0 0
          %1223 = vperm.xlu0 %1222, %v1133
          %v1224 = vpop.permute.xlu0 %1223
          %1227 = vset.pattern.permute.xlu0 0
          %1228 = vperm.xlu0 %1227, %v1134
          %v1229 = vpop.permute.xlu0 %1228
          %1232 = vset.pattern.permute.xlu0 0
          %1233 = vperm.xlu0 %1232, %v1135
          %v1234 = vpop.permute.xlu0 %1233
          %1237 = vset.pattern.permute.xlu0 0
          %1238 = vperm.xlu0 %1237, %v1136
          %v1239 = vpop.permute.xlu0 %1238
          %1242 = vset.pattern.permute.xlu0 0
          %1243 = vperm.xlu0 %1242, %v1137
          %v1244 = vpop.permute.xlu0 %1243
          %1247 = vset.pattern.permute.xlu0 0
          %1248 = vperm.xlu0 %1247, %v1138
          %v1249 = vpop.permute.xlu0 %1248
          %1252 = vset.pattern.permute.xlu0 0
          %1253 = vperm.xlu0 %1252, %v1139
          %v1254 = vpop.permute.xlu0 %1253
          %1257 = vset.pattern.permute.xlu0 0
          %1258 = vperm.xlu0 %1257, %v1140
          %v1259 = vpop.permute.xlu0 %1258
          %1262 = vset.pattern.permute.xlu0 0
          %1263 = vperm.xlu0 %1262, %v1141
          %v1264 = vpop.permute.xlu0 %1263
          %1267 = vset.pattern.permute.xlu0 0
          %1268 = vperm.xlu0 %1267, %v1142
          %v1269 = vpop.permute.xlu0 %1268
          %v1271 = vsub.f32 %v1001, %v1194
          %v1272 = vsub.f32 %v1006, %v1199
          %v1273 = vsub.f32 %v1011, %v1204
          %v1274 = vsub.f32 %v1016, %v1209
          %v1275 = vsub.f32 %v1021, %v1214
          %v1276 = vsub.f32 %v1026, %v1219
          %v1277 = vsub.f32 %v1031, %v1224
          %v1278 = vsub.f32 %v1036, %v1229
          %v1279 = vsub.f32 %v1041, %v1234
          %v1280 = vsub.f32 %v1046, %v1239
          %v1281 = vsub.f32 %v1051, %v1244
          %v1282 = vsub.f32 %v1056, %v1249
          %v1283 = vsub.f32 %v1061, %v1254
          %v1284 = vsub.f32 %v1066, %v1259
          %v1285 = vsub.f32 %v1071, %v1264
          %v1286 = vsub.f32 %v1076, %v1269
          %v1287 = vmul.f32 %v1271, 1.442695
          %v1288 = vpow.pop %v1287
          %v1289 = vmul.f32 %v1272, 1.442695
          %v1290 = vpow.pop %v1289
          %v1291 = vmul.f32 %v1273, 1.442695
          %v1292 = vpow.pop %v1291
          %v1293 = vmul.f32 %v1274, 1.442695
          %v1294 = vpow.pop %v1293
          %v1295 = vmul.f32 %v1275, 1.442695
          %v1296 = vpow.pop %v1295
          %v1297 = vmul.f32 %v1276, 1.442695
          %v1298 = vpow.pop %v1297
          %v1299 = vmul.f32 %v1277, 1.442695
          %v1300 = vpow.pop %v1299
          %v1301 = vmul.f32 %v1278, 1.442695
          %v1302 = vpow.pop %v1301
          %v1303 = vmul.f32 %v1279, 1.442695
          %v1304 = vpow.pop %v1303
          %v1305 = vmul.f32 %v1280, 1.442695
          %v1306 = vpow.pop %v1305
          %v1307 = vmul.f32 %v1281, 1.442695
          %v1308 = vpow.pop %v1307
          %v1309 = vmul.f32 %v1282, 1.442695
          %v1310 = vpow.pop %v1309
          %v1311 = vmul.f32 %v1283, 1.442695
          %v1312 = vpow.pop %v1311
          %v1313 = vmul.f32 %v1284, 1.442695
          %v1314 = vpow.pop %v1313
          %v1315 = vmul.f32 %v1285, 1.442695
          %v1316 = vpow.pop %v1315
          %v1317 = vmul.f32 %v1286, 1.442695
          %v1318 = vpow.pop %v1317
          %v1319 = vld [vmem:[#allocation4] sm:$0xff]
          %v1320 = vld [vmem:[#allocation4 + $0x8] sm:$0xff]
          %v1321 = vld [vmem:[#allocation4 + $0x10] sm:$0xff]
          %v1322 = vld [vmem:[#allocation4 + $0x18] sm:$0xff]
          %v1323 = vld [vmem:[#allocation4 + $0x20] sm:$0xff]
          %v1324 = vld [vmem:[#allocation4 + $0x28] sm:$0xff]
          %v1325 = vld [vmem:[#allocation4 + $0x30] sm:$0xff]
          %v1326 = vld [vmem:[#allocation4 + $0x38] sm:$0xff]
          %v1327 = vld [vmem:[#allocation4 + $0x40] sm:$0xff]
          %v1328 = vld [vmem:[#allocation4 + $0x48] sm:$0xff]
          %v1329 = vld [vmem:[#allocation4 + $0x50] sm:$0xff]
          %v1330 = vld [vmem:[#allocation4 + $0x58] sm:$0xff]
          %v1331 = vld [vmem:[#allocation4 + $0x60] sm:$0xff]
          %v1332 = vld [vmem:[#allocation4 + $0x68] sm:$0xff]
          %v1333 = vld [vmem:[#allocation4 + $0x70] sm:$0xff]
          %v1334 = vld [vmem:[#allocation4 + $0x78] sm:$0xff]
          %v1335 = vmul.f32 %v1160, %v1319
          %v1336 = vmul.f32 %v1162, %v1320
          %v1337 = vmul.f32 %v1164, %v1321
          %v1338 = vmul.f32 %v1166, %v1322
          %v1339 = vmul.f32 %v1168, %v1323
          %v1340 = vmul.f32 %v1170, %v1324
          %v1341 = vmul.f32 %v1172, %v1325
          %v1342 = vmul.f32 %v1174, %v1326
          %v1343 = vmul.f32 %v1176, %v1327
          %v1344 = vmul.f32 %v1178, %v1328
          %v1345 = vmul.f32 %v1180, %v1329
          %v1346 = vmul.f32 %v1182, %v1330
          %v1347 = vmul.f32 %v1184, %v1331
          %v1348 = vmul.f32 %v1186, %v1332
          %v1349 = vmul.f32 %v1188, %v1333
          %v1350 = vmul.f32 %v1190, %v1334
          %1351 = vadd.xlane.f32.xlu0 %v1288
          %v1352 = vpop.xlane.xlu0 %1351
          %1353 = vadd.xlane.f32.xlu0 %v1290
          %v1354 = vpop.xlane.xlu0 %1353
          %1355 = vadd.xlane.f32.xlu0 %v1292
          %v1356 = vpop.xlane.xlu0 %1355
          %1357 = vadd.xlane.f32.xlu0 %v1294
          %v1358 = vpop.xlane.xlu0 %1357
          %1359 = vadd.xlane.f32.xlu0 %v1296
          %v1360 = vpop.xlane.xlu0 %1359
          %1361 = vadd.xlane.f32.xlu0 %v1298
          %v1362 = vpop.xlane.xlu0 %1361
          %1363 = vadd.xlane.f32.xlu0 %v1300
          %v1364 = vpop.xlane.xlu0 %1363
          %1365 = vadd.xlane.f32.xlu0 %v1302
          %v1366 = vpop.xlane.xlu0 %1365
          %1367 = vadd.xlane.f32.xlu0 %v1304
          %v1368 = vpop.xlane.xlu0 %1367
          %1369 = vadd.xlane.f32.xlu0 %v1306
          %v1370 = vpop.xlane.xlu0 %1369
          %1371 = vadd.xlane.f32.xlu0 %v1308
          %v1372 = vpop.xlane.xlu0 %1371
          %1373 = vadd.xlane.f32.xlu0 %v1310
          %v1374 = vpop.xlane.xlu0 %1373
          %1375 = vadd.xlane.f32.xlu0 %v1312
          %v1376 = vpop.xlane.xlu0 %1375
          %1377 = vadd.xlane.f32.xlu0 %v1314
          %v1378 = vpop.xlane.xlu0 %1377
          %1379 = vadd.xlane.f32.xlu0 %v1316
          %v1380 = vpop.xlane.xlu0 %1379
          %1381 = vadd.xlane.f32.xlu0 %v1318
          %v1382 = vpop.xlane.xlu0 %1381
          %v1383 = vadd.f32 %v1335, %v1352
          %v1384 = vadd.f32 %v1336, %v1354
          %v1385 = vadd.f32 %v1337, %v1356
          %v1386 = vadd.f32 %v1338, %v1358
          %v1387 = vadd.f32 %v1339, %v1360
          %v1388 = vadd.f32 %v1340, %v1362
          %v1389 = vadd.f32 %v1341, %v1364
          %v1390 = vadd.f32 %v1342, %v1366
          %v1391 = vadd.f32 %v1343, %v1368
          %v1392 = vadd.f32 %v1344, %v1370
          %v1393 = vadd.f32 %v1345, %v1372
          %v1394 = vadd.f32 %v1346, %v1374
          %v1395 = vadd.f32 %v1347, %v1376
          %v1396 = vadd.f32 %v1348, %v1378
          %v1397 = vadd.f32 %v1349, %v1380
          %v1398 = vadd.f32 %v1350, %v1382
          %vm1399 = vcmask 7168
          %1400 = vst.msk [vmem:[#allocation4] sm:$0xff] %vm1399, %v1383
          %1401 = vst.msk [vmem:[#allocation4 + $0x8] sm:$0xff] %vm1399, %v1384
          %1402 = vst.msk [vmem:[#allocation4 + $0x10] sm:$0xff] %vm1399, %v1385
          %1403 = vst.msk [vmem:[#allocation4 + $0x18] sm:$0xff] %vm1399, %v1386
          %1404 = vst.msk [vmem:[#allocation4 + $0x20] sm:$0xff] %vm1399, %v1387
          %1405 = vst.msk [vmem:[#allocation4 + $0x28] sm:$0xff] %vm1399, %v1388
          %1406 = vst.msk [vmem:[#allocation4 + $0x30] sm:$0xff] %vm1399, %v1389
          %1407 = vst.msk [vmem:[#allocation4 + $0x38] sm:$0xff] %vm1399, %v1390
          %1408 = vst.msk [vmem:[#allocation4 + $0x40] sm:$0xff] %vm1399, %v1391
          %1409 = vst.msk [vmem:[#allocation4 + $0x48] sm:$0xff] %vm1399, %v1392
          %1410 = vst.msk [vmem:[#allocation4 + $0x50] sm:$0xff] %vm1399, %v1393
          %1411 = vst.msk [vmem:[#allocation4 + $0x58] sm:$0xff] %vm1399, %v1394
          %1412 = vst.msk [vmem:[#allocation4 + $0x60] sm:$0xff] %vm1399, %v1395
          %1413 = vst.msk [vmem:[#allocation4 + $0x68] sm:$0xff] %vm1399, %v1396
          %1414 = vst.msk [vmem:[#allocation4 + $0x70] sm:$0xff] %vm1399, %v1397
          %1415 = vst.msk [vmem:[#allocation4 + $0x78] sm:$0xff] %vm1399, %v1398
          %v1416 = vld [vmem:[#allocation5] sm:$0xff]
          %v1417 = vld [vmem:[#allocation5 + $0x8] sm:$0xff]
          %v1418 = vld [vmem:[#allocation5 + $0x10] sm:$0xff]
          %v1419 = vld [vmem:[#allocation5 + $0x18] sm:$0xff]
          %v1420 = vld [vmem:[#allocation5 + $0x20] sm:$0xff]
          %v1421 = vld [vmem:[#allocation5 + $0x28] sm:$0xff]
          %v1422 = vld [vmem:[#allocation5 + $0x30] sm:$0xff]
          %v1423 = vld [vmem:[#allocation5 + $0x38] sm:$0xff]
          %v1424 = vld [vmem:[#allocation5 + $0x40] sm:$0xff]
          %v1425 = vld [vmem:[#allocation5 + $0x48] sm:$0xff]
          %v1426 = vld [vmem:[#allocation5 + $0x50] sm:$0xff]
          %v1427 = vld [vmem:[#allocation5 + $0x58] sm:$0xff]
          %v1428 = vld [vmem:[#allocation5 + $0x60] sm:$0xff]
          %v1429 = vld [vmem:[#allocation5 + $0x68] sm:$0xff]
          %v1430 = vld [vmem:[#allocation5 + $0x70] sm:$0xff]
          %v1431 = vld [vmem:[#allocation5 + $0x78] sm:$0xff]
          %1433 = vset.pattern.permute.xlu0 0
          %1434 = vperm.xlu0 %1433, %v1160
          %v1435 = vpop.permute.xlu0 %1434
          %1438 = vset.pattern.permute.xlu0 0
          %1439 = vperm.xlu0 %1438, %v1162
          %v1440 = vpop.permute.xlu0 %1439
          %1443 = vset.pattern.permute.xlu0 0
          %1444 = vperm.xlu0 %1443, %v1164
          %v1445 = vpop.permute.xlu0 %1444
          %1448 = vset.pattern.permute.xlu0 0
          %1449 = vperm.xlu0 %1448, %v1166
          %v1450 = vpop.permute.xlu0 %1449
          %1453 = vset.pattern.permute.xlu0 0
          %1454 = vperm.xlu0 %1453, %v1168
          %v1455 = vpop.permute.xlu0 %1454
          %1458 = vset.pattern.permute.xlu0 0
          %1459 = vperm.xlu0 %1458, %v1170
          %v1460 = vpop.permute.xlu0 %1459
          %1463 = vset.pattern.permute.xlu0 0
          %1464 = vperm.xlu0 %1463, %v1172
          %v1465 = vpop.permute.xlu0 %1464
          %1468 = vset.pattern.permute.xlu0 0
          %1469 = vperm.xlu0 %1468, %v1174
          %v1470 = vpop.permute.xlu0 %1469
          %1473 = vset.pattern.permute.xlu0 0
          %1474 = vperm.xlu0 %1473, %v1176
          %v1475 = vpop.permute.xlu0 %1474
          %1478 = vset.pattern.permute.xlu0 0
          %1479 = vperm.xlu0 %1478, %v1178
          %v1480 = vpop.permute.xlu0 %1479
          %1483 = vset.pattern.permute.xlu0 0
          %1484 = vperm.xlu0 %1483, %v1180
          %v1485 = vpop.permute.xlu0 %1484
          %1488 = vset.pattern.permute.xlu0 0
          %1489 = vperm.xlu0 %1488, %v1182
          %v1490 = vpop.permute.xlu0 %1489
          %1493 = vset.pattern.permute.xlu0 0
          %1494 = vperm.xlu0 %1493, %v1184
          %v1495 = vpop.permute.xlu0 %1494
          %1498 = vset.pattern.permute.xlu0 0
          %1499 = vperm.xlu0 %1498, %v1186
          %v1500 = vpop.permute.xlu0 %1499
          %1503 = vset.pattern.permute.xlu0 0
          %1504 = vperm.xlu0 %1503, %v1188
          %v1505 = vpop.permute.xlu0 %1504
          %1508 = vset.pattern.permute.xlu0 0
          %1509 = vperm.xlu0 %1508, %v1190
          %v1510 = vpop.permute.xlu0 %1509
          %v1512 = vmul.f32 %v1435, %v1416
          %v1513 = vmul.f32 %v1440, %v1417
          %v1514 = vmul.f32 %v1445, %v1418
          %v1515 = vmul.f32 %v1450, %v1419
          %v1516 = vmul.f32 %v1455, %v1420
          %v1517 = vmul.f32 %v1460, %v1421
          %v1518 = vmul.f32 %v1465, %v1422
          %v1519 = vmul.f32 %v1470, %v1423
          %v1520 = vmul.f32 %v1475, %v1424
          %v1521 = vmul.f32 %v1480, %v1425
          %v1522 = vmul.f32 %v1485, %v1426
          %v1523 = vmul.f32 %v1490, %v1427
          %v1524 = vmul.f32 %v1495, %v1428
          %v1525 = vmul.f32 %v1500, %v1429
          %v1526 = vmul.f32 %v1505, %v1430
          %v1527 = vmul.f32 %v1510, %v1431
          %1528 = vmatprep.subr.mxu0 0.0
          %1529 = vmatpush1.msra.mxu0 %v840
          %1530 = vmatprep.subr.mxu0 0.0
          %1531 = vmatpush1.msra.mxu0 %v845
          %1532 = vmatprep.subr.mxu0 0.0
          %1533 = vmatpush1.msra.mxu0 %v850
          %1534 = vmatprep.subr.mxu0 0.0
          %1535 = vmatpush1.msra.mxu0 %v855
          %1536 = vmatprep.subr.mxu0 0.0
          %1537 = vmatpush1.msra.mxu0 %v860
          %1538 = vmatprep.subr.mxu0 0.0
          %1539 = vmatpush1.msra.mxu0 %v865
          %1540 = vmatprep.subr.mxu0 0.0
          %1541 = vmatpush1.msra.mxu0 %v870
          %1542 = vmatprep.subr.mxu0 0.0
          %1543 = vmatpush1.msra.mxu0 %v875
          %1544 = vmatprep.subr.mxu0 0.0
          %1545 = vmatpush1.msra.mxu0 %v880
          %1546 = vmatprep.subr.mxu0 0.0
          %1547 = vmatpush1.msra.mxu0 %v885
          %1548 = vmatprep.subr.mxu0 0.0
          %1549 = vmatpush1.msra.mxu0 %v890
          %1550 = vmatprep.subr.mxu0 0.0
          %1551 = vmatpush1.msra.mxu0 %v895
          %1552 = vmatprep.subr.mxu0 0.0
          %1553 = vmatpush1.msra.mxu0 %v900
          %1554 = vmatprep.subr.mxu0 0.0
          %1555 = vmatpush1.msra.mxu0 %v905
          %1556 = vmatprep.subr.mxu0 0.0
          %1557 = vmatpush1.msra.mxu0 %v910
          %1558 = vmatprep.subr.mxu0 0.0
          %1559 = vmatpush1.msra.mxu0 %v915
          %1560 = vmatprep.subr.mxu0 0.0
          %1561 = vmatpush1.msra.mxu0 0.0
          %1562 = vmatprep.subr.mxu0 0.0
          %1563 = vmatpush1.msra.mxu0 0.0
          %1564 = vmatprep.subr.mxu0 0.0
          %1565 = vmatpush1.msra.mxu0 0.0
          %1566 = vmatprep.subr.mxu0 0.0
          %1567 = vmatpush1.msra.mxu0 0.0
          %1568 = vmatprep.subr.mxu0 0.0
          %1569 = vmatpush1.msra.mxu0 0.0
          %1570 = vmatprep.subr.mxu0 0.0
          %1571 = vmatpush1.msra.mxu0 0.0
          %1572 = vmatprep.subr.mxu0 0.0
          %1573 = vmatpush1.msra.mxu0 0.0
          %1574 = vmatprep.subr.mxu0 0.0
          %1575 = vmatpush1.msra.mxu0 0.0
          %1576 = vmatprep.subr.mxu0 0.0
          %1577 = vmatpush1.msra.mxu0 0.0
          %1578 = vmatprep.subr.mxu0 0.0
          %1579 = vmatpush1.msra.mxu0 0.0
          %1580 = vmatprep.subr.mxu0 0.0
          %1581 = vmatpush1.msra.mxu0 0.0
          %1582 = vmatprep.subr.mxu0 0.0
          %1583 = vmatpush1.msra.mxu0 0.0
          %1584 = vmatprep.subr.mxu0 0.0
          %1585 = vmatpush1.msra.mxu0 0.0
          %1586 = vmatprep.subr.mxu0 0.0
          %1587 = vmatpush1.msra.mxu0 0.0
          %1588 = vmatprep.subr.mxu0 0.0
          %1589 = vmatpush1.msra.mxu0 0.0
          %1590 = vmatprep.subr.mxu0 0.0
          %1591 = vmatpush1.msra.mxu0 0.0
          %1592 = vmatprep.mubr.f32.mxu0 0.0
          %1593 = vmatmul.mubr.f32.gmra.mrb[0].mxu0 %v1288
          %v1594 = vpop.f32.mrb[0].mxu0
          %v1595 = vadd.f32 0.0, %v1594
          %v1596 = vpop.f32.mrb[0].mxu0
          %1597 = vmatprep.mubr.f32.mxu0 0.0
          %1598 = vmatmul.mubr.f32.gmra.mrb[0].mxu0 %v1290
          %v1599 = vpop.f32.mrb[0].mxu0
          %v1600 = vadd.f32 0.0, %v1599
          %v1601 = vpop.f32.mrb[0].mxu0
          %1602 = vmatprep.mubr.f32.mxu0 0.0
          %1603 = vmatmul.mubr.f32.gmra.mrb[0].mxu0 %v1292
          %v1604 = vpop.f32.mrb[0].mxu0
          %v1605 = vadd.f32 0.0, %v1604
          %v1606 = vpop.f32.mrb[0].mxu0
          %1607 = vmatprep.mubr.f32.mxu0 0.0
          %1608 = vmatmul.mubr.f32.gmra.mrb[0].mxu0 %v1294
          %v1609 = vpop.f32.mrb[0].mxu0
          %v1610 = vadd.f32 0.0, %v1609
          %v1611 = vpop.f32.mrb[0].mxu0
          %1612 = vmatprep.mubr.f32.mxu0 0.0
          %1613 = vmatmul.mubr.f32.gmra.mrb[0].mxu0 %v1296
          %v1614 = vpop.f32.mrb[0].mxu0
          %v1615 = vadd.f32 0.0, %v1614
          %v1616 = vpop.f32.mrb[0].mxu0
          %1617 = vmatprep.mubr.f32.mxu0 0.0
          %1618 = vmatmul.mubr.f32.gmra.mrb[0].mxu0 %v1298
          %v1619 = vpop.f32.mrb[0].mxu0
          %v1620 = vadd.f32 0.0, %v1619
          %v1621 = vpop.f32.mrb[0].mxu0
          %1622 = vmatprep.mubr.f32.mxu0 0.0
          %1623 = vmatmul.mubr.f32.gmra.mrb[0].mxu0 %v1300
          %v1624 = vpop.f32.mrb[0].mxu0
          %v1625 = vadd.f32 0.0, %v1624
          %v1626 = vpop.f32.mrb[0].mxu0
          %1627 = vmatprep.mubr.f32.mxu0 0.0
          %1628 = vmatmul.mubr.f32.gmra.mrb[0].mxu0 %v1302
          %v1629 = vpop.f32.mrb[0].mxu0
          %v1630 = vadd.f32 0.0, %v1629
          %v1631 = vpop.f32.mrb[0].mxu0
          %1632 = vmatprep.mubr.f32.mxu0 0.0
          %1633 = vmatmul.mubr.f32.gmra.mrb[0].mxu0 %v1304
          %v1634 = vpop.f32.mrb[0].mxu0
          %v1635 = vadd.f32 0.0, %v1634
          %v1636 = vpop.f32.mrb[0].mxu0
          %1637 = vmatprep.mubr.f32.mxu0 0.0
          %1638 = vmatmul.mubr.f32.gmra.mrb[0].mxu0 %v1306
          %v1639 = vpop.f32.mrb[0].mxu0
          %v1640 = vadd.f32 0.0, %v1639
          %v1641 = vpop.f32.mrb[0].mxu0
          %1642 = vmatprep.mubr.f32.mxu0 0.0
          %1643 = vmatmul.mubr.f32.gmra.mrb[0].mxu0 %v1308
          %v1644 = vpop.f32.mrb[0].mxu0
          %v1645 = vadd.f32 0.0, %v1644
          %v1646 = vpop.f32.mrb[0].mxu0
          %1647 = vmatprep.mubr.f32.mxu0 0.0
          %1648 = vmatmul.mubr.f32.gmra.mrb[0].mxu0 %v1310
          %v1649 = vpop.f32.mrb[0].mxu0
          %v1650 = vadd.f32 0.0, %v1649
          %v1651 = vpop.f32.mrb[0].mxu0
          %1652 = vmatprep.mubr.f32.mxu0 0.0
          %1653 = vmatmul.mubr.f32.gmra.mrb[0].mxu0 %v1312
          %v1654 = vpop.f32.mrb[0].mxu0
          %v1655 = vadd.f32 0.0, %v1654
          %v1656 = vpop.f32.mrb[0].mxu0
          %1657 = vmatprep.mubr.f32.mxu0 0.0
          %1658 = vmatmul.mubr.f32.gmra.mrb[0].mxu0 %v1314
          %v1659 = vpop.f32.mrb[0].mxu0
          %v1660 = vadd.f32 0.0, %v1659
          %v1661 = vpop.f32.mrb[0].mxu0
          %1662 = vmatprep.mubr.f32.mxu0 0.0
          %1663 = vmatmul.mubr.f32.gmra.mrb[0].mxu0 %v1316
          %v1664 = vpop.f32.mrb[0].mxu0
          %v1665 = vadd.f32 0.0, %v1664
          %v1666 = vpop.f32.mrb[0].mxu0
          %1667 = vmatprep.mubr.f32.mxu0 0.0
          %1668 = vmatmul.mubr.f32.gmra.mrb[0].mxu0 %v1318
          %v1669 = vpop.f32.mrb[0].mxu0
          %v1670 = vadd.f32 0.0, %v1669
          %v1671 = vpop.f32.mrb[0].mxu0
          %1672 = vdwg.mxu0
          %v1673 = vadd.f32 %v1512, %v1595
          %v1674 = vadd.f32 %v1513, %v1600
          %v1675 = vadd.f32 %v1514, %v1605
          %v1676 = vadd.f32 %v1515, %v1610
          %v1677 = vadd.f32 %v1516, %v1615
          %v1678 = vadd.f32 %v1517, %v1620
          %v1679 = vadd.f32 %v1518, %v1625
          %v1680 = vadd.f32 %v1519, %v1630
          %v1681 = vadd.f32 %v1520, %v1635
          %v1682 = vadd.f32 %v1521, %v1640
          %v1683 = vadd.f32 %v1522, %v1645
          %v1684 = vadd.f32 %v1523, %v1650
          %v1685 = vadd.f32 %v1524, %v1655
          %v1686 = vadd.f32 %v1525, %v1660
          %v1687 = vadd.f32 %v1526, %v1665
          %v1688 = vadd.f32 %v1527, %v1670
          %1689 = vst [vmem:[#allocation5] sm:$0xff] %v1673
          %1690 = vst [vmem:[#allocation5 + $0x8] sm:$0xff] %v1674
          %1691 = vst [vmem:[#allocation5 + $0x10] sm:$0xff] %v1675
          %1692 = vst [vmem:[#allocation5 + $0x18] sm:$0xff] %v1676
          %1693 = vst [vmem:[#allocation5 + $0x20] sm:$0xff] %v1677
          %1694 = vst [vmem:[#allocation5 + $0x28] sm:$0xff] %v1678
          %1695 = vst [vmem:[#allocation5 + $0x30] sm:$0xff] %v1679
          %1696 = vst [vmem:[#allocation5 + $0x38] sm:$0xff] %v1680
          %1697 = vst [vmem:[#allocation5 + $0x40] sm:$0xff] %v1681
          %1698 = vst [vmem:[#allocation5 + $0x48] sm:$0xff] %v1682
          %1699 = vst [vmem:[#allocation5 + $0x50] sm:$0xff] %v1683
          %1700 = vst [vmem:[#allocation5 + $0x58] sm:$0xff] %v1684
          %1701 = vst [vmem:[#allocation5 + $0x60] sm:$0xff] %v1685
          %1702 = vst [vmem:[#allocation5 + $0x68] sm:$0xff] %v1686
          %1703 = vst [vmem:[#allocation5 + $0x70] sm:$0xff] %v1687
          %1704 = vst [vmem:[#allocation5 + $0x78] sm:$0xff] %v1688
          %1705 = vst.msk [vmem:[#allocation3] sm:$0xff] %vm1399, %v1127
          %1706 = vst.msk [vmem:[#allocation3 + $0x8] sm:$0xff] %vm1399, %v1128
          %1707 = vst.msk [vmem:[#allocation3 + $0x10] sm:$0xff] %vm1399, %v1129
          %1708 = vst.msk [vmem:[#allocation3 + $0x18] sm:$0xff] %vm1399, %v1130
          %1709 = vst.msk [vmem:[#allocation3 + $0x20] sm:$0xff] %vm1399, %v1131
          %1710 = vst.msk [vmem:[#allocation3 + $0x28] sm:$0xff] %vm1399, %v1132
          %1711 = vst.msk [vmem:[#allocation3 + $0x30] sm:$0xff] %vm1399, %v1133
          %1712 = vst.msk [vmem:[#allocation3 + $0x38] sm:$0xff] %vm1399, %v1134
          %1713 = vst.msk [vmem:[#allocation3 + $0x40] sm:$0xff] %vm1399, %v1135
          %1714 = vst.msk [vmem:[#allocation3 + $0x48] sm:$0xff] %vm1399, %v1136
          %1715 = vst.msk [vmem:[#allocation3 + $0x50] sm:$0xff] %vm1399, %v1137
          %1716 = vst.msk [vmem:[#allocation3 + $0x58] sm:$0xff] %vm1399, %v1138
          %1717 = vst.msk [vmem:[#allocation3 + $0x60] sm:$0xff] %vm1399, %v1139
          %1718 = vst.msk [vmem:[#allocation3 + $0x68] sm:$0xff] %vm1399, %v1140
          %1719 = vst.msk [vmem:[#allocation3 + $0x70] sm:$0xff] %vm1399, %v1141
          %1720 = vst.msk [vmem:[#allocation3 + $0x78] sm:$0xff] %vm1399, %v1142
        $region56: #{tpu_custom_call.1} parent=35 // pred_fallthru
          _
        %p1721 = scmp.eq.s32.totalorder %s29, %s28
        // Predicated region
        $region57: #{tpu_custom_call.1} parent=35 // pred_check
          %p1722 = pneg %p1721
        $region58: #{tpu_custom_call.1} parent=35 // pred_check_branch
          %1724 = sbr.rel (%p1722) target = $region60
        $region59: #{tpu_custom_call.1} parent=35 // pred_region
          %v1725 = vld [vmem:[%s254] sm:$0xff]
          %v1726 = vld [vmem:[%s254 + $0x8] sm:$0xff]
          %v1727 = vld [vmem:[%s254 + $0x10] sm:$0xff]
          %v1728 = vld [vmem:[%s254 + $0x18] sm:$0xff]
          %v1729 = vld [vmem:[%s254 + $0x20] sm:$0xff]
          %v1730 = vld [vmem:[%s254 + $0x28] sm:$0xff]
          %v1731 = vld [vmem:[%s254 + $0x30] sm:$0xff]
          %v1732 = vld [vmem:[%s254 + $0x38] sm:$0xff]
          %v1733 = vld [vmem:[%s254 + $0x40] sm:$0xff]
          %v1734 = vld [vmem:[%s254 + $0x48] sm:$0xff]
          %v1735 = vld [vmem:[%s254 + $0x50] sm:$0xff]
          %v1736 = vld [vmem:[%s254 + $0x58] sm:$0xff]
          %v1737 = vld [vmem:[%s254 + $0x60] sm:$0xff]
          %v1738 = vld [vmem:[%s254 + $0x68] sm:$0xff]
          %v1739 = vld [vmem:[%s254 + $0x70] sm:$0xff]
          %v1740 = vld [vmem:[%s254 + $0x78] sm:$0xff]
          %v1741 = vld [vmem:[#allocation11 + $0x8] sm:$0xff]
          %v1742 = vld [vmem:[#allocation11 + $0x20] sm:$0xff]
          %v1743 = vld [vmem:[#allocation11 + $0x38] sm:$0xff]
          %v1744 = vld [vmem:[#allocation11 + $0x50] sm:$0xff]
          %v1745 = vld [vmem:[#allocation11 + $0x68] sm:$0xff]
          %v1746 = vld [vmem:[#allocation11 + $0x80] sm:$0xff]
          %v1747 = vld [vmem:[#allocation11 + $0x98] sm:$0xff]
          %v1748 = vld [vmem:[#allocation11 + $0xb0] sm:$0xff]
          %v1749 = vld [vmem:[#allocation11 + $0xc8] sm:$0xff]
          %v1750 = vld [vmem:[#allocation11 + $0xe0] sm:$0xff]
          %v1751 = vld [vmem:[#allocation11 + $0xf8] sm:$0xff]
          %v1752 = vld [vmem:[#allocation11 + $0x110] sm:$0xff]
          %v1753 = vld [vmem:[#allocation11 + $0x128] sm:$0xff]
          %v1754 = vld [vmem:[#allocation11 + $0x140] sm:$0xff]
          %v1755 = vld [vmem:[#allocation11 + $0x158] sm:$0xff]
          %v1756 = vld [vmem:[#allocation11 + $0x170] sm:$0xff]
          %v1757 = vld [vmem:[#allocation11 + $0x10] sm:$0xff]
          %v1758 = vld [vmem:[#allocation11 + $0x28] sm:$0xff]
          %v1759 = vld [vmem:[#allocation11 + $0x40] sm:$0xff]
          %v1760 = vld [vmem:[#allocation11 + $0x58] sm:$0xff]
          %v1761 = vld [vmem:[#allocation11 + $0x70] sm:$0xff]
          %v1762 = vld [vmem:[#allocation11 + $0x88] sm:$0xff]
          %v1763 = vld [vmem:[#allocation11 + $0xa0] sm:$0xff]
          %v1764 = vld [vmem:[#allocation11 + $0xb8] sm:$0xff]
          %v1765 = vld [vmem:[#allocation11 + $0xd0] sm:$0xff]
          %v1766 = vld [vmem:[#allocation11 + $0xe8] sm:$0xff]
          %v1767 = vld [vmem:[#allocation11 + $0x100] sm:$0xff]
          %v1768 = vld [vmem:[#allocation11 + $0x118] sm:$0xff]
          %v1769 = vld [vmem:[#allocation11 + $0x130] sm:$0xff]
          %v1770 = vld [vmem:[#allocation11 + $0x148] sm:$0xff]
          %v1771 = vld [vmem:[#allocation11 + $0x160] sm:$0xff]
          %v1772 = vld [vmem:[#allocation11 + $0x178] sm:$0xff]
          %v1773 = vld [vmem:[%s3 + $0x1] sm:$0x1]
          %v1775 = vlaneseq
          %v1776 = vshrl.u32 %v1775, 7
          %v1777 = vsub.s32 0, %v1776
          %v1778 = vrot.slane %v1773, %v1777
          %1780 = vmatprep.subr.mxu0 0.0
          %1781 = vmatpush1.msra.mxu0 %v1741
          %1782 = vmatprep.subr.mxu0 0.0
          %1783 = vmatpush1.msra.mxu0 %v1742
          %1784 = vmatprep.subr.mxu0 0.0
          %1785 = vmatpush1.msra.mxu0 %v1743
          %1786 = vmatprep.subr.mxu0 0.0
          %1787 = vmatpush1.msra.mxu0 %v1744
          %1788 = vmatprep.subr.mxu0 0.0
          %1789 = vmatpush1.msra.mxu0 %v1745
          %1790 = vmatprep.subr.mxu0 0.0
          %1791 = vmatpush1.msra.mxu0 %v1746
          %1792 = vmatprep.subr.mxu0 0.0
          %1793 = vmatpush1.msra.mxu0 %v1747
          %1794 = vmatprep.subr.mxu0 0.0
          %1795 = vmatpush1.msra.mxu0 %v1748
          %1796 = vmatprep.subr.mxu0 0.0
          %1797 = vmatpush1.msra.mxu0 %v1749
          %1798 = vmatprep.subr.mxu0 0.0
          %1799 = vmatpush1.msra.mxu0 %v1750
          %1800 = vmatprep.subr.mxu0 0.0
          %1801 = vmatpush1.msra.mxu0 %v1751
          %1802 = vmatprep.subr.mxu0 0.0
          %1803 = vmatpush1.msra.mxu0 %v1752
          %1804 = vmatprep.subr.mxu0 0.0
          %1805 = vmatpush1.msra.mxu0 %v1753
          %1806 = vmatprep.subr.mxu0 0.0
          %1807 = vmatpush1.msra.mxu0 %v1754
          %1808 = vmatprep.subr.mxu0 0.0
          %1809 = vmatpush1.msra.mxu0 %v1755
          %1810 = vmatprep.subr.mxu0 0.0
          %1811 = vmatpush1.msra.mxu0 %v1756
          %1812 = vmatprep.subr.mxu0 0.0
          %1813 = vmatpush1.msra.mxu0 0.0
          %1814 = vmatprep.subr.mxu0 0.0
          %1815 = vmatpush1.msra.mxu0 0.0
          %1816 = vmatprep.subr.mxu0 0.0
          %1817 = vmatpush1.msra.mxu0 0.0
          %1818 = vmatprep.subr.mxu0 0.0
          %1819 = vmatpush1.msra.mxu0 0.0
          %1820 = vmatprep.subr.mxu0 0.0
          %1821 = vmatpush1.msra.mxu0 0.0
          %1822 = vmatprep.subr.mxu0 0.0
          %1823 = vmatpush1.msra.mxu0 0.0
          %1824 = vmatprep.subr.mxu0 0.0
          %1825 = vmatpush1.msra.mxu0 0.0
          %1826 = vmatprep.subr.mxu0 0.0
          %1827 = vmatpush1.msra.mxu0 0.0
          %1828 = vmatprep.subr.mxu0 0.0
          %1829 = vmatpush1.msra.mxu0 0.0
          %1830 = vmatprep.subr.mxu0 0.0
          %1831 = vmatpush1.msra.mxu0 0.0
          %1832 = vmatprep.subr.mxu0 0.0
          %1833 = vmatpush1.msra.mxu0 0.0
          %1834 = vmatprep.subr.mxu0 0.0
          %1835 = vmatpush1.msra.mxu0 0.0
          %1836 = vmatprep.subr.mxu0 0.0
          %1837 = vmatpush1.msra.mxu0 0.0
          %1838 = vmatprep.subr.mxu0 0.0
          %1839 = vmatpush1.msra.mxu0 0.0
          %1840 = vmatprep.subr.mxu0 0.0
          %1841 = vmatpush1.msra.mxu0 0.0
          %1842 = vmatprep.subr.mxu0 0.0
          %1843 = vmatpush1.msra.mxu0 0.0
          %1844 = vmatprep.mubr.f32.mxu0 0.0
          %1845 = vmatmul.mubr.f32.gmra.mrb[0].mxu0 %v1725
          %v1846 = vpop.f32.mrb[0].mxu0
          %v1847 = vadd.f32 %v1778, %v1846
          %v1848 = vpop.f32.mrb[0].mxu0
          %1849 = vmatprep.mubr.f32.mxu0 0.0
          %1850 = vmatmul.mubr.f32.gmra.mrb[0].mxu0 %v1726
          %v1851 = vpop.f32.mrb[0].mxu0
          %v1852 = vadd.f32 %v1778, %v1851
          %v1853 = vpop.f32.mrb[0].mxu0
          %1854 = vmatprep.mubr.f32.mxu0 0.0
          %1855 = vmatmul.mubr.f32.gmra.mrb[0].mxu0 %v1727
          %v1856 = vpop.f32.mrb[0].mxu0
          %v1857 = vadd.f32 %v1778, %v1856
          %v1858 = vpop.f32.mrb[0].mxu0
          %1859 = vmatprep.mubr.f32.mxu0 0.0
          %1860 = vmatmul.mubr.f32.gmra.mrb[0].mxu0 %v1728
          %v1861 = vpop.f32.mrb[0].mxu0
          %v1862 = vadd.f32 %v1778, %v1861
          %v1863 = vpop.f32.mrb[0].mxu0
          %1864 = vmatprep.mubr.f32.mxu0 0.0
          %1865 = vmatmul.mubr.f32.gmra.mrb[0].mxu0 %v1729
          %v1866 = vpop.f32.mrb[0].mxu0
          %v1867 = vadd.f32 %v1778, %v1866
          %v1868 = vpop.f32.mrb[0].mxu0
          %1869 = vmatprep.mubr.f32.mxu0 0.0
          %1870 = vmatmul.mubr.f32.gmra.mrb[0].mxu0 %v1730
          %v1871 = vpop.f32.mrb[0].mxu0
          %v1872 = vadd.f32 %v1778, %v1871
          %v1873 = vpop.f32.mrb[0].mxu0
          %1874 = vmatprep.mubr.f32.mxu0 0.0
          %1875 = vmatmul.mubr.f32.gmra.mrb[0].mxu0 %v1731
          %v1876 = vpop.f32.mrb[0].mxu0
          %v1877 = vadd.f32 %v1778, %v1876
          %v1878 = vpop.f32.mrb[0].mxu0
          %1879 = vmatprep.mubr.f32.mxu0 0.0
          %1880 = vmatmul.mubr.f32.gmra.mrb[0].mxu0 %v1732
          %v1881 = vpop.f32.mrb[0].mxu0
          %v1882 = vadd.f32 %v1778, %v1881
          %v1883 = vpop.f32.mrb[0].mxu0
          %1884 = vmatprep.mubr.f32.mxu0 0.0
          %1885 = vmatmul.mubr.f32.gmra.mrb[0].mxu0 %v1733
          %v1886 = vpop.f32.mrb[0].mxu0
          %v1887 = vadd.f32 %v1778, %v1886
          %v1888 = vpop.f32.mrb[0].mxu0
          %1889 = vmatprep.mubr.f32.mxu0 0.0
          %1890 = vmatmul.mubr.f32.gmra.mrb[0].mxu0 %v1734
          %v1891 = vpop.f32.mrb[0].mxu0
          %v1892 = vadd.f32 %v1778, %v1891
          %v1893 = vpop.f32.mrb[0].mxu0
          %1894 = vmatprep.mubr.f32.mxu0 0.0
          %1895 = vmatmul.mubr.f32.gmra.mrb[0].mxu0 %v1735
          %v1896 = vpop.f32.mrb[0].mxu0
          %v1897 = vadd.f32 %v1778, %v1896
          %v1898 = vpop.f32.mrb[0].mxu0
          %1899 = vmatprep.mubr.f32.mxu0 0.0
          %1900 = vmatmul.mubr.f32.gmra.mrb[0].mxu0 %v1736
          %v1901 = vpop.f32.mrb[0].mxu0
          %v1902 = vadd.f32 %v1778, %v1901
          %v1903 = vpop.f32.mrb[0].mxu0
          %1904 = vmatprep.mubr.f32.mxu0 0.0
          %1905 = vmatmul.mubr.f32.gmra.mrb[0].mxu0 %v1737
          %v1906 = vpop.f32.mrb[0].mxu0
          %v1907 = vadd.f32 %v1778, %v1906
          %v1908 = vpop.f32.mrb[0].mxu0
          %1909 = vmatprep.mubr.f32.mxu0 0.0
          %1910 = vmatmul.mubr.f32.gmra.mrb[0].mxu0 %v1738
          %v1911 = vpop.f32.mrb[0].mxu0
          %v1912 = vadd.f32 %v1778, %v1911
          %v1913 = vpop.f32.mrb[0].mxu0
          %1914 = vmatprep.mubr.f32.mxu0 0.0
          %1915 = vmatmul.mubr.f32.gmra.mrb[0].mxu0 %v1739
          %v1916 = vpop.f32.mrb[0].mxu0
          %v1917 = vadd.f32 %v1778, %v1916
          %v1918 = vpop.f32.mrb[0].mxu0
          %1919 = vmatprep.mubr.f32.mxu0 0.0
          %1920 = vmatmul.mubr.f32.gmra.mrb[0].mxu0 %v1740
          %v1921 = vpop.f32.mrb[0].mxu0
          %v1922 = vadd.f32 %v1778, %v1921
          %v1923 = vpop.f32.mrb[0].mxu0
          %1924 = vdwg.mxu0
          %v1925 = vld [vmem:[%s3 + $0x2] sm:$0x1]
          %v1927 = vlaneseq
          %v1928 = vshrl.u32 %v1927, 7
          %v1929 = vsub.s32 0, %v1928
          %v1930 = vrot.slane %v1925, %v1929
          %1932 = vmatprep.subr.mxu0 0.0
          %1933 = vmatpush1.msra.mxu0 %v1757
          %1934 = vmatprep.subr.mxu0 0.0
          %1935 = vmatpush1.msra.mxu0 %v1758
          %1936 = vmatprep.subr.mxu0 0.0
          %1937 = vmatpush1.msra.mxu0 %v1759
          %1938 = vmatprep.subr.mxu0 0.0
          %1939 = vmatpush1.msra.mxu0 %v1760
          %1940 = vmatprep.subr.mxu0 0.0
          %1941 = vmatpush1.msra.mxu0 %v1761
          %1942 = vmatprep.subr.mxu0 0.0
          %1943 = vmatpush1.msra.mxu0 %v1762
          %1944 = vmatprep.subr.mxu0 0.0
          %1945 = vmatpush1.msra.mxu0 %v1763
          %1946 = vmatprep.subr.mxu0 0.0
          %1947 = vmatpush1.msra.mxu0 %v1764
          %1948 = vmatprep.subr.mxu0 0.0
          %1949 = vmatpush1.msra.mxu0 %v1765
          %1950 = vmatprep.subr.mxu0 0.0
          %1951 = vmatpush1.msra.mxu0 %v1766
          %1952 = vmatprep.subr.mxu0 0.0
          %1953 = vmatpush1.msra.mxu0 %v1767
          %1954 = vmatprep.subr.mxu0 0.0
          %1955 = vmatpush1.msra.mxu0 %v1768
          %1956 = vmatprep.subr.mxu0 0.0
          %1957 = vmatpush1.msra.mxu0 %v1769
          %1958 = vmatprep.subr.mxu0 0.0
          %1959 = vmatpush1.msra.mxu0 %v1770
          %1960 = vmatprep.subr.mxu0 0.0
          %1961 = vmatpush1.msra.mxu0 %v1771
          %1962 = vmatprep.subr.mxu0 0.0
          %1963 = vmatpush1.msra.mxu0 %v1772
          %1964 = vmatprep.subr.mxu0 0.0
          %1965 = vmatpush1.msra.mxu0 0.0
          %1966 = vmatprep.subr.mxu0 0.0
          %1967 = vmatpush1.msra.mxu0 0.0
          %1968 = vmatprep.subr.mxu0 0.0
          %1969 = vmatpush1.msra.mxu0 0.0
          %1970 = vmatprep.subr.mxu0 0.0
          %1971 = vmatpush1.msra.mxu0 0.0
          %1972 = vmatprep.subr.mxu0 0.0
          %1973 = vmatpush1.msra.mxu0 0.0
          %1974 = vmatprep.subr.mxu0 0.0
          %1975 = vmatpush1.msra.mxu0 0.0
          %1976 = vmatprep.subr.mxu0 0.0
          %1977 = vmatpush1.msra.mxu0 0.0
          %1978 = vmatprep.subr.mxu0 0.0
          %1979 = vmatpush1.msra.mxu0 0.0
          %1980 = vmatprep.subr.mxu0 0.0
          %1981 = vmatpush1.msra.mxu0 0.0
          %1982 = vmatprep.subr.mxu0 0.0
          %1983 = vmatpush1.msra.mxu0 0.0
          %1984 = vmatprep.subr.mxu0 0.0
          %1985 = vmatpush1.msra.mxu0 0.0
          %1986 = vmatprep.subr.mxu0 0.0
          %1987 = vmatpush1.msra.mxu0 0.0
          %1988 = vmatprep.subr.mxu0 0.0
          %1989 = vmatpush1.msra.mxu0 0.0
          %1990 = vmatprep.subr.mxu0 0.0
          %1991 = vmatpush1.msra.mxu0 0.0
          %1992 = vmatprep.subr.mxu0 0.0
          %1993 = vmatpush1.msra.mxu0 0.0
          %1994 = vmatprep.subr.mxu0 0.0
          %1995 = vmatpush1.msra.mxu0 0.0
          %1996 = vmatprep.mubr.f32.mxu0 0.0
          %1997 = vmatmul.mubr.f32.gmra.mrb[0].mxu0 %v1725
          %v1998 = vpop.f32.mrb[0].mxu0
          %v1999 = vadd.f32 %v1930, %v1998
          %v2000 = vpop.f32.mrb[0].mxu0
          %2001 = vmatprep.mubr.f32.mxu0 0.0
          %2002 = vmatmul.mubr.f32.gmra.mrb[0].mxu0 %v1726
          %v2003 = vpop.f32.mrb[0].mxu0
          %v2004 = vadd.f32 %v1930, %v2003
          %v2005 = vpop.f32.mrb[0].mxu0
          %2006 = vmatprep.mubr.f32.mxu0 0.0
          %2007 = vmatmul.mubr.f32.gmra.mrb[0].mxu0 %v1727
          %v2008 = vpop.f32.mrb[0].mxu0
          %v2009 = vadd.f32 %v1930, %v2008
          %v2010 = vpop.f32.mrb[0].mxu0
          %2011 = vmatprep.mubr.f32.mxu0 0.0
          %2012 = vmatmul.mubr.f32.gmra.mrb[0].mxu0 %v1728
          %v2013 = vpop.f32.mrb[0].mxu0
          %v2014 = vadd.f32 %v1930, %v2013
          %v2015 = vpop.f32.mrb[0].mxu0
          %2016 = vmatprep.mubr.f32.mxu0 0.0
          %2017 = vmatmul.mubr.f32.gmra.mrb[0].mxu0 %v1729
          %v2018 = vpop.f32.mrb[0].mxu0
          %v2019 = vadd.f32 %v1930, %v2018
          %v2020 = vpop.f32.mrb[0].mxu0
          %2021 = vmatprep.mubr.f32.mxu0 0.0
          %2022 = vmatmul.mubr.f32.gmra.mrb[0].mxu0 %v1730
          %v2023 = vpop.f32.mrb[0].mxu0
          %v2024 = vadd.f32 %v1930, %v2023
          %v2025 = vpop.f32.mrb[0].mxu0
          %2026 = vmatprep.mubr.f32.mxu0 0.0
          %2027 = vmatmul.mubr.f32.gmra.mrb[0].mxu0 %v1731
          %v2028 = vpop.f32.mrb[0].mxu0
          %v2029 = vadd.f32 %v1930, %v2028
          %v2030 = vpop.f32.mrb[0].mxu0
          %2031 = vmatprep.mubr.f32.mxu0 0.0
          %2032 = vmatmul.mubr.f32.gmra.mrb[0].mxu0 %v1732
          %v2033 = vpop.f32.mrb[0].mxu0
          %v2034 = vadd.f32 %v1930, %v2033
          %v2035 = vpop.f32.mrb[0].mxu0
          %2036 = vmatprep.mubr.f32.mxu0 0.0
          %2037 = vmatmul.mubr.f32.gmra.mrb[0].mxu0 %v1733
          %v2038 = vpop.f32.mrb[0].mxu0
          %v2039 = vadd.f32 %v1930, %v2038
          %v2040 = vpop.f32.mrb[0].mxu0
          %2041 = vmatprep.mubr.f32.mxu0 0.0
          %2042 = vmatmul.mubr.f32.gmra.mrb[0].mxu0 %v1734
          %v2043 = vpop.f32.mrb[0].mxu0
          %v2044 = vadd.f32 %v1930, %v2043
          %v2045 = vpop.f32.mrb[0].mxu0
          %2046 = vmatprep.mubr.f32.mxu0 0.0
          %2047 = vmatmul.mubr.f32.gmra.mrb[0].mxu0 %v1735
          %v2048 = vpop.f32.mrb[0].mxu0
          %v2049 = vadd.f32 %v1930, %v2048
          %v2050 = vpop.f32.mrb[0].mxu0
          %2051 = vmatprep.mubr.f32.mxu0 0.0
          %2052 = vmatmul.mubr.f32.gmra.mrb[0].mxu0 %v1736
          %v2053 = vpop.f32.mrb[0].mxu0
          %v2054 = vadd.f32 %v1930, %v2053
          %v2055 = vpop.f32.mrb[0].mxu0
          %2056 = vmatprep.mubr.f32.mxu0 0.0
          %2057 = vmatmul.mubr.f32.gmra.mrb[0].mxu0 %v1737
          %v2058 = vpop.f32.mrb[0].mxu0
          %v2059 = vadd.f32 %v1930, %v2058
          %v2060 = vpop.f32.mrb[0].mxu0
          %2061 = vmatprep.mubr.f32.mxu0 0.0
          %2062 = vmatmul.mubr.f32.gmra.mrb[0].mxu0 %v1738
          %v2063 = vpop.f32.mrb[0].mxu0
          %v2064 = vadd.f32 %v1930, %v2063
          %v2065 = vpop.f32.mrb[0].mxu0
          %2066 = vmatprep.mubr.f32.mxu0 0.0
          %2067 = vmatmul.mubr.f32.gmra.mrb[0].mxu0 %v1739
          %v2068 = vpop.f32.mrb[0].mxu0
          %v2069 = vadd.f32 %v1930, %v2068
          %v2070 = vpop.f32.mrb[0].mxu0
          %2071 = vmatprep.mubr.f32.mxu0 0.0
          %2072 = vmatmul.mubr.f32.gmra.mrb[0].mxu0 %v1740
          %v2073 = vpop.f32.mrb[0].mxu0
          %v2074 = vadd.f32 %v1930, %v2073
          %v2075 = vpop.f32.mrb[0].mxu0
          %2076 = vdwg.mxu0
          %v2077 = vld [vmem:[#allocation2] sm:$0xff]
          %v2078 = vld [vmem:[#allocation2 + $0x8] sm:$0xff]
          %v2079 = vld [vmem:[#allocation2 + $0x10] sm:$0xff]
          %v2080 = vld [vmem:[#allocation2 + $0x18] sm:$0xff]
          %v2081 = vld [vmem:[#allocation2 + $0x20] sm:$0xff]
          %v2082 = vld [vmem:[#allocation2 + $0x28] sm:$0xff]
          %v2083 = vld [vmem:[#allocation2 + $0x30] sm:$0xff]
          %v2084 = vld [vmem:[#allocation2 + $0x38] sm:$0xff]
          %v2085 = vld [vmem:[#allocation2 + $0x40] sm:$0xff]
          %v2086 = vld [vmem:[#allocation2 + $0x48] sm:$0xff]
          %v2087 = vld [vmem:[#allocation2 + $0x50] sm:$0xff]
          %v2088 = vld [vmem:[#allocation2 + $0x58] sm:$0xff]
          %v2089 = vld [vmem:[#allocation2 + $0x60] sm:$0xff]
          %v2090 = vld [vmem:[#allocation2 + $0x68] sm:$0xff]
          %v2091 = vld [vmem:[#allocation2 + $0x70] sm:$0xff]
          %v2092 = vld [vmem:[#allocation2 + $0x78] sm:$0xff]
          %2093 = vmatprep.subr.mxu0 0.0
          %2094 = vmatpush1.xpose.msra.mxu0 %v1847
          %2095 = vmatprep.subr.mxu0 0.0
          %2096 = vmatpush1.xpose.msra.mxu0 %v1852
          %2097 = vmatprep.subr.mxu0 0.0
          %2098 = vmatpush1.xpose.msra.mxu0 %v1857
          %2099 = vmatprep.subr.mxu0 0.0
          %2100 = vmatpush1.xpose.msra.mxu0 %v1862
          %2101 = vmatprep.subr.mxu0 0.0
          %2102 = vmatpush1.xpose.msra.mxu0 %v1867
          %2103 = vmatprep.subr.mxu0 0.0
          %2104 = vmatpush1.xpose.msra.mxu0 %v1872
          %2105 = vmatprep.subr.mxu0 0.0
          %2106 = vmatpush1.xpose.msra.mxu0 %v1877
          %2107 = vmatprep.subr.mxu0 0.0
          %2108 = vmatpush1.xpose.msra.mxu0 %v1882
          %2109 = vmatprep.subr.mxu0 0.0
          %2110 = vmatpush1.xpose.msra.mxu0 %v1887
          %2111 = vmatprep.subr.mxu0 0.0
          %2112 = vmatpush1.xpose.msra.mxu0 %v1892
          %2113 = vmatprep.subr.mxu0 0.0
          %2114 = vmatpush1.xpose.msra.mxu0 %v1897
          %2115 = vmatprep.subr.mxu0 0.0
          %2116 = vmatpush1.xpose.msra.mxu0 %v1902
          %2117 = vmatprep.subr.mxu0 0.0
          %2118 = vmatpush1.xpose.msra.mxu0 %v1907
          %2119 = vmatprep.subr.mxu0 0.0
          %2120 = vmatpush1.xpose.msra.mxu0 %v1912
          %2121 = vmatprep.subr.mxu0 0.0
          %2122 = vmatpush1.xpose.msra.mxu0 %v1917
          %2123 = vmatprep.subr.mxu0 0.0
          %2124 = vmatpush1.xpose.msra.mxu0 %v1922
          %2125 = vmatprep.subr.mxu0 0.0
          %2126 = vmatpush1.xpose.msra.mxu0 0.0
          %2127 = vmatprep.subr.mxu0 0.0
          %2128 = vmatpush1.xpose.msra.mxu0 0.0
          %2129 = vmatprep.subr.mxu0 0.0
          %2130 = vmatpush1.xpose.msra.mxu0 0.0
          %2131 = vmatprep.subr.mxu0 0.0
          %2132 = vmatpush1.xpose.msra.mxu0 0.0
          %2133 = vmatprep.subr.mxu0 0.0
          %2134 = vmatpush1.xpose.msra.mxu0 0.0
          %2135 = vmatprep.subr.mxu0 0.0
          %2136 = vmatpush1.xpose.msra.mxu0 0.0
          %2137 = vmatprep.subr.mxu0 0.0
          %2138 = vmatpush1.xpose.msra.mxu0 0.0
          %2139 = vmatprep.subr.mxu0 0.0
          %2140 = vmatpush1.xpose.msra.mxu0 0.0
          %2141 = vmatprep.subr.mxu0 0.0
          %2142 = vmatpush1.xpose.msra.mxu0 0.0
          %2143 = vmatprep.subr.mxu0 0.0
          %2144 = vmatpush1.xpose.msra.mxu0 0.0
          %2145 = vmatprep.subr.mxu0 0.0
          %2146 = vmatpush1.xpose.msra.mxu0 0.0
          %2147 = vmatprep.subr.mxu0 0.0
          %2148 = vmatpush1.xpose.msra.mxu0 0.0
          %2149 = vmatprep.subr.mxu0 0.0
          %2150 = vmatpush1.xpose.msra.mxu0 0.0
          %2151 = vmatprep.subr.mxu0 0.0
          %2152 = vmatpush1.xpose.msra.mxu0 0.0
          %2153 = vmatprep.subr.mxu0 0.0
          %2154 = vmatpush1.xpose.msra.mxu0 0.0
          %2155 = vmatprep.subr.mxu0 0.0
          %2156 = vmatpush1.xpose.msra.mxu0 0.0
          %2157 = vmatprep.mubr.f32.mxu0 0.0
          %2158 = vmatmul.mubr.f32.gmra.mrb[0].mxu0 %v2077
          %v2159 = vpop.f32.mrb[0].mxu0
          %v2160 = vadd.f32 0.0, %v2159
          %v2161 = vpop.f32.mrb[0].mxu0
          %2162 = vmatprep.mubr.f32.mxu0 0.0
          %2163 = vmatmul.mubr.f32.gmra.mrb[0].mxu0 %v2078
          %v2164 = vpop.f32.mrb[0].mxu0
          %v2165 = vadd.f32 0.0, %v2164
          %v2166 = vpop.f32.mrb[0].mxu0
          %2167 = vmatprep.mubr.f32.mxu0 0.0
          %2168 = vmatmul.mubr.f32.gmra.mrb[0].mxu0 %v2079
          %v2169 = vpop.f32.mrb[0].mxu0
          %v2170 = vadd.f32 0.0, %v2169
          %v2171 = vpop.f32.mrb[0].mxu0
          %2172 = vmatprep.mubr.f32.mxu0 0.0
          %2173 = vmatmul.mubr.f32.gmra.mrb[0].mxu0 %v2080
          %v2174 = vpop.f32.mrb[0].mxu0
          %v2175 = vadd.f32 0.0, %v2174
          %v2176 = vpop.f32.mrb[0].mxu0
          %2177 = vmatprep.mubr.f32.mxu0 0.0
          %2178 = vmatmul.mubr.f32.gmra.mrb[0].mxu0 %v2081
          %v2179 = vpop.f32.mrb[0].mxu0
          %v2180 = vadd.f32 0.0, %v2179
          %v2181 = vpop.f32.mrb[0].mxu0
          %2182 = vmatprep.mubr.f32.mxu0 0.0
          %2183 = vmatmul.mubr.f32.gmra.mrb[0].mxu0 %v2082
          %v2184 = vpop.f32.mrb[0].mxu0
          %v2185 = vadd.f32 0.0, %v2184
          %v2186 = vpop.f32.mrb[0].mxu0
          %2187 = vmatprep.mubr.f32.mxu0 0.0
          %2188 = vmatmul.mubr.f32.gmra.mrb[0].mxu0 %v2083
          %v2189 = vpop.f32.mrb[0].mxu0
          %v2190 = vadd.f32 0.0, %v2189
          %v2191 = vpop.f32.mrb[0].mxu0
          %2192 = vmatprep.mubr.f32.mxu0 0.0
          %2193 = vmatmul.mubr.f32.gmra.mrb[0].mxu0 %v2084
          %v2194 = vpop.f32.mrb[0].mxu0
          %v2195 = vadd.f32 0.0, %v2194
          %v2196 = vpop.f32.mrb[0].mxu0
          %2197 = vmatprep.mubr.f32.mxu0 0.0
          %2198 = vmatmul.mubr.f32.gmra.mrb[0].mxu0 %v2085
          %v2199 = vpop.f32.mrb[0].mxu0
          %v2200 = vadd.f32 0.0, %v2199
          %v2201 = vpop.f32.mrb[0].mxu0
          %2202 = vmatprep.mubr.f32.mxu0 0.0
          %2203 = vmatmul.mubr.f32.gmra.mrb[0].mxu0 %v2086
          %v2204 = vpop.f32.mrb[0].mxu0
          %v2205 = vadd.f32 0.0, %v2204
          %v2206 = vpop.f32.mrb[0].mxu0
          %2207 = vmatprep.mubr.f32.mxu0 0.0
          %2208 = vmatmul.mubr.f32.gmra.mrb[0].mxu0 %v2087
          %v2209 = vpop.f32.mrb[0].mxu0
          %v2210 = vadd.f32 0.0, %v2209
          %v2211 = vpop.f32.mrb[0].mxu0
          %2212 = vmatprep.mubr.f32.mxu0 0.0
          %2213 = vmatmul.mubr.f32.gmra.mrb[0].mxu0 %v2088
          %v2214 = vpop.f32.mrb[0].mxu0
          %v2215 = vadd.f32 0.0, %v2214
          %v2216 = vpop.f32.mrb[0].mxu0
          %2217 = vmatprep.mubr.f32.mxu0 0.0
          %2218 = vmatmul.mubr.f32.gmra.mrb[0].mxu0 %v2089
          %v2219 = vpop.f32.mrb[0].mxu0
          %v2220 = vadd.f32 0.0, %v2219
          %v2221 = vpop.f32.mrb[0].mxu0
          %2222 = vmatprep.mubr.f32.mxu0 0.0
          %2223 = vmatmul.mubr.f32.gmra.mrb[0].mxu0 %v2090
          %v2224 = vpop.f32.mrb[0].mxu0
          %v2225 = vadd.f32 0.0, %v2224
          %v2226 = vpop.f32.mrb[0].mxu0
          %2227 = vmatprep.mubr.f32.mxu0 0.0
          %2228 = vmatmul.mubr.f32.gmra.mrb[0].mxu0 %v2091
          %v2229 = vpop.f32.mrb[0].mxu0
          %v2230 = vadd.f32 0.0, %v2229
          %v2231 = vpop.f32.mrb[0].mxu0
          %2232 = vmatprep.mubr.f32.mxu0 0.0
          %2233 = vmatmul.mubr.f32.gmra.mrb[0].mxu0 %v2092
          %v2234 = vpop.f32.mrb[0].mxu0
          %v2235 = vadd.f32 0.0, %v2234
          %v2236 = vpop.f32.mrb[0].mxu0
          %2237 = vdwg.mxu0
          %s2238 = smul.u32 %s28, 128
          %v2239 = vlaneseq
          %v2240 = vshrl.u32 %v2239, 7
          %v2241 = vadd.s32 %v2240, 8
          %v2242 = vadd.s32 %v2240, 16
          %v2243 = vadd.s32 %v2240, 24
          %v2244 = vadd.s32 %v2240, 32
          %v2245 = vadd.s32 %v2240, 40
          %v2246 = vadd.s32 %v2240, 48
          %v2247 = vadd.s32 %v2240, 56
          %v2248 = vadd.s32 %v2240, 64
          %v2249 = vadd.s32 %v2240, 72
          %v2250 = vadd.s32 %v2240, 80
          %v2251 = vadd.s32 %v2240, 88
          %v2252 = vadd.s32 %v2240, 96
          %v2253 = vadd.s32 %v2240, 104
          %v2254 = vadd.s32 %v2240, 112
          %v2255 = vadd.s32 %v2240, 120
          %v2256 = vstv %s2238
          %v2257 = vadd.s32 %v2256, %v2240
          %v2258 = vadd.s32 %v2256, %v2241
          %v2259 = vadd.s32 %v2256, %v2242
          %v2260 = vadd.s32 %v2256, %v2243
          %v2261 = vadd.s32 %v2256, %v2244
          %v2262 = vadd.s32 %v2256, %v2245
          %v2263 = vadd.s32 %v2256, %v2246
          %v2264 = vadd.s32 %v2256, %v2247
          %v2265 = vadd.s32 %v2256, %v2248
          %v2266 = vadd.s32 %v2256, %v2249
          %v2267 = vadd.s32 %v2256, %v2250
          %v2268 = vadd.s32 %v2256, %v2251
          %v2269 = vadd.s32 %v2256, %v2252
          %v2270 = vadd.s32 %v2256, %v2253
          %v2271 = vadd.s32 %v2256, %v2254
          %v2272 = vadd.s32 %v2256, %v2255
          %s2273 = smul.u32 %s29, 128
          %v2274 = vlaneseq
          %v2275 = vand.u32 %v2274, 127
          %v2276 = vstv %s2273
          %v2277 = vadd.s32 %v2276, %v2275
          %vm2278 = vcmp.gt.s32.totalorder %v2277, %v2257
          %vm2279 = vcmp.gt.s32.totalorder %v2277, %v2258
          %vm2280 = vcmp.gt.s32.totalorder %v2277, %v2259
          %vm2281 = vcmp.gt.s32.totalorder %v2277, %v2260
          %vm2282 = vcmp.gt.s32.totalorder %v2277, %v2261
          %vm2283 = vcmp.gt.s32.totalorder %v2277, %v2262
          %vm2284 = vcmp.gt.s32.totalorder %v2277, %v2263
          %vm2285 = vcmp.gt.s32.totalorder %v2277, %v2264
          %vm2286 = vcmp.gt.s32.totalorder %v2277, %v2265
          %vm2287 = vcmp.gt.s32.totalorder %v2277, %v2266
          %vm2288 = vcmp.gt.s32.totalorder %v2277, %v2267
          %vm2289 = vcmp.gt.s32.totalorder %v2277, %v2268
          %vm2290 = vcmp.gt.s32.totalorder %v2277, %v2269
          %vm2291 = vcmp.gt.s32.totalorder %v2277, %v2270
          %vm2292 = vcmp.gt.s32.totalorder %v2277, %v2271
          %vm2293 = vcmp.gt.s32.totalorder %v2277, %v2272
          %v2294 = vadd.f32 %v2160, -5772.9253
          %v2295 = vadd.f32 %v2165, -5772.9253
          %v2296 = vadd.f32 %v2170, -5772.9253
          %v2297 = vadd.f32 %v2175, -5772.9253
          %v2298 = vadd.f32 %v2180, -5772.9253
          %v2299 = vadd.f32 %v2185, -5772.9253
          %v2300 = vadd.f32 %v2190, -5772.9253
          %v2301 = vadd.f32 %v2195, -5772.9253
          %v2302 = vadd.f32 %v2200, -5772.9253
          %v2303 = vadd.f32 %v2205, -5772.9253
          %v2304 = vadd.f32 %v2210, -5772.9253
          %v2305 = vadd.f32 %v2215, -5772.9253
          %v2306 = vadd.f32 %v2220, -5772.9253
          %v2307 = vadd.f32 %v2225, -5772.9253
          %v2308 = vadd.f32 %v2230, -5772.9253
          %v2309 = vadd.f32 %v2235, -5772.9253
          %v2310 = vsel %vm2278, %v2294, %v2160
          %v2311 = vsel %vm2279, %v2295, %v2165
          %v2312 = vsel %vm2280, %v2296, %v2170
          %v2313 = vsel %vm2281, %v2297, %v2175
          %v2314 = vsel %vm2282, %v2298, %v2180
          %v2315 = vsel %vm2283, %v2299, %v2185
          %v2316 = vsel %vm2284, %v2300, %v2190
          %v2317 = vsel %vm2285, %v2301, %v2195
          %v2318 = vsel %vm2286, %v2302, %v2200
          %v2319 = vsel %vm2287, %v2303, %v2205
          %v2320 = vsel %vm2288, %v2304, %v2210
          %v2321 = vsel %vm2289, %v2305, %v2215
          %v2322 = vsel %vm2290, %v2306, %v2220
          %v2323 = vsel %vm2291, %v2307, %v2225
          %v2324 = vsel %vm2292, %v2308, %v2230
          %v2325 = vsel %vm2293, %v2309, %v2235
          %v2326 = vld [vmem:[#allocation3] sm:$0xff]
          %v2327 = vld [vmem:[#allocation3 + $0x8] sm:$0xff]
          %v2328 = vld [vmem:[#allocation3 + $0x10] sm:$0xff]
          %v2329 = vld [vmem:[#allocation3 + $0x18] sm:$0xff]
          %v2330 = vld [vmem:[#allocation3 + $0x20] sm:$0xff]
          %v2331 = vld [vmem:[#allocation3 + $0x28] sm:$0xff]
          %v2332 = vld [vmem:[#allocation3 + $0x30] sm:$0xff]
          %v2333 = vld [vmem:[#allocation3 + $0x38] sm:$0xff]
          %v2334 = vld [vmem:[#allocation3 + $0x40] sm:$0xff]
          %v2335 = vld [vmem:[#allocation3 + $0x48] sm:$0xff]
          %v2336 = vld [vmem:[#allocation3 + $0x50] sm:$0xff]
          %v2337 = vld [vmem:[#allocation3 + $0x58] sm:$0xff]
          %v2338 = vld [vmem:[#allocation3 + $0x60] sm:$0xff]
          %v2339 = vld [vmem:[#allocation3 + $0x68] sm:$0xff]
          %v2340 = vld [vmem:[#allocation3 + $0x70] sm:$0xff]
          %v2341 = vld [vmem:[#allocation3 + $0x78] sm:$0xff]
          %2342 = vmax.xlane.f32.xlu0 %v2310
          %v2343 = vpop.xlane.xlu0 %2342
          %2344 = vmax.xlane.f32.xlu0 %v2311
          %v2345 = vpop.xlane.xlu0 %2344
          %2346 = vmax.xlane.f32.xlu0 %v2312
          %v2347 = vpop.xlane.xlu0 %2346
          %2348 = vmax.xlane.f32.xlu0 %v2313
          %v2349 = vpop.xlane.xlu0 %2348
          %2350 = vmax.xlane.f32.xlu0 %v2314
          %v2351 = vpop.xlane.xlu0 %2350
          %2352 = vmax.xlane.f32.xlu0 %v2315
          %v2353 = vpop.xlane.xlu0 %2352
          %2354 = vmax.xlane.f32.xlu0 %v2316
          %v2355 = vpop.xlane.xlu0 %2354
          %2356 = vmax.xlane.f32.xlu0 %v2317
          %v2357 = vpop.xlane.xlu0 %2356
          %2358 = vmax.xlane.f32.xlu0 %v2318
          %v2359 = vpop.xlane.xlu0 %2358
          %2360 = vmax.xlane.f32.xlu0 %v2319
          %v2361 = vpop.xlane.xlu0 %2360
          %2362 = vmax.xlane.f32.xlu0 %v2320
          %v2363 = vpop.xlane.xlu0 %2362
          %2364 = vmax.xlane.f32.xlu0 %v2321
          %v2365 = vpop.xlane.xlu0 %2364
          %2366 = vmax.xlane.f32.xlu0 %v2322
          %v2367 = vpop.xlane.xlu0 %2366
          %2368 = vmax.xlane.f32.xlu0 %v2323
          %v2369 = vpop.xlane.xlu0 %2368
          %2370 = vmax.xlane.f32.xlu0 %v2324
          %v2371 = vpop.xlane.xlu0 %2370
          %2372 = vmax.xlane.f32.xlu0 %v2325
          %v2373 = vpop.xlane.xlu0 %2372
          %v2374 = vmax.f32 %v2326, %v2343
          %v2375 = vmax.f32 %v2327, %v2345
          %v2376 = vmax.f32 %v2328, %v2347
          %v2377 = vmax.f32 %v2329, %v2349
          %v2378 = vmax.f32 %v2330, %v2351
          %v2379 = vmax.f32 %v2331, %v2353
          %v2380 = vmax.f32 %v2332, %v2355
          %v2381 = vmax.f32 %v2333, %v2357
          %v2382 = vmax.f32 %v2334, %v2359
          %v2383 = vmax.f32 %v2335, %v2361
          %v2384 = vmax.f32 %v2336, %v2363
          %v2385 = vmax.f32 %v2337, %v2365
          %v2386 = vmax.f32 %v2338, %v2367
          %v2387 = vmax.f32 %v2339, %v2369
          %v2388 = vmax.f32 %v2340, %v2371
          %v2389 = vmax.f32 %v2341, %v2373
          %v2390 = vsub.f32 %v2326, %v2374
          %v2391 = vsub.f32 %v2327, %v2375
          %v2392 = vsub.f32 %v2328, %v2376
          %v2393 = vsub.f32 %v2329, %v2377
          %v2394 = vsub.f32 %v2330, %v2378
          %v2395 = vsub.f32 %v2331, %v2379
          %v2396 = vsub.f32 %v2332, %v2380
          %v2397 = vsub.f32 %v2333, %v2381
          %v2398 = vsub.f32 %v2334, %v2382
          %v2399 = vsub.f32 %v2335, %v2383
          %v2400 = vsub.f32 %v2336, %v2384
          %v2401 = vsub.f32 %v2337, %v2385
          %v2402 = vsub.f32 %v2338, %v2386
          %v2403 = vsub.f32 %v2339, %v2387
          %v2404 = vsub.f32 %v2340, %v2388
          %v2405 = vsub.f32 %v2341, %v2389
          %v2406 = vmul.f32 %v2390, 1.442695
          %v2407 = vpow.pop %v2406
          %v2408 = vmul.f32 %v2391, 1.442695
          %v2409 = vpow.pop %v2408
          %v2410 = vmul.f32 %v2392, 1.442695
          %v2411 = vpow.pop %v2410
          %v2412 = vmul.f32 %v2393, 1.442695
          %v2413 = vpow.pop %v2412
          %v2414 = vmul.f32 %v2394, 1.442695
          %v2415 = vpow.pop %v2414
          %v2416 = vmul.f32 %v2395, 1.442695
          %v2417 = vpow.pop %v2416
          %v2418 = vmul.f32 %v2396, 1.442695
          %v2419 = vpow.pop %v2418
          %v2420 = vmul.f32 %v2397, 1.442695
          %v2421 = vpow.pop %v2420
          %v2422 = vmul.f32 %v2398, 1.442695
          %v2423 = vpow.pop %v2422
          %v2424 = vmul.f32 %v2399, 1.442695
          %v2425 = vpow.pop %v2424
          %v2426 = vmul.f32 %v2400, 1.442695
          %v2427 = vpow.pop %v2426
          %v2428 = vmul.f32 %v2401, 1.442695
          %v2429 = vpow.pop %v2428
          %v2430 = vmul.f32 %v2402, 1.442695
          %v2431 = vpow.pop %v2430
          %v2432 = vmul.f32 %v2403, 1.442695
          %v2433 = vpow.pop %v2432
          %v2434 = vmul.f32 %v2404, 1.442695
          %v2435 = vpow.pop %v2434
          %v2436 = vmul.f32 %v2405, 1.442695
          %v2437 = vpow.pop %v2436
          %2439 = vset.pattern.permute.xlu0 0
          %2440 = vperm.xlu0 %2439, %v2374
          %v2441 = vpop.permute.xlu0 %2440
          %2444 = vset.pattern.permute.xlu0 0
          %2445 = vperm.xlu0 %2444, %v2375
          %v2446 = vpop.permute.xlu0 %2445
          %2449 = vset.pattern.permute.xlu0 0
          %2450 = vperm.xlu0 %2449, %v2376
          %v2451 = vpop.permute.xlu0 %2450
          %2454 = vset.pattern.permute.xlu0 0
          %2455 = vperm.xlu0 %2454, %v2377
          %v2456 = vpop.permute.xlu0 %2455
          %2459 = vset.pattern.permute.xlu0 0
          %2460 = vperm.xlu0 %2459, %v2378
          %v2461 = vpop.permute.xlu0 %2460
          %2464 = vset.pattern.permute.xlu0 0
          %2465 = vperm.xlu0 %2464, %v2379
          %v2466 = vpop.permute.xlu0 %2465
          %2469 = vset.pattern.permute.xlu0 0
          %2470 = vperm.xlu0 %2469, %v2380
          %v2471 = vpop.permute.xlu0 %2470
          %2474 = vset.pattern.permute.xlu0 0
          %2475 = vperm.xlu0 %2474, %v2381
          %v2476 = vpop.permute.xlu0 %2475
          %2479 = vset.pattern.permute.xlu0 0
          %2480 = vperm.xlu0 %2479, %v2382
          %v2481 = vpop.permute.xlu0 %2480
          %2484 = vset.pattern.permute.xlu0 0
          %2485 = vperm.xlu0 %2484, %v2383
          %v2486 = vpop.permute.xlu0 %2485
          %2489 = vset.pattern.permute.xlu0 0
          %2490 = vperm.xlu0 %2489, %v2384
          %v2491 = vpop.permute.xlu0 %2490
          %2494 = vset.pattern.permute.xlu0 0
          %2495 = vperm.xlu0 %2494, %v2385
          %v2496 = vpop.permute.xlu0 %2495
          %2499 = vset.pattern.permute.xlu0 0
          %2500 = vperm.xlu0 %2499, %v2386
          %v2501 = vpop.permute.xlu0 %2500
          %2504 = vset.pattern.permute.xlu0 0
          %2505 = vperm.xlu0 %2504, %v2387
          %v2506 = vpop.permute.xlu0 %2505
          %2509 = vset.pattern.permute.xlu0 0
          %2510 = vperm.xlu0 %2509, %v2388
          %v2511 = vpop.permute.xlu0 %2510
          %2514 = vset.pattern.permute.xlu0 0
          %2515 = vperm.xlu0 %2514, %v2389
          %v2516 = vpop.permute.xlu0 %2515
          %v2518 = vsub.f32 %v2310, %v2441
          %v2519 = vsub.f32 %v2311, %v2446
          %v2520 = vsub.f32 %v2312, %v2451
          %v2521 = vsub.f32 %v2313, %v2456
          %v2522 = vsub.f32 %v2314, %v2461
          %v2523 = vsub.f32 %v2315, %v2466
          %v2524 = vsub.f32 %v2316, %v2471
          %v2525 = vsub.f32 %v2317, %v2476
          %v2526 = vsub.f32 %v2318, %v2481
          %v2527 = vsub.f32 %v2319, %v2486
          %v2528 = vsub.f32 %v2320, %v2491
          %v2529 = vsub.f32 %v2321, %v2496
          %v2530 = vsub.f32 %v2322, %v2501
          %v2531 = vsub.f32 %v2323, %v2506
          %v2532 = vsub.f32 %v2324, %v2511
          %v2533 = vsub.f32 %v2325, %v2516
          %v2534 = vmul.f32 %v2518, 1.442695
          %v2535 = vpow.pop %v2534
          %v2536 = vmul.f32 %v2519, 1.442695
          %v2537 = vpow.pop %v2536
          %v2538 = vmul.f32 %v2520, 1.442695
          %v2539 = vpow.pop %v2538
          %v2540 = vmul.f32 %v2521, 1.442695
          %v2541 = vpow.pop %v2540
          %v2542 = vmul.f32 %v2522, 1.442695
          %v2543 = vpow.pop %v2542
          %v2544 = vmul.f32 %v2523, 1.442695
          %v2545 = vpow.pop %v2544
          %v2546 = vmul.f32 %v2524, 1.442695
          %v2547 = vpow.pop %v2546
          %v2548 = vmul.f32 %v2525, 1.442695
          %v2549 = vpow.pop %v2548
          %v2550 = vmul.f32 %v2526, 1.442695
          %v2551 = vpow.pop %v2550
          %v2552 = vmul.f32 %v2527, 1.442695
          %v2553 = vpow.pop %v2552
          %v2554 = vmul.f32 %v2528, 1.442695
          %v2555 = vpow.pop %v2554
          %v2556 = vmul.f32 %v2529, 1.442695
          %v2557 = vpow.pop %v2556
          %v2558 = vmul.f32 %v2530, 1.442695
          %v2559 = vpow.pop %v2558
          %v2560 = vmul.f32 %v2531, 1.442695
          %v2561 = vpow.pop %v2560
          %v2562 = vmul.f32 %v2532, 1.442695
          %v2563 = vpow.pop %v2562
          %v2564 = vmul.f32 %v2533, 1.442695
          %v2565 = vpow.pop %v2564
          %v2566 = vld [vmem:[#allocation4] sm:$0xff]
          %v2567 = vld [vmem:[#allocation4 + $0x8] sm:$0xff]
          %v2568 = vld [vmem:[#allocation4 + $0x10] sm:$0xff]
          %v2569 = vld [vmem:[#allocation4 + $0x18] sm:$0xff]
          %v2570 = vld [vmem:[#allocation4 + $0x20] sm:$0xff]
          %v2571 = vld [vmem:[#allocation4 + $0x28] sm:$0xff]
          %v2572 = vld [vmem:[#allocation4 + $0x30] sm:$0xff]
          %v2573 = vld [vmem:[#allocation4 + $0x38] sm:$0xff]
          %v2574 = vld [vmem:[#allocation4 + $0x40] sm:$0xff]
          %v2575 = vld [vmem:[#allocation4 + $0x48] sm:$0xff]
          %v2576 = vld [vmem:[#allocation4 + $0x50] sm:$0xff]
          %v2577 = vld [vmem:[#allocation4 + $0x58] sm:$0xff]
          %v2578 = vld [vmem:[#allocation4 + $0x60] sm:$0xff]
          %v2579 = vld [vmem:[#allocation4 + $0x68] sm:$0xff]
          %v2580 = vld [vmem:[#allocation4 + $0x70] sm:$0xff]
          %v2581 = vld [vmem:[#allocation4 + $0x78] sm:$0xff]
          %v2582 = vmul.f32 %v2407, %v2566
          %v2583 = vmul.f32 %v2409, %v2567
          %v2584 = vmul.f32 %v2411, %v2568
          %v2585 = vmul.f32 %v2413, %v2569
          %v2586 = vmul.f32 %v2415, %v2570
          %v2587 = vmul.f32 %v2417, %v2571
          %v2588 = vmul.f32 %v2419, %v2572
          %v2589 = vmul.f32 %v2421, %v2573
          %v2590 = vmul.f32 %v2423, %v2574
          %v2591 = vmul.f32 %v2425, %v2575
          %v2592 = vmul.f32 %v2427, %v2576
          %v2593 = vmul.f32 %v2429, %v2577
          %v2594 = vmul.f32 %v2431, %v2578
          %v2595 = vmul.f32 %v2433, %v2579
          %v2596 = vmul.f32 %v2435, %v2580
          %v2597 = vmul.f32 %v2437, %v2581
          %2598 = vadd.xlane.f32.xlu0 %v2535
          %v2599 = vpop.xlane.xlu0 %2598
          %2600 = vadd.xlane.f32.xlu0 %v2537
          %v2601 = vpop.xlane.xlu0 %2600
          %2602 = vadd.xlane.f32.xlu0 %v2539
          %v2603 = vpop.xlane.xlu0 %2602
          %2604 = vadd.xlane.f32.xlu0 %v2541
          %v2605 = vpop.xlane.xlu0 %2604
          %2606 = vadd.xlane.f32.xlu0 %v2543
          %v2607 = vpop.xlane.xlu0 %2606
          %2608 = vadd.xlane.f32.xlu0 %v2545
          %v2609 = vpop.xlane.xlu0 %2608
          %2610 = vadd.xlane.f32.xlu0 %v2547
          %v2611 = vpop.xlane.xlu0 %2610
          %2612 = vadd.xlane.f32.xlu0 %v2549
          %v2613 = vpop.xlane.xlu0 %2612
          %2614 = vadd.xlane.f32.xlu0 %v2551
          %v2615 = vpop.xlane.xlu0 %2614
          %2616 = vadd.xlane.f32.xlu0 %v2553
          %v2617 = vpop.xlane.xlu0 %2616
          %2618 = vadd.xlane.f32.xlu0 %v2555
          %v2619 = vpop.xlane.xlu0 %2618
          %2620 = vadd.xlane.f32.xlu0 %v2557
          %v2621 = vpop.xlane.xlu0 %2620
          %2622 = vadd.xlane.f32.xlu0 %v2559
          %v2623 = vpop.xlane.xlu0 %2622
          %2624 = vadd.xlane.f32.xlu0 %v2561
          %v2625 = vpop.xlane.xlu0 %2624
          %2626 = vadd.xlane.f32.xlu0 %v2563
          %v2627 = vpop.xlane.xlu0 %2626
          %2628 = vadd.xlane.f32.xlu0 %v2565
          %v2629 = vpop.xlane.xlu0 %2628
          %v2630 = vadd.f32 %v2582, %v2599
          %v2631 = vadd.f32 %v2583, %v2601
          %v2632 = vadd.f32 %v2584, %v2603
          %v2633 = vadd.f32 %v2585, %v2605
          %v2634 = vadd.f32 %v2586, %v2607
          %v2635 = vadd.f32 %v2587, %v2609
          %v2636 = vadd.f32 %v2588, %v2611
          %v2637 = vadd.f32 %v2589, %v2613
          %v2638 = vadd.f32 %v2590, %v2615
          %v2639 = vadd.f32 %v2591, %v2617
          %v2640 = vadd.f32 %v2592, %v2619
          %v2641 = vadd.f32 %v2593, %v2621
          %v2642 = vadd.f32 %v2594, %v2623
          %v2643 = vadd.f32 %v2595, %v2625
          %v2644 = vadd.f32 %v2596, %v2627
          %v2645 = vadd.f32 %v2597, %v2629
          %vm2646 = vcmask 7168
          %2647 = vst.msk [vmem:[#allocation4] sm:$0xff] %vm2646, %v2630
          %2648 = vst.msk [vmem:[#allocation4 + $0x8] sm:$0xff] %vm2646, %v2631
          %2649 = vst.msk [vmem:[#allocation4 + $0x10] sm:$0xff] %vm2646, %v2632
          %2650 = vst.msk [vmem:[#allocation4 + $0x18] sm:$0xff] %vm2646, %v2633
          %2651 = vst.msk [vmem:[#allocation4 + $0x20] sm:$0xff] %vm2646, %v2634
          %2652 = vst.msk [vmem:[#allocation4 + $0x28] sm:$0xff] %vm2646, %v2635
          %2653 = vst.msk [vmem:[#allocation4 + $0x30] sm:$0xff] %vm2646, %v2636
          %2654 = vst.msk [vmem:[#allocation4 + $0x38] sm:$0xff] %vm2646, %v2637
          %2655 = vst.msk [vmem:[#allocation4 + $0x40] sm:$0xff] %vm2646, %v2638
          %2656 = vst.msk [vmem:[#allocation4 + $0x48] sm:$0xff] %vm2646, %v2639
          %2657 = vst.msk [vmem:[#allocation4 + $0x50] sm:$0xff] %vm2646, %v2640
          %2658 = vst.msk [vmem:[#allocation4 + $0x58] sm:$0xff] %vm2646, %v2641
          %2659 = vst.msk [vmem:[#allocation4 + $0x60] sm:$0xff] %vm2646, %v2642
          %2660 = vst.msk [vmem:[#allocation4 + $0x68] sm:$0xff] %vm2646, %v2643
          %2661 = vst.msk [vmem:[#allocation4 + $0x70] sm:$0xff] %vm2646, %v2644
          %2662 = vst.msk [vmem:[#allocation4 + $0x78] sm:$0xff] %vm2646, %v2645
          %v2663 = vld [vmem:[#allocation5] sm:$0xff]
          %v2664 = vld [vmem:[#allocation5 + $0x8] sm:$0xff]
          %v2665 = vld [vmem:[#allocation5 + $0x10] sm:$0xff]
          %v2666 = vld [vmem:[#allocation5 + $0x18] sm:$0xff]
          %v2667 = vld [vmem:[#allocation5 + $0x20] sm:$0xff]
          %v2668 = vld [vmem:[#allocation5 + $0x28] sm:$0xff]
          %v2669 = vld [vmem:[#allocation5 + $0x30] sm:$0xff]
          %v2670 = vld [vmem:[#allocation5 + $0x38] sm:$0xff]
          %v2671 = vld [vmem:[#allocation5 + $0x40] sm:$0xff]
          %v2672 = vld [vmem:[#allocation5 + $0x48] sm:$0xff]
          %v2673 = vld [vmem:[#allocation5 + $0x50] sm:$0xff]
          %v2674 = vld [vmem:[#allocation5 + $0x58] sm:$0xff]
          %v2675 = vld [vmem:[#allocation5 + $0x60] sm:$0xff]
          %v2676 = vld [vmem:[#allocation5 + $0x68] sm:$0xff]
          %v2677 = vld [vmem:[#allocation5 + $0x70] sm:$0xff]
          %v2678 = vld [vmem:[#allocation5 + $0x78] sm:$0xff]
          %2680 = vset.pattern.permute.xlu0 0
          %2681 = vperm.xlu0 %2680, %v2407
          %v2682 = vpop.permute.xlu0 %2681
          %2685 = vset.pattern.permute.xlu0 0
          %2686 = vperm.xlu0 %2685, %v2409
          %v2687 = vpop.permute.xlu0 %2686
          %2690 = vset.pattern.permute.xlu0 0
          %2691 = vperm.xlu0 %2690, %v2411
          %v2692 = vpop.permute.xlu0 %2691
          %2695 = vset.pattern.permute.xlu0 0
          %2696 = vperm.xlu0 %2695, %v2413
          %v2697 = vpop.permute.xlu0 %2696
          %2700 = vset.pattern.permute.xlu0 0
          %2701 = vperm.xlu0 %2700, %v2415
          %v2702 = vpop.permute.xlu0 %2701
          %2705 = vset.pattern.permute.xlu0 0
          %2706 = vperm.xlu0 %2705, %v2417
          %v2707 = vpop.permute.xlu0 %2706
          %2710 = vset.pattern.permute.xlu0 0
          %2711 = vperm.xlu0 %2710, %v2419
          %v2712 = vpop.permute.xlu0 %2711
          %2715 = vset.pattern.permute.xlu0 0
          %2716 = vperm.xlu0 %2715, %v2421
          %v2717 = vpop.permute.xlu0 %2716
          %2720 = vset.pattern.permute.xlu0 0
          %2721 = vperm.xlu0 %2720, %v2423
          %v2722 = vpop.permute.xlu0 %2721
          %2725 = vset.pattern.permute.xlu0 0
          %2726 = vperm.xlu0 %2725, %v2425
          %v2727 = vpop.permute.xlu0 %2726
          %2730 = vset.pattern.permute.xlu0 0
          %2731 = vperm.xlu0 %2730, %v2427
          %v2732 = vpop.permute.xlu0 %2731
          %2735 = vset.pattern.permute.xlu0 0
          %2736 = vperm.xlu0 %2735, %v2429
          %v2737 = vpop.permute.xlu0 %2736
          %2740 = vset.pattern.permute.xlu0 0
          %2741 = vperm.xlu0 %2740, %v2431
          %v2742 = vpop.permute.xlu0 %2741
          %2745 = vset.pattern.permute.xlu0 0
          %2746 = vperm.xlu0 %2745, %v2433
          %v2747 = vpop.permute.xlu0 %2746
          %2750 = vset.pattern.permute.xlu0 0
          %2751 = vperm.xlu0 %2750, %v2435
          %v2752 = vpop.permute.xlu0 %2751
          %2755 = vset.pattern.permute.xlu0 0
          %2756 = vperm.xlu0 %2755, %v2437
          %v2757 = vpop.permute.xlu0 %2756
          %v2759 = vmul.f32 %v2682, %v2663
          %v2760 = vmul.f32 %v2687, %v2664
          %v2761 = vmul.f32 %v2692, %v2665
          %v2762 = vmul.f32 %v2697, %v2666
          %v2763 = vmul.f32 %v2702, %v2667
          %v2764 = vmul.f32 %v2707, %v2668
          %v2765 = vmul.f32 %v2712, %v2669
          %v2766 = vmul.f32 %v2717, %v2670
          %v2767 = vmul.f32 %v2722, %v2671
          %v2768 = vmul.f32 %v2727, %v2672
          %v2769 = vmul.f32 %v2732, %v2673
          %v2770 = vmul.f32 %v2737, %v2674
          %v2771 = vmul.f32 %v2742, %v2675
          %v2772 = vmul.f32 %v2747, %v2676
          %v2773 = vmul.f32 %v2752, %v2677
          %v2774 = vmul.f32 %v2757, %v2678
          %2775 = vmatprep.subr.mxu0 0.0
          %2776 = vmatpush1.msra.mxu0 %v1999
          %2777 = vmatprep.subr.mxu0 0.0
          %2778 = vmatpush1.msra.mxu0 %v2004
          %2779 = vmatprep.subr.mxu0 0.0
          %2780 = vmatpush1.msra.mxu0 %v2009
          %2781 = vmatprep.subr.mxu0 0.0
          %2782 = vmatpush1.msra.mxu0 %v2014
          %2783 = vmatprep.subr.mxu0 0.0
          %2784 = vmatpush1.msra.mxu0 %v2019
          %2785 = vmatprep.subr.mxu0 0.0
          %2786 = vmatpush1.msra.mxu0 %v2024
          %2787 = vmatprep.subr.mxu0 0.0
          %2788 = vmatpush1.msra.mxu0 %v2029
          %2789 = vmatprep.subr.mxu0 0.0
          %2790 = vmatpush1.msra.mxu0 %v2034
          %2791 = vmatprep.subr.mxu0 0.0
          %2792 = vmatpush1.msra.mxu0 %v2039
          %2793 = vmatprep.subr.mxu0 0.0
          %2794 = vmatpush1.msra.mxu0 %v2044
          %2795 = vmatprep.subr.mxu0 0.0
          %2796 = vmatpush1.msra.mxu0 %v2049
          %2797 = vmatprep.subr.mxu0 0.0
          %2798 = vmatpush1.msra.mxu0 %v2054
          %2799 = vmatprep.subr.mxu0 0.0
          %2800 = vmatpush1.msra.mxu0 %v2059
          %2801 = vmatprep.subr.mxu0 0.0
          %2802 = vmatpush1.msra.mxu0 %v2064
          %2803 = vmatprep.subr.mxu0 0.0
          %2804 = vmatpush1.msra.mxu0 %v2069
          %2805 = vmatprep.subr.mxu0 0.0
          %2806 = vmatpush1.msra.mxu0 %v2074
          %2807 = vmatprep.subr.mxu0 0.0
          %2808 = vmatpush1.msra.mxu0 0.0
          %2809 = vmatprep.subr.mxu0 0.0
          %2810 = vmatpush1.msra.mxu0 0.0
          %2811 = vmatprep.subr.mxu0 0.0
          %2812 = vmatpush1.msra.mxu0 0.0
          %2813 = vmatprep.subr.mxu0 0.0
          %2814 = vmatpush1.msra.mxu0 0.0
          %2815 = vmatprep.subr.mxu0 0.0
          %2816 = vmatpush1.msra.mxu0 0.0
          %2817 = vmatprep.subr.mxu0 0.0
          %2818 = vmatpush1.msra.mxu0 0.0
          %2819 = vmatprep.subr.mxu0 0.0
          %2820 = vmatpush1.msra.mxu0 0.0
          %2821 = vmatprep.subr.mxu0 0.0
          %2822 = vmatpush1.msra.mxu0 0.0
          %2823 = vmatprep.subr.mxu0 0.0
          %2824 = vmatpush1.msra.mxu0 0.0
          %2825 = vmatprep.subr.mxu0 0.0
          %2826 = vmatpush1.msra.mxu0 0.0
          %2827 = vmatprep.subr.mxu0 0.0
          %2828 = vmatpush1.msra.mxu0 0.0
          %2829 = vmatprep.subr.mxu0 0.0
          %2830 = vmatpush1.msra.mxu0 0.0
          %2831 = vmatprep.subr.mxu0 0.0
          %2832 = vmatpush1.msra.mxu0 0.0
          %2833 = vmatprep.subr.mxu0 0.0
          %2834 = vmatpush1.msra.mxu0 0.0
          %2835 = vmatprep.subr.mxu0 0.0
          %2836 = vmatpush1.msra.mxu0 0.0
          %2837 = vmatprep.subr.mxu0 0.0
          %2838 = vmatpush1.msra.mxu0 0.0
          %2839 = vmatprep.mubr.f32.mxu0 0.0
          %2840 = vmatmul.mubr.f32.gmra.mrb[0].mxu0 %v2535
          %v2841 = vpop.f32.mrb[0].mxu0
          %v2842 = vadd.f32 0.0, %v2841
          %v2843 = vpop.f32.mrb[0].mxu0
          %2844 = vmatprep.mubr.f32.mxu0 0.0
          %2845 = vmatmul.mubr.f32.gmra.mrb[0].mxu0 %v2537
          %v2846 = vpop.f32.mrb[0].mxu0
          %v2847 = vadd.f32 0.0, %v2846
          %v2848 = vpop.f32.mrb[0].mxu0
          %2849 = vmatprep.mubr.f32.mxu0 0.0
          %2850 = vmatmul.mubr.f32.gmra.mrb[0].mxu0 %v2539
          %v2851 = vpop.f32.mrb[0].mxu0
          %v2852 = vadd.f32 0.0, %v2851
          %v2853 = vpop.f32.mrb[0].mxu0
          %2854 = vmatprep.mubr.f32.mxu0 0.0
          %2855 = vmatmul.mubr.f32.gmra.mrb[0].mxu0 %v2541
          %v2856 = vpop.f32.mrb[0].mxu0
          %v2857 = vadd.f32 0.0, %v2856
          %v2858 = vpop.f32.mrb[0].mxu0
          %2859 = vmatprep.mubr.f32.mxu0 0.0
          %2860 = vmatmul.mubr.f32.gmra.mrb[0].mxu0 %v2543
          %v2861 = vpop.f32.mrb[0].mxu0
          %v2862 = vadd.f32 0.0, %v2861
          %v2863 = vpop.f32.mrb[0].mxu0
          %2864 = vmatprep.mubr.f32.mxu0 0.0
          %2865 = vmatmul.mubr.f32.gmra.mrb[0].mxu0 %v2545
          %v2866 = vpop.f32.mrb[0].mxu0
          %v2867 = vadd.f32 0.0, %v2866
          %v2868 = vpop.f32.mrb[0].mxu0
          %2869 = vmatprep.mubr.f32.mxu0 0.0
          %2870 = vmatmul.mubr.f32.gmra.mrb[0].mxu0 %v2547
          %v2871 = vpop.f32.mrb[0].mxu0
          %v2872 = vadd.f32 0.0, %v2871
          %v2873 = vpop.f32.mrb[0].mxu0
          %2874 = vmatprep.mubr.f32.mxu0 0.0
          %2875 = vmatmul.mubr.f32.gmra.mrb[0].mxu0 %v2549
          %v2876 = vpop.f32.mrb[0].mxu0
          %v2877 = vadd.f32 0.0, %v2876
          %v2878 = vpop.f32.mrb[0].mxu0
          %2879 = vmatprep.mubr.f32.mxu0 0.0
          %2880 = vmatmul.mubr.f32.gmra.mrb[0].mxu0 %v2551
          %v2881 = vpop.f32.mrb[0].mxu0
          %v2882 = vadd.f32 0.0, %v2881
          %v2883 = vpop.f32.mrb[0].mxu0
          %2884 = vmatprep.mubr.f32.mxu0 0.0
          %2885 = vmatmul.mubr.f32.gmra.mrb[0].mxu0 %v2553
          %v2886 = vpop.f32.mrb[0].mxu0
          %v2887 = vadd.f32 0.0, %v2886
          %v2888 = vpop.f32.mrb[0].mxu0
          %2889 = vmatprep.mubr.f32.mxu0 0.0
          %2890 = vmatmul.mubr.f32.gmra.mrb[0].mxu0 %v2555
          %v2891 = vpop.f32.mrb[0].mxu0
          %v2892 = vadd.f32 0.0, %v2891
          %v2893 = vpop.f32.mrb[0].mxu0
          %2894 = vmatprep.mubr.f32.mxu0 0.0
          %2895 = vmatmul.mubr.f32.gmra.mrb[0].mxu0 %v2557
          %v2896 = vpop.f32.mrb[0].mxu0
          %v2897 = vadd.f32 0.0, %v2896
          %v2898 = vpop.f32.mrb[0].mxu0
          %2899 = vmatprep.mubr.f32.mxu0 0.0
          %2900 = vmatmul.mubr.f32.gmra.mrb[0].mxu0 %v2559
          %v2901 = vpop.f32.mrb[0].mxu0
          %v2902 = vadd.f32 0.0, %v2901
          %v2903 = vpop.f32.mrb[0].mxu0
          %2904 = vmatprep.mubr.f32.mxu0 0.0
          %2905 = vmatmul.mubr.f32.gmra.mrb[0].mxu0 %v2561
          %v2906 = vpop.f32.mrb[0].mxu0
          %v2907 = vadd.f32 0.0, %v2906
          %v2908 = vpop.f32.mrb[0].mxu0
          %2909 = vmatprep.mubr.f32.mxu0 0.0
          %2910 = vmatmul.mubr.f32.gmra.mrb[0].mxu0 %v2563
          %v2911 = vpop.f32.mrb[0].mxu0
          %v2912 = vadd.f32 0.0, %v2911
          %v2913 = vpop.f32.mrb[0].mxu0
          %2914 = vmatprep.mubr.f32.mxu0 0.0
          %2915 = vmatmul.mubr.f32.gmra.mrb[0].mxu0 %v2565
          %v2916 = vpop.f32.mrb[0].mxu0
          %v2917 = vadd.f32 0.0, %v2916
          %v2918 = vpop.f32.mrb[0].mxu0
          %2919 = vdwg.mxu0
          %v2920 = vadd.f32 %v2759, %v2842
          %v2921 = vadd.f32 %v2760, %v2847
          %v2922 = vadd.f32 %v2761, %v2852
          %v2923 = vadd.f32 %v2762, %v2857
          %v2924 = vadd.f32 %v2763, %v2862
          %v2925 = vadd.f32 %v2764, %v2867
          %v2926 = vadd.f32 %v2765, %v2872
          %v2927 = vadd.f32 %v2766, %v2877
          %v2928 = vadd.f32 %v2767, %v2882
          %v2929 = vadd.f32 %v2768, %v2887
          %v2930 = vadd.f32 %v2769, %v2892
          %v2931 = vadd.f32 %v2770, %v2897
          %v2932 = vadd.f32 %v2771, %v2902
          %v2933 = vadd.f32 %v2772, %v2907
          %v2934 = vadd.f32 %v2773, %v2912
          %v2935 = vadd.f32 %v2774, %v2917
          %2936 = vst [vmem:[#allocation5] sm:$0xff] %v2920
          %2937 = vst [vmem:[#allocation5 + $0x8] sm:$0xff] %v2921
          %2938 = vst [vmem:[#allocation5 + $0x10] sm:$0xff] %v2922
          %2939 = vst [vmem:[#allocation5 + $0x18] sm:$0xff] %v2923
          %2940 = vst [vmem:[#allocation5 + $0x20] sm:$0xff] %v2924
          %2941 = vst [vmem:[#allocation5 + $0x28] sm:$0xff] %v2925
          %2942 = vst [vmem:[#allocation5 + $0x30] sm:$0xff] %v2926
          %2943 = vst [vmem:[#allocation5 + $0x38] sm:$0xff] %v2927
          %2944 = vst [vmem:[#allocation5 + $0x40] sm:$0xff] %v2928
          %2945 = vst [vmem:[#allocation5 + $0x48] sm:$0xff] %v2929
          %2946 = vst [vmem:[#allocation5 + $0x50] sm:$0xff] %v2930
          %2947 = vst [vmem:[#allocation5 + $0x58] sm:$0xff] %v2931
          %2948 = vst [vmem:[#allocation5 + $0x60] sm:$0xff] %v2932
          %2949 = vst [vmem:[#allocation5 + $0x68] sm:$0xff] %v2933
          %2950 = vst [vmem:[#allocation5 + $0x70] sm:$0xff] %v2934
          %2951 = vst [vmem:[#allocation5 + $0x78] sm:$0xff] %v2935
          %2952 = vst.msk [vmem:[#allocation3] sm:$0xff] %vm2646, %v2374
          %2953 = vst.msk [vmem:[#allocation3 + $0x8] sm:$0xff] %vm2646, %v2375
          %2954 = vst.msk [vmem:[#allocation3 + $0x10] sm:$0xff] %vm2646, %v2376
          %2955 = vst.msk [vmem:[#allocation3 + $0x18] sm:$0xff] %vm2646, %v2377
          %2956 = vst.msk [vmem:[#allocation3 + $0x20] sm:$0xff] %vm2646, %v2378
          %2957 = vst.msk [vmem:[#allocation3 + $0x28] sm:$0xff] %vm2646, %v2379
          %2958 = vst.msk [vmem:[#allocation3 + $0x30] sm:$0xff] %vm2646, %v2380
          %2959 = vst.msk [vmem:[#allocation3 + $0x38] sm:$0xff] %vm2646, %v2381
          %2960 = vst.msk [vmem:[#allocation3 + $0x40] sm:$0xff] %vm2646, %v2382
          %2961 = vst.msk [vmem:[#allocation3 + $0x48] sm:$0xff] %vm2646, %v2383
          %2962 = vst.msk [vmem:[#allocation3 + $0x50] sm:$0xff] %vm2646, %v2384
          %2963 = vst.msk [vmem:[#allocation3 + $0x58] sm:$0xff] %vm2646, %v2385
          %2964 = vst.msk [vmem:[#allocation3 + $0x60] sm:$0xff] %vm2646, %v2386
          %2965 = vst.msk [vmem:[#allocation3 + $0x68] sm:$0xff] %vm2646, %v2387
          %2966 = vst.msk [vmem:[#allocation3 + $0x70] sm:$0xff] %vm2646, %v2388
          %2967 = vst.msk [vmem:[#allocation3 + $0x78] sm:$0xff] %vm2646, %v2389
        $region60: #{tpu_custom_call.1} parent=35 // pred_fallthru
          _
        %p2968 = scmp.eq.s32.totalorder %s29, 1
        // Predicated region
        $region61: #{tpu_custom_call.1} parent=35 // pred_check
          %p2969 = pneg %p2968
        $region62: #{tpu_custom_call.1} parent=35 // pred_check_branch
          %2971 = sbr.rel (%p2969) target = $region64
        $region63: #{tpu_custom_call.1} parent=35 // pred_region
          %v2972 = vld [vmem:[#allocation5] sm:$0xff]
          %v2973 = vld [vmem:[#allocation5 + $0x8] sm:$0xff]
          %v2974 = vld [vmem:[#allocation5 + $0x10] sm:$0xff]
          %v2975 = vld [vmem:[#allocation5 + $0x18] sm:$0xff]
          %v2976 = vld [vmem:[#allocation5 + $0x20] sm:$0xff]
          %v2977 = vld [vmem:[#allocation5 + $0x28] sm:$0xff]
          %v2978 = vld [vmem:[#allocation5 + $0x30] sm:$0xff]
          %v2979 = vld [vmem:[#allocation5 + $0x38] sm:$0xff]
          %v2980 = vld [vmem:[#allocation5 + $0x40] sm:$0xff]
          %v2981 = vld [vmem:[#allocation5 + $0x48] sm:$0xff]
          %v2982 = vld [vmem:[#allocation5 + $0x50] sm:$0xff]
          %v2983 = vld [vmem:[#allocation5 + $0x58] sm:$0xff]
          %v2984 = vld [vmem:[#allocation5 + $0x60] sm:$0xff]
          %v2985 = vld [vmem:[#allocation5 + $0x68] sm:$0xff]
          %v2986 = vld [vmem:[#allocation5 + $0x70] sm:$0xff]
          %v2987 = vld [vmem:[#allocation5 + $0x78] sm:$0xff]
          %v2988 = vld [vmem:[#allocation4] sm:$0xff]
          %v2989 = vld [vmem:[#allocation4 + $0x8] sm:$0xff]
          %v2990 = vld [vmem:[#allocation4 + $0x10] sm:$0xff]
          %v2991 = vld [vmem:[#allocation4 + $0x18] sm:$0xff]
          %v2992 = vld [vmem:[#allocation4 + $0x20] sm:$0xff]
          %v2993 = vld [vmem:[#allocation4 + $0x28] sm:$0xff]
          %v2994 = vld [vmem:[#allocation4 + $0x30] sm:$0xff]
          %v2995 = vld [vmem:[#allocation4 + $0x38] sm:$0xff]
          %v2996 = vld [vmem:[#allocation4 + $0x40] sm:$0xff]
          %v2997 = vld [vmem:[#allocation4 + $0x48] sm:$0xff]
          %v2998 = vld [vmem:[#allocation4 + $0x50] sm:$0xff]
          %v2999 = vld [vmem:[#allocation4 + $0x58] sm:$0xff]
          %v3000 = vld [vmem:[#allocation4 + $0x60] sm:$0xff]
          %v3001 = vld [vmem:[#allocation4 + $0x68] sm:$0xff]
          %v3002 = vld [vmem:[#allocation4 + $0x70] sm:$0xff]
          %v3003 = vld [vmem:[#allocation4 + $0x78] sm:$0xff]
          %3005 = vset.pattern.permute.xlu0 0
          %3006 = vperm.xlu0 %3005, %v2988
          %v3007 = vpop.permute.xlu0 %3006
          %3010 = vset.pattern.permute.xlu0 0
          %3011 = vperm.xlu0 %3010, %v2989
          %v3012 = vpop.permute.xlu0 %3011
          %3015 = vset.pattern.permute.xlu0 0
          %3016 = vperm.xlu0 %3015, %v2990
          %v3017 = vpop.permute.xlu0 %3016
          %3020 = vset.pattern.permute.xlu0 0
          %3021 = vperm.xlu0 %3020, %v2991
          %v3022 = vpop.permute.xlu0 %3021
          %3025 = vset.pattern.permute.xlu0 0
          %3026 = vperm.xlu0 %3025, %v2992
          %v3027 = vpop.permute.xlu0 %3026
          %3030 = vset.pattern.permute.xlu0 0
          %3031 = vperm.xlu0 %3030, %v2993
          %v3032 = vpop.permute.xlu0 %3031
          %3035 = vset.pattern.permute.xlu0 0
          %3036 = vperm.xlu0 %3035, %v2994
          %v3037 = vpop.permute.xlu0 %3036
          %3040 = vset.pattern.permute.xlu0 0
          %3041 = vperm.xlu0 %3040, %v2995
          %v3042 = vpop.permute.xlu0 %3041
          %3045 = vset.pattern.permute.xlu0 0
          %3046 = vperm.xlu0 %3045, %v2996
          %v3047 = vpop.permute.xlu0 %3046
          %3050 = vset.pattern.permute.xlu0 0
          %3051 = vperm.xlu0 %3050, %v2997
          %v3052 = vpop.permute.xlu0 %3051
          %3055 = vset.pattern.permute.xlu0 0
          %3056 = vperm.xlu0 %3055, %v2998
          %v3057 = vpop.permute.xlu0 %3056
          %3060 = vset.pattern.permute.xlu0 0
          %3061 = vperm.xlu0 %3060, %v2999
          %v3062 = vpop.permute.xlu0 %3061
          %3065 = vset.pattern.permute.xlu0 0
          %3066 = vperm.xlu0 %3065, %v3000
          %v3067 = vpop.permute.xlu0 %3066
          %3070 = vset.pattern.permute.xlu0 0
          %3071 = vperm.xlu0 %3070, %v3001
          %v3072 = vpop.permute.xlu0 %3071
          %3075 = vset.pattern.permute.xlu0 0
          %3076 = vperm.xlu0 %3075, %v3002
          %v3077 = vpop.permute.xlu0 %3076
          %3080 = vset.pattern.permute.xlu0 0
          %3081 = vperm.xlu0 %3080, %v3003
          %v3082 = vpop.permute.xlu0 %3081
          %v3084 = vrcp.pop %v3007
          %v3085 = vmul.f32 %v2972, %v3084
          %v3086 = vrcp.pop %v3012
          %v3087 = vmul.f32 %v2973, %v3086
          %v3088 = vrcp.pop %v3017
          %v3089 = vmul.f32 %v2974, %v3088
          %v3090 = vrcp.pop %v3022
          %v3091 = vmul.f32 %v2975, %v3090
          %v3092 = vrcp.pop %v3027
          %v3093 = vmul.f32 %v2976, %v3092
          %v3094 = vrcp.pop %v3032
          %v3095 = vmul.f32 %v2977, %v3094
          %v3096 = vrcp.pop %v3037
          %v3097 = vmul.f32 %v2978, %v3096
          %v3098 = vrcp.pop %v3042
          %v3099 = vmul.f32 %v2979, %v3098
          %v3100 = vrcp.pop %v3047
          %v3101 = vmul.f32 %v2980, %v3100
          %v3102 = vrcp.pop %v3052
          %v3103 = vmul.f32 %v2981, %v3102
          %v3104 = vrcp.pop %v3057
          %v3105 = vmul.f32 %v2982, %v3104
          %v3106 = vrcp.pop %v3062
          %v3107 = vmul.f32 %v2983, %v3106
          %v3108 = vrcp.pop %v3067
          %v3109 = vmul.f32 %v2984, %v3108
          %v3110 = vrcp.pop %v3072
          %v3111 = vmul.f32 %v2985, %v3110
          %v3112 = vrcp.pop %v3077
          %v3113 = vmul.f32 %v2986, %v3112
          %v3114 = vrcp.pop %v3082
          %v3115 = vmul.f32 %v2987, %v3114
          %3116 = vst [vmem:[%s287] sm:$0xff] %v3085
          %3117 = vst [vmem:[%s287 + $0x8] sm:$0xff] %v3087
          %3118 = vst [vmem:[%s287 + $0x10] sm:$0xff] %v3089
          %3119 = vst [vmem:[%s287 + $0x18] sm:$0xff] %v3091
          %3120 = vst [vmem:[%s287 + $0x20] sm:$0xff] %v3093
          %3121 = vst [vmem:[%s287 + $0x28] sm:$0xff] %v3095
          %3122 = vst [vmem:[%s287 + $0x30] sm:$0xff] %v3097
          %3123 = vst [vmem:[%s287 + $0x38] sm:$0xff] %v3099
          %3124 = vst [vmem:[%s287 + $0x40] sm:$0xff] %v3101
          %3125 = vst [vmem:[%s287 + $0x48] sm:$0xff] %v3103
          %3126 = vst [vmem:[%s287 + $0x50] sm:$0xff] %v3105
          %3127 = vst [vmem:[%s287 + $0x58] sm:$0xff] %v3107
          %3128 = vst [vmem:[%s287 + $0x60] sm:$0xff] %v3109
          %3129 = vst [vmem:[%s287 + $0x68] sm:$0xff] %v3111
          %3130 = vst [vmem:[%s287 + $0x70] sm:$0xff] %v3113
          %3131 = vst [vmem:[%s287 + $0x78] sm:$0xff] %v3115
        $region64: #{tpu_custom_call.1} parent=35 // pred_fallthru
          _
        %s3132 = sand.u32 %s142, 1
        %s3133 = scalar_lea.sflag [#allocation8], %s3132
        %s3134 = sand.u32 %s142, 1
        %s3135 = smul.addr %s3134, 128
        %s3136 = scalar_lea.vmem [#allocation12], %s3135
        // Predicated region
        $region65: #{tpu_custom_call.1} parent=35 // pred_check
          %p3137 = pneg %p152
        $region66: #{tpu_custom_call.1} parent=35 // pred_check_branch
          %3139 = sbr.rel (%p3137) target = $region68
        $region67: #{tpu_custom_call.1} parent=35 // pred_region
          %s3140 = smul.u32 16, %s28
          %s3142 = ssub.s32 2048, 2048
          %3143 = vsyncadd %s3133, %s3142
          %s3144 = smul.addr %s3140, 128
          %s3145 = scalar_lea.hbm %s4, %s3144
          %s3146 = sshll.u32 %s3136, 4
          %s3147 = int_to_ptr.vmem [resolvable:$true] %s3146
          %3152 = dma.vmem_to_hbm [thread:$0]  %s3147, 2048, %s3145, %s3133, 128, 128, 8
        $region68: #{tpu_custom_call.1} parent=35 // pred_fallthru
          _
      $region36: #{tpu_custom_call.1} parent=5 // pred_fallthru
        _
      %p3153 = scmp.le.s32.totalorder 2, %s19
      // Predicated region
      $region69: #{tpu_custom_call.1} parent=5 // pred_check
        %p3154 = pneg %p3153
      $region70: #{tpu_custom_call.1} parent=5 // pred_check_branch
        %3156 = sbr.rel (%p3154) target = $region72
      $region71: #{tpu_custom_call.1} parent=5 // pred_region
        %s3157 = ssub.s32 %s19, 2
        // Predicated region
        $region73: #{tpu_custom_call.1} parent=71 // pred_check
          %p3158 = pneg %p158
        $region74: #{tpu_custom_call.1} parent=71 // pred_check_branch
          %3160 = sbr.rel (%p3158) target = $region76
        $region75: #{tpu_custom_call.1} parent=71 // pred_region
          %s3161 = sand.u32 %s143, 1
          %s3162 = scalar_lea.sflag [#allocation8], %s3161
          %s3163 = sand.u32 %s143, 1
          %s3164 = smul.addr %s3163, 128
          %s3165 = scalar_lea.vmem [#allocation12], %s3164
          %3166 = dma.done %s3162, 2048
        $region76: #{tpu_custom_call.1} parent=71 // pred_fallthru
          _
      $region72: #{tpu_custom_call.1} parent=5 // pred_fallthru
        _
    $region6: #{tpu_custom_call.1} parent=1 // loop_footer
      %s23 = sadd.s32 1, %s19
    $region7: #{tpu_custom_call.1} parent=1 // loop_footer_branch
      %18 = sbr.rel target = $region3
    $region8: #{tpu_custom_call.1} parent=1 // loop_exit
      _
    %3167 = vsyncpa [#allocation7], 1
    %s3168 = scalar_lea.sflag [#allocation7], 1
    %3169 = vsyncpa %s3168, 1
    %3170 = vsyncpa [#allocation10], 1
    %s3171 = scalar_lea.sflag [#allocation10], 1
    %3172 = vsyncpa %s3171, 1
    %3173 = vsyncpa [#allocation8], 1
    %s3174 = scalar_lea.sflag [#allocation8], 1
    %3175 = vsyncpa %s3174, 1

</llo_original>
